<compile_context>
chip_gen: v7x
topology: tpu7x:2x2x1
jax: 0.10.0
libtpu: 0.0.40
codegen_flags: <defaults>
</compile_context>

<pallas_src>
import functools

import jax
import jax.numpy as jnp
from jax import lax
from jax.experimental import pallas as pl
from jax.experimental.pallas import tpu as pltpu

F = 24            # node_feature_dim (forced by Set2Set(24) / fc2 = Linear(48, 8))
FE = 6            # edge_feature_dim
H = 32            # edge_hidden_dim
FF = F * F        # 576
FF_PAD = 640      # 5 * 128: lane-dense padding of the flattened [F, F] edge weights
GATE_SLOT = 32    # each LSTM gate padded to a 32-lane slot -> 4 gates = 1 vreg


# ---------------------------------------------------------------------------
# Kernel 1: the two weight-shared NNConv layers:  x = relu(nnconv1(x)); x = nnconv1(x)
#   NNConv(aggr='mean'):  out_i = mean_{j->i}( x_j @ Theta(e_ji) ) + x_i @ root + bias
#   Theta = Linear(FE,H) -> ReLU -> Linear(H, F*F), reshaped row-major to [F, F].
# Grid = (layer, edge_tile); edge tiles stream through VMEM (double-buffered by
# BlockSpec), messages + in-degree are scatter-added into one fused [N, F+1]
# accumulator and finalized (mean + root + bias) at the last edge tile.
# ---------------------------------------------------------------------------
def _nnconv_layers_kernel(x_ref, ea_ref, src_ref, tgt_ref,
                          w1_ref, b1_ref, w2_ref, b2_ref,
                          root_ref, bias_ref, rsel_ref, sselT_ref,
                          out_ref, xcur_ref, agg_ref):
    layer = pl.program_id(0)
    et = pl.program_id(1)
    n_layers = pl.num_programs(0)
    n_et = pl.num_programs(1)
    N = xcur_ref.shape[0]
    te = ea_ref.shape[0]

    @pl.when(jnp.logical_and(layer == 0, et == 0))
    def _load_x():
        xcur_ref[...] = x_ref[...]
    # TODO(synk): on v7x, pass x with memory_space=pl.ANY and DMA it here once
    # (and mark constant-index operands pl.Buffered(1)) to trim VMEM residency.

    @pl.when(et == 0)
    def _zero_acc():
        agg_ref[...] = jnp.zeros_like(agg_ref)   # [:, :F] = mean numerator, [:, F] = in-degree

    # Edge-network MLP for this tile, recomputed per layer (keeps only
    # O(te * FF_PAD) edge weights resident instead of all E of them).  f32.
    hdn = jnp.maximum(
        jnp.dot(ea_ref[...], w1_ref[...], preferred_element_type=jnp.float32)
        + b1_ref[...], 0.0)
    wf = (jnp.dot(hdn, w2_ref[...], preferred_element_type=jnp.float32)
          + b2_ref[...])                                      # [te, FF_PAD], cols >= FF are 0

    # One-hot gather/scatter matrices for this tile, in bf16 (0/1 exact).
    # Padded edges carry src = tgt = N (out of range) -> all-zero rows/cols ->
    # they contribute nothing to the aggregation or the fused degree lane.
    src = src_ref[...]                                        # [te, 1]
    tgt = tgt_ref[...]                                        # [1, te]
    src_oh = (lax.broadcasted_iota(jnp.int32, (te, N), 1) == src).astype(jnp.bfloat16)
    tgt_ohT = (lax.broadcasted_iota(jnp.int32, (N, te), 0) == tgt).astype(jnp.bfloat16)

    # Gather x_j: bf16 x bf16 with f32 accumulation (exact copy of bf16(x) rows).
    xj = jnp.dot(src_oh, xcur_ref[...].astype(jnp.bfloat16),
                 preferred_element_type=jnp.float32)          # [te, F]

    # Per-edge matvec msg[e,o] = sum_i xj[e,i] * wf[e, i*F+o] as two lane-dense
    # matmuls: lane replication xrep = xj @ rsel (bf16 operands; exact since xj
    # already holds bf16 values), then a block-sum contraction against sselT.
    xrep = jnp.dot(xj.astype(jnp.bfloat16), rsel_ref[...],
                   preferred_element_type=jnp.float32)        # [te, FF_PAD]
    msg = lax.dot_general(xrep * wf, sselT_ref[...],
                          (((1,), (1,)), ((), ())),
                          preferred_element_type=jnp.float32)  # [te, F]

    # Fused scatter: append a ones lane so the same [N,te] x [te,F+1] matmul
    # accumulates both the mean numerator and the in-degree in one MXU pass.
    msg_aug = jnp.concatenate([msg, jnp.ones((te, 1), jnp.float32)], axis=1)
    agg_ref[...] += jnp.dot(tgt_ohT, msg_aug.astype(jnp.bfloat16),
                            preferred_element_type=jnp.float32)

    @pl.when(et == n_et - 1)
    def _finalize():
        acc = agg_ref[...]
        num = acc[:, :F]
        deg = acc[:, F:]
        # NOTE: pl.reciprocal(deg, approx=True) would push this divide onto the
        # EUP; exact division kept for bit-accuracy (deg is a tiny vector).
        y = (num / jnp.maximum(deg, 1.0)
             + jnp.dot(xcur_ref[...], root_ref[...], preferred_element_type=jnp.float32)
             + bias_ref[...])

        @pl.when(layer != n_layers - 1)
        def _next_layer():
            xcur_ref[...] = jnp.maximum(y, 0.0)    # ReLU between the two NNConvs

        @pl.when(layer == n_layers - 1)
        def _write_out():
            out_ref[...] = y                        # no ReLU after the second NNConv


# ---------------------------------------------------------------------------
# Kernel 2: Set2Set(24, processing_steps=3) + fc2 + ReLU + fc3.
#   segment softmax / segment sums use a [G, N] one-hot mask.  LSTM gates live
#   in 32-lane slots (i, f, g, o), so each step is 3 matmuls into one vreg; the
#   q_star concat is avoided by splitting weights into q-/r- halves.
# ---------------------------------------------------------------------------
def _set2set_head_kernel(x_ref, brow_ref, wih_ref, whh_ref, bl_ref,
                         w2_ref, b2_ref, w3_ref, b3_ref, out_ref):
    N, Fd = x_ref.shape
    G = out_ref.shape[0]

    x = x_ref[...]
    b_mask = lax.broadcasted_iota(jnp.int32, (G, N), 0) == brow_ref[...]   # [G, N]

    wih_q = wih_ref[0:Fd, :]          # q-half of LSTM-input weights  [F, 128]
    wih_r = wih_ref[Fd:2 * Fd, :]     # r-half                        [F, 128]
    whh = whh_ref[...]
    bl = bl_ref[...]

    q = jnp.zeros((G, Fd), jnp.float32)
    r = jnp.zeros((G, Fd), jnp.float32)
    h = jnp.zeros((G, Fd), jnp.float32)
    c = jnp.zeros((G, Fd), jnp.float32)

    for _ in range(3):   # processing_steps = 3
        gates = (jnp.dot(q, wih_q, preferred_element_type=jnp.float32)
                 + jnp.dot(r, wih_r, preferred_element_type=jnp.float32)
                 + jnp.dot(h, whh, preferred_element_type=jnp.float32)
                 + bl)                                                 # [G, 4*GATE_SLOT]
        ig = jax.nn.sigmoid(gates[:, 0 * GATE_SLOT:0 * GATE_SLOT + Fd])
        fg = jax.nn.sigmoid(gates[:, 1 * GATE_SLOT:1 * GATE_SLOT + Fd])
        gg = jnp.tanh(gates[:, 2 * GATE_SLOT:2 * GATE_SLOT + Fd])
        og = jax.nn.sigmoid(gates[:, 3 * GATE_SLOT:3 * GATE_SLOT + Fd])
        c = fg * c + ig * gg
        h = og * jnp.tanh(c)
        q = h                                                          # [G, F]

        # Masked segment softmax attention + readout.
        s = lax.dot_general(q, x, (((1,), (1,)), ((), ())),
                            preferred_element_type=jnp.float32)        # [G, N]
        s = jnp.where(b_mask, s, -1e30)
        m = jnp.max(s, axis=1, keepdims=True)                          # segment max
        es = jnp.where(b_mask, jnp.exp(s - m), 0.0)
        den = jnp.sum(es, axis=1, keepdims=True) + 1e-16
        a = es / den                                                   # segment softmax
        r = jnp.dot(a, x, preferred_element_type=jnp.float32)          # readout [G, F]

    # fc2 on the split q_star halves + ReLU + fc3.
    z = jnp.maximum(
        jnp.dot(q, w2_ref[0:Fd, :], preferred_element_type=jnp.float32)
        + jnp.dot(r, w2_ref[Fd:, :], preferred_element_type=jnp.float32)
        + b2_ref[...], 0.0)
    out_ref[...] = jnp.dot(z, w3_ref[...], preferred_element_type=jnp.float32) + b3_ref[...]


# ---------------------------------------------------------------------------
# Parameters / sizing helpers / wrapper
# ---------------------------------------------------------------------------
def init_params(key):
    ks = jax.random.split(key, 12)
    s = 0.1
    return {
        "edge_w1": jax.random.normal(ks[0], (FE, H), jnp.float32) * s,
        "edge_b1": jax.random.normal(ks[1], (1, H), jnp.float32) * s,
        "edge_w2": jax.random.normal(ks[2], (H, FF), jnp.float32) * s,
        "edge_b2": jax.random.normal(ks[3], (1, FF), jnp.float32) * s,
        "root":    jax.random.normal(ks[4], (F, F), jnp.float32) * s,
        "bias":    jax.random.normal(ks[5], (1, F), jnp.float32) * s,
        # LSTM(input=2F, hidden=F); weights laid out [input, 4F], gate order
        # i, f, g, o; combined bias = bias_ih + bias_hh (transpose when porting
        # torch.nn.LSTM weights).
        "lstm_wih": jax.random.normal(ks[6], (2 * F, 4 * F), jnp.float32) * s,
        "lstm_whh": jax.random.normal(ks[7], (F, 4 * F), jnp.float32) * s,
        "lstm_b":   jax.random.normal(ks[8], (1, 4 * F), jnp.float32) * s,
        "fc2_w": jax.random.normal(ks[9], (2 * F, 8), jnp.float32) * s,
        "fc2_b": jax.random.normal(ks[10], (1, 8), jnp.float32) * s,
        "fc3_w": jax.random.normal(ks[11], (8, 2), jnp.float32) * s,
        "fc3_b": jnp.zeros((1, 2), jnp.float32),
    }


def _round_up(v, m):
    return ((v + m - 1) // m) * m


def _physical_vmem_bytes():
    """Physical per-core VMEM (128 MiB on v5e/v6e, 64 MiB on v7x); safe fallback."""
    try:
        info = pltpu.get_tpu_info()
        cap = int(getattr(info, "vmem_capacity_bytes", 0))
        if cap > 0:
            return cap
    except Exception:
        pass
    return 64 << 20


def _nnconv_vmem_bytes(N, te):
    """Over-approximate VMEM footprint (f32 = 4 B, lane dim padded to 128)."""
    n8 = _round_up(N, 8)
    node = 6 * n8 * 128 * 4                           # x (2 buf) + out (2 buf) + xcur + agg
    consts = 2 * 4 * (H * FF_PAD + FF_PAD + 2 * F * FF_PAD + (F + 4) * 128)
    io = 2 * 4 * (2 * te * 128 + 8 * te)              # ea + src (lane padded) + tgt, 2 buffers
    tmp = (4 * 3 * te * FF_PAD                        # wf, xrep, xrep*wf  (f32)
           + 2 * 2 * te * max(_round_up(N, 128), 128)  # two bf16 one-hots
           + 4 * 4 * te * 128)                        # xj, msg, slack
    return node + consts + io + tmp


def _pick_edge_tile_and_vmem(N, E, requested_tile, phys_vmem):
    """Edge-tile + vmem_limit: te=512 / ~96 MiB cap on 128 MiB parts (v5e/v6e),
    te=256 / ~48 MiB cap on v7x's 64 MiB (leaves compiler-scratch headroom)."""
    cap = max(32 << 20, (phys_vmem * 3) // 4)
    if requested_tile is None:
        requested_tile = 512 if phys_vmem >= (100 << 20) else 256
    E8 = _round_up(max(E, 1), 8)
    if E8 <= requested_tile:
        te = E8                                   # single tile: block == full array extent
    else:
        te = max((requested_tile // 128) * 128, 128)   # tiled: lane blocks need te % 128 == 0
        while te > 128 and _nnconv_vmem_bytes(N, te) > cap:
            te -= 128
    limit = int(min(cap, max(32 << 20, 1.25 * _nnconv_vmem_bytes(N, te))))
    return te, limit


def _set2set_vmem_bytes(N, G):
    n_lane = max(_round_up(N, 128), 128)
    g8 = _round_up(max(G, 1), 8)
    return 4 * (_round_up(N, 8) * 128 + 8 * g8 * n_lane + 8 * 48 * 128)


@functools.partial(jax.jit, static_argnames=("num_graphs", "edge_tile"))
def nnconvnet_forward(x, edge_index, edge_attr, batch, params, num_graphs, edge_tile=None):
    N = x.shape[0]
    E = edge_attr.shape[0]
    phys = _physical_vmem_bytes()
    te, vmem_limit = _pick_edge_tile_and_vmem(N, E, edge_tile, phys)
    n_et = (E + te - 1) // te
    e_pad = n_et * te
    pad = e_pad - E

    src = edge_index[0].astype(jnp.int32)
    tgt = edge_index[1].astype(jnp.int32)
    ea = edge_attr.astype(jnp.float32)
    if pad:
        # Padded edges point at the nonexistent node N -> zero one-hot rows/cols.
        src = jnp.concatenate([src, jnp.full((pad,), N, jnp.int32)])
        tgt = jnp.concatenate([tgt, jnp.full((pad,), N, jnp.int32)])
        ea = jnp.concatenate([ea, jnp.zeros((pad, FE), jnp.float32)], axis=0)
    src_col = src.reshape(-1, 1)        # [E_pad, 1]
    tgt_row = tgt.reshape(1, -1)        # [1, E_pad]
    # TODO(synk): packing src/tgt into one lane-dense [2, E_pad] block was
    # skipped: recovering the [te,1] src orientation would add an in-kernel
    # transpose / transposed-contraction relayout of an O(te*N) operand.

    # F*F padded to 640 lanes; selection matrices for the lane-aligned per-edge
    # matvec (rsel replicates x_j across the 24 column blocks, sselT block-sums).
    eye_f = jnp.eye(F, dtype=jnp.float32)
    w2p = jnp.pad(params["edge_w2"], ((0, 0), (0, FF_PAD - FF)))
    b2p = jnp.pad(params["edge_b2"], ((0, 0), (0, FF_PAD - FF)))
    rsel = jnp.pad(jnp.repeat(eye_f, F, axis=1),
                   ((0, 0), (0, FF_PAD - FF))).astype(jnp.bfloat16)          # [F, FF_PAD]
    sselT = jnp.pad(jnp.tile(eye_f, (F, 1)).T, ((0, 0), (0, FF_PAD - FF)))   # [F, FF_PAD]

    grid = (2, n_et)   # (nnconv layer, edge tile) — both sequential/reduction axes
    # TODO(synk): node-tiled one-hots (target-sorted edges + scalar-prefetched
    # per-tile offsets via pltpu.PrefetchScalarGridSpec) would cut O(E*N) work
    # to O(E*TN) and add a legally-'parallel' node axis for v7x's 2 TensorCores.

    const = lambda l, t: (0, 0)
    in_specs = [
        pl.BlockSpec((N, F), const),                     # x (resident)
        pl.BlockSpec((te, FE), lambda l, t: (t, 0)),     # edge_attr tile
        pl.BlockSpec((te, 1), lambda l, t: (t, 0)),      # src tile
        pl.BlockSpec((1, te), lambda l, t: (0, t)),      # tgt tile
        pl.BlockSpec((FE, H), const),                    # edge_w1
        pl.BlockSpec((1, H), const),                     # edge_b1
        pl.BlockSpec((H, FF_PAD), const),                # edge_w2 (lane padded)
        pl.BlockSpec((1, FF_PAD), const),                # edge_b2
        pl.BlockSpec((F, F), const),                     # root
        pl.BlockSpec((1, F), const),                     # bias
        pl.BlockSpec((F, FF_PAD), const),                # rsel (bf16, exact 0/1)
        pl.BlockSpec((F, FF_PAD), const),                # sselT (block-sum, transposed)
    ]

    x2 = pl.pallas_call(
        _nnconv_layers_kernel,
        out_shape=jax.ShapeDtypeStruct((N, F), jnp.float32),
        grid=grid,
        in_specs=in_specs,
        out_specs=pl.BlockSpec((N, F), const),
        scratch_shapes=[pltpu.VMEM((N, F), jnp.float32),       # x_cur (current layer input)
                        pltpu.VMEM((N, F + 1), jnp.float32)],  # fused [numerator | degree]
        compiler_params=pltpu.CompilerParams(
            dimension_semantics=("arbitrary", "arbitrary"),
            vmem_limit_bytes=vmem_limit),
    )(x.astype(jnp.float32), ea, src_col, tgt_row,
      params["edge_w1"], params["edge_b1"], w2p, b2p,
      params["root"], params["bias"], rsel, sselT)

    # ---- Set2Set(3 steps) + fc2 + ReLU + fc3; x2 is only [N, 24] so this stays
    # a small gridless kernel back-to-back with the NNConv kernel --------------
    brow = batch.reshape(1, -1).astype(jnp.int32)            # [1, N]

    def pad_gate_cols(w):   # [in, 4F] -> [in, 4*GATE_SLOT], each gate in a 32-lane slot
        cols = []
        for g in range(4):
            cols.append(w[:, g * F:(g + 1) * F])
            cols.append(jnp.zeros((w.shape[0], GATE_SLOT - F), w.dtype))
        return jnp.concatenate(cols, axis=1)

    wih_p = pad_gate_cols(params["lstm_wih"])   # [2F, 128]
    whh_p = pad_gate_cols(params["lstm_whh"])   # [F, 128]
    bl_p = pad_gate_cols(params["lstm_b"])      # [1, 128]

    # TODO(synk): for very large N the untiled [N,F] x2 / [G,N] scores would need
    # node tiling here; the derived limit below only covers the untiled case.
    s2s_limit = int(min(max(32 << 20, (phys * 3) // 4),
                        max(16 << 20, 2 * _set2set_vmem_bytes(N, num_graphs))))

    vmem = pl.BlockSpec(memory_space=pltpu.MemorySpace.VMEM)
    out = pl.pallas_call(
        _set2set_head_kernel,
        out_shape=jax.ShapeDtypeStruct((num_graphs, 2), jnp.float32),
        in_specs=[vmem] * 9,
        out_specs=vmem,
        compiler_params=pltpu.CompilerParams(vmem_limit_bytes=s2s_limit),
    )(x2, brow, wih_p, whh_p, bl_p,
      params["fc2_w"], params["fc2_b"], params["fc3_w"], params["fc3_b"])
    return out


# ---------------------------------------------------------------------------
# Pure-JAX reference.  emulate_bf16=True mirrors the kernel's bf16 rounding of
# the gathered x_j and of the per-edge messages (one-hot / selection matrices
# are exact in bf16, so those points are the only precision differences).
# ---------------------------------------------------------------------------
def _reference_forward(x, edge_index, edge_attr, batch, params, num_graphs,
                       emulate_bf16=False):
    src, tgt = edge_index[0], edge_index[1]
    n = x.shape[0]

    def rnd(v):
        return v.astype(jnp.bfloat16).astype(jnp.float32) if emulate_bf16 else v

    hdn = jax.nn.relu(edge_attr @ params["edge_w1"] + params["edge_b1"])
    wf = (hdn @ params["edge_w2"] + params["edge_b2"]).reshape(-1, F, F)

    def nnconv(xin):
        xj = rnd(xin[src])
        msg = rnd(jnp.einsum("ei,eio->eo", xj, wf))
        agg = jax.ops.segment_sum(msg, tgt, num_segments=n)
        cnt = jax.ops.segment_sum(jnp.ones((tgt.shape[0],), jnp.float32), tgt, num_segments=n)
        agg = agg / jnp.maximum(cnt, 1.0)[:, None]
        return agg + xin @ params["root"] + params["bias"]

    x1 = jax.nn.relu(nnconv(x))
    x2 = nnconv(x1)

    g = num_graphs
    h = jnp.zeros((g, F), jnp.float32)
    c = jnp.zeros((g, F), jnp.float32)
    q_star = jnp.zeros((g, 2 * F), jnp.float32)
    for _ in range(3):
        gates = q_star @ params["lstm_wih"] + h @ params["lstm_whh"] + params["lstm_b"]
        ig = jax.nn.sigmoid(gates[:, 0:F]); fg = jax.nn.sigmoid(gates[:, F:2 * F])
        gg = jnp.tanh(gates[:, 2 * F:3 * F]); og = jax.nn.sigmoid(gates[:, 3 * F:4 * F])
        c = fg * c + ig * gg
        h = og * jnp.tanh(c)
        q = h
        e = jnp.sum(x2 * q[batch], axis=1)
        e = e - jax.ops.segment_max(e, batch, num_segments=g)[batch]
        ex = jnp.exp(e)
        den = jax.ops.segment_sum(ex, batch, num_segments=g)[batch] + 1e-16
        a = ex / den
        r = jax.ops.segment_sum(a[:, None] * x2, batch, num_segments=g)
        q_star = jnp.concatenate([q, r], axis=1)

    z = jax.nn.relu(q_star @ params["fc2_w"] + params["fc2_b"])
    return z @ params["fc3_w"] + params["fc3_b"]


if __name__ == "__main__":
    key = jax.random.PRNGKey(0)
    k_x, k_ea, k_e0, k_e1, k_p = jax.random.split(key, 5)

    N, E, G = 12, 16, 2                      # 2 graphs of 6 nodes each, 8 edges per graph
    x = jax.random.normal(k_x, (N, F), jnp.float32)
    edge_attr = jax.random.normal(k_ea, (E, FE), jnp.float32)

    # edges kept within each graph
    src0 = jax.random.randint(k_e0, (E // 2,), 0, 6)
    tgt0 = jax.random.randint(k_e1, (E // 2,), 0, 6)
    src1 = jax.random.randint(jax.random.fold_in(k_e0, 1), (E // 2,), 6, 12)
    tgt1 = jax.random.randint(jax.random.fold_in(k_e1, 1), (E // 2,), 6, 12)
    edge_index = jnp.stack([jnp.concatenate([src0, src1]),
                            jnp.concatenate([tgt0, tgt1])]).astype(jnp.int32)   # [2, E]
    batch = jnp.concatenate([jnp.zeros((6,), jnp.int32),
                             jnp.ones((6,), jnp.int32)])                        # [N]

    params = init_params(k_p)

    out = nnconvnet_forward(x, edge_index, edge_attr, batch, params, num_graphs=G)
    jax.block_until_ready(out)
    assert out.shape == (G, 2)

    # Tight check vs a reference that mirrors the kernel's bf16 rounding points,
    # plus a loose sanity check vs the pure-f32 reference.
    ref_bf16 = _reference_forward(x, edge_index, edge_attr, batch, params, G, emulate_bf16=True)
    ref_f32 = _reference_forward(x, edge_index, edge_attr, batch, params, G, emulate_bf16=False)
    err_m = float(jnp.max(jnp.abs(out - ref_bf16)))
    err_f = float(jnp.max(jnp.abs(out - ref_f32)))
    assert err_m < 2e-3, f"kernel/matched-reference mismatch: max abs err = {err_m}"
    assert err_f < 3e-2, f"kernel/f32-reference mismatch: max abs err = {err_f}"
    print("KERNEL_OK")
</pallas_src>

<mosaic_0001>
module attributes {stable_mosaic.version = 11 : i64} {
  func.func @_set2set_head_kernel(%arg0: memref<12x24xf32, #tpu.memory_space<vmem>>, %arg1: memref<1x12xi32, #tpu.memory_space<vmem>>, %arg2: memref<48x128xf32, #tpu.memory_space<vmem>>, %arg3: memref<24x128xf32, #tpu.memory_space<vmem>>, %arg4: memref<1x128xf32, #tpu.memory_space<vmem>>, %arg5: memref<48x8xf32, #tpu.memory_space<vmem>>, %arg6: memref<1x8xf32, #tpu.memory_space<vmem>>, %arg7: memref<8x2xf32, #tpu.memory_space<vmem>>, %arg8: memref<1x2xf32, #tpu.memory_space<vmem>>, %arg9: memref<2x2xf32, #tpu.memory_space<vmem>>) attributes {dimension_semantics = [], scalar_prefetch = 0 : i64, scratch_operands = 0 : i64, tpu.core_type = #tpu.core_type<tc>} {
    %c0 = arith.constant 0 : index
    %c0_0 = arith.constant 0 : index
    %0 = vector.load %arg0[%c0, %c0_0] : memref<12x24xf32, #tpu.memory_space<vmem>>, vector<12x24xf32>
    %1 = tpu.iota {dimensions = array<i32: 0>} : vector<2x12xi32>
    %c0_1 = arith.constant 0 : index
    %c0_2 = arith.constant 0 : index
    %2 = vector.load %arg1[%c0_1, %c0_2] : memref<1x12xi32, #tpu.memory_space<vmem>>, vector<1x12xi32>
    %3 = vector.broadcast %2 : vector<1x12xi32> to vector<2x12xi32>
    %4 = arith.cmpi eq, %1, %3 : vector<2x12xi32>
    %c0_3 = arith.constant 0 : index
    %c0_4 = arith.constant 0 : index
    %5 = vector.load %arg2[%c0_3, %c0_4] : memref<48x128xf32, #tpu.memory_space<vmem>>, vector<24x128xf32>
    %c24 = arith.constant 24 : index
    %c0_5 = arith.constant 0 : index
    %6 = vector.load %arg2[%c24, %c0_5] : memref<48x128xf32, #tpu.memory_space<vmem>>, vector<24x128xf32>
    %c0_6 = arith.constant 0 : index
    %c0_7 = arith.constant 0 : index
    %7 = vector.load %arg3[%c0_6, %c0_7] : memref<24x128xf32, #tpu.memory_space<vmem>>, vector<24x128xf32>
    %c0_8 = arith.constant 0 : index
    %c0_9 = arith.constant 0 : index
    %8 = vector.load %arg4[%c0_8, %c0_9] : memref<1x128xf32, #tpu.memory_space<vmem>>, vector<1x128xf32>
    %cst = arith.constant 0.000000e+00 : f32
    %9 = vector.broadcast %cst : f32 to vector<2x24xf32>
    %cst_10 = arith.constant 0.000000e+00 : f32
    %10 = vector.broadcast %cst_10 : f32 to vector<2x24xf32>
    %cst_11 = arith.constant 0.000000e+00 : f32
    %11 = vector.broadcast %cst_11 : f32 to vector<2x24xf32>
    %cst_12 = arith.constant 0.000000e+00 : f32
    %12 = vector.broadcast %cst_12 : f32 to vector<2x24xf32>
    %cst_13 = arith.constant dense<0.000000e+00> : vector<2x128xf32>
    %13 = tpu.matmul %9, %5, %cst_13 {dimension_numbers = #tpu.dot_dimension_numbers<[1], [0], [0], [1], [0, 0, 1, 1], [], []>} : vector<2x24xf32>, vector<24x128xf32>, vector<2x128xf32> -> vector<2x128xf32>
    %cst_14 = arith.constant dense<0.000000e+00> : vector<2x128xf32>
    %14 = tpu.matmul %10, %6, %cst_14 {dimension_numbers = #tpu.dot_dimension_numbers<[1], [0], [0], [1], [0, 0, 1, 1], [], []>} : vector<2x24xf32>, vector<24x128xf32>, vector<2x128xf32> -> vector<2x128xf32>
    %15 = arith.addf %13, %14 : vector<2x128xf32>
    %cst_15 = arith.constant dense<0.000000e+00> : vector<2x128xf32>
    %16 = tpu.matmul %11, %7, %cst_15 {dimension_numbers = #tpu.dot_dimension_numbers<[1], [0], [0], [1], [0, 0, 1, 1], [], []>} : vector<2x24xf32>, vector<24x128xf32>, vector<2x128xf32> -> vector<2x128xf32>
    %17 = arith.addf %15, %16 : vector<2x128xf32>
    %18 = vector.broadcast %8 : vector<1x128xf32> to vector<2x128xf32>
    %19 = arith.addf %17, %18 : vector<2x128xf32>
    %20 = vector.extract_strided_slice %19 {offsets = [0, 0], sizes = [2, 24], strides = [1, 1]} : vector<2x128xf32> to vector<2x24xf32>
    %21 = arith.negf %20 : vector<2x24xf32>
    %22 = math.exp %21 : vector<2x24xf32>
    %cst_16 = arith.constant 1.000000e+00 : f32
    %23 = vector.broadcast %cst_16 : f32 to vector<2x24xf32>
    %24 = arith.addf %23, %22 : vector<2x24xf32>
    %25 = arith.divf %23, %24 : vector<2x24xf32>
    %26 = vector.extract_strided_slice %19 {offsets = [0, 32], sizes = [2, 24], strides = [1, 1]} : vector<2x128xf32> to vector<2x24xf32>
    %27 = arith.negf %26 : vector<2x24xf32>
    %28 = math.exp %27 : vector<2x24xf32>
    %cst_17 = arith.constant 1.000000e+00 : f32
    %29 = vector.broadcast %cst_17 : f32 to vector<2x24xf32>
    %30 = arith.addf %29, %28 : vector<2x24xf32>
    %31 = arith.divf %29, %30 : vector<2x24xf32>
    %32 = vector.extract_strided_slice %19 {offsets = [0, 64], sizes = [2, 24], strides = [1, 1]} : vector<2x128xf32> to vector<2x24xf32>
    %33 = math.tanh %32 : vector<2x24xf32>
    %34 = vector.extract_strided_slice %19 {offsets = [0, 96], sizes = [2, 24], strides = [1, 1]} : vector<2x128xf32> to vector<2x24xf32>
    %35 = arith.negf %34 : vector<2x24xf32>
    %36 = math.exp %35 : vector<2x24xf32>
    %cst_18 = arith.constant 1.000000e+00 : f32
    %37 = vector.broadcast %cst_18 : f32 to vector<2x24xf32>
    %38 = arith.addf %37, %36 : vector<2x24xf32>
    %39 = arith.divf %37, %38 : vector<2x24xf32>
    %40 = arith.mulf %31, %12 : vector<2x24xf32>
    %41 = arith.mulf %25, %33 : vector<2x24xf32>
    %42 = arith.addf %40, %41 : vector<2x24xf32>
    %43 = math.tanh %42 : vector<2x24xf32>
    %44 = arith.mulf %39, %43 : vector<2x24xf32>
    %cst_19 = arith.constant dense<0.000000e+00> : vector<2x12xf32>
    %45 = tpu.matmul %44, %0, %cst_19 {dimension_numbers = #tpu.dot_dimension_numbers<[1], [1], [0], [0], [0, 0, 1, 0], [], []>} : vector<2x24xf32>, vector<12x24xf32>, vector<2x12xf32> -> vector<2x12xf32>
    %cst_20 = arith.constant -1.000000e+30 : f32
    %46 = vector.broadcast %cst_20 : f32 to vector<2x12xf32>
    %47 = arith.select %4, %45, %46 : vector<2x12xi1>, vector<2x12xf32>
    %cst_21 = arith.constant dense<0xFF800000> : vector<2xf32>
    %48 = vector.multi_reduction <maximumf>, %47, %cst_21 [1] : vector<2x12xf32> to vector<2xf32>
    %49 = vector.shape_cast %48 : vector<2xf32> to vector<2x1xf32>
    %50 = vector.broadcast %49 : vector<2x1xf32> to vector<2x12xf32>
    %51 = arith.subf %47, %50 : vector<2x12xf32>
    %52 = math.exp %51 : vector<2x12xf32>
    %cst_22 = arith.constant 0.000000e+00 : f32
    %53 = vector.broadcast %cst_22 : f32 to vector<2x12xf32>
    %54 = arith.select %4, %52, %53 : vector<2x12xi1>, vector<2x12xf32>
    %cst_23 = arith.constant dense<0.000000e+00> : vector<2xf32>
    %55 = vector.multi_reduction <add>, %54, %cst_23 [1] : vector<2x12xf32> to vector<2xf32>
    %56 = vector.shape_cast %55 : vector<2xf32> to vector<2x1xf32>
    %cst_24 = arith.constant 1.000000e-16 : f32
    %57 = vector.broadcast %cst_24 : f32 to vector<2x1xf32>
    %58 = arith.addf %56, %57 : vector<2x1xf32>
    %59 = vector.broadcast %58 : vector<2x1xf32> to vector<2x12xf32>
    %60 = arith.divf %54, %59 : vector<2x12xf32>
    %cst_25 = arith.constant dense<0.000000e+00> : vector<2x24xf32>
    %61 = tpu.matmul %60, %0, %cst_25 {dimension_numbers = #tpu.dot_dimension_numbers<[1], [0], [0], [1], [0, 0, 1, 1], [], []>} : vector<2x12xf32>, vector<12x24xf32>, vector<2x24xf32> -> vector<2x24xf32>
    %cst_26 = arith.constant dense<0.000000e+00> : vector<2x128xf32>
    %62 = tpu.matmul %44, %5, %cst_26 {dimension_numbers = #tpu.dot_dimension_numbers<[1], [0], [0], [1], [0, 0, 1, 1], [], []>} : vector<2x24xf32>, vector<24x128xf32>, vector<2x128xf32> -> vector<2x128xf32>
    %cst_27 = arith.constant dense<0.000000e+00> : vector<2x128xf32>
    %63 = tpu.matmul %61, %6, %cst_27 {dimension_numbers = #tpu.dot_dimension_numbers<[1], [0], [0], [1], [0, 0, 1, 1], [], []>} : vector<2x24xf32>, vector<24x128xf32>, vector<2x128xf32> -> vector<2x128xf32>
    %64 = arith.addf %62, %63 : vector<2x128xf32>
    %cst_28 = arith.constant dense<0.000000e+00> : vector<2x128xf32>
    %65 = tpu.matmul %44, %7, %cst_28 {dimension_numbers = #tpu.dot_dimension_numbers<[1], [0], [0], [1], [0, 0, 1, 1], [], []>} : vector<2x24xf32>, vector<24x128xf32>, vector<2x128xf32> -> vector<2x128xf32>
    %66 = arith.addf %64, %65 : vector<2x128xf32>
    %67 = vector.broadcast %8 : vector<1x128xf32> to vector<2x128xf32>
    %68 = arith.addf %66, %67 : vector<2x128xf32>
    %69 = vector.extract_strided_slice %68 {offsets = [0, 0], sizes = [2, 24], strides = [1, 1]} : vector<2x128xf32> to vector<2x24xf32>
    %70 = arith.negf %69 : vector<2x24xf32>
    %71 = math.exp %70 : vector<2x24xf32>
    %cst_29 = arith.constant 1.000000e+00 : f32
    %72 = vector.broadcast %cst_29 : f32 to vector<2x24xf32>
    %73 = arith.addf %72, %71 : vector<2x24xf32>
    %74 = arith.divf %72, %73 : vector<2x24xf32>
    %75 = vector.extract_strided_slice %68 {offsets = [0, 32], sizes = [2, 24], strides = [1, 1]} : vector<2x128xf32> to vector<2x24xf32>
    %76 = arith.negf %75 : vector<2x24xf32>
    %77 = math.exp %76 : vector<2x24xf32>
    %cst_30 = arith.constant 1.000000e+00 : f32
    %78 = vector.broadcast %cst_30 : f32 to vector<2x24xf32>
    %79 = arith.addf %78, %77 : vector<2x24xf32>
    %80 = arith.divf %78, %79 : vector<2x24xf32>
    %81 = vector.extract_strided_slice %68 {offsets = [0, 64], sizes = [2, 24], strides = [1, 1]} : vector<2x128xf32> to vector<2x24xf32>
    %82 = math.tanh %81 : vector<2x24xf32>
    %83 = vector.extract_strided_slice %68 {offsets = [0, 96], sizes = [2, 24], strides = [1, 1]} : vector<2x128xf32> to vector<2x24xf32>
    %84 = arith.negf %83 : vector<2x24xf32>
    %85 = math.exp %84 : vector<2x24xf32>
    %cst_31 = arith.constant 1.000000e+00 : f32
    %86 = vector.broadcast %cst_31 : f32 to vector<2x24xf32>
    %87 = arith.addf %86, %85 : vector<2x24xf32>
    %88 = arith.divf %86, %87 : vector<2x24xf32>
    %89 = arith.mulf %80, %42 : vector<2x24xf32>
    %90 = arith.mulf %74, %82 : vector<2x24xf32>
    %91 = arith.addf %89, %90 : vector<2x24xf32>
    %92 = math.tanh %91 : vector<2x24xf32>
    %93 = arith.mulf %88, %92 : vector<2x24xf32>
    %cst_32 = arith.constant dense<0.000000e+00> : vector<2x12xf32>
    %94 = tpu.matmul %93, %0, %cst_32 {dimension_numbers = #tpu.dot_dimension_numbers<[1], [1], [0], [0], [0, 0, 1, 0], [], []>} : vector<2x24xf32>, vector<12x24xf32>, vector<2x12xf32> -> vector<2x12xf32>
    %cst_33 = arith.constant -1.000000e+30 : f32
    %95 = vector.broadcast %cst_33 : f32 to vector<2x12xf32>
    %96 = arith.select %4, %94, %95 : vector<2x12xi1>, vector<2x12xf32>
    %cst_34 = arith.constant dense<0xFF800000> : vector<2xf32>
    %97 = vector.multi_reduction <maximumf>, %96, %cst_34 [1] : vector<2x12xf32> to vector<2xf32>
    %98 = vector.shape_cast %97 : vector<2xf32> to vector<2x1xf32>
    %99 = vector.broadcast %98 : vector<2x1xf32> to vector<2x12xf32>
    %100 = arith.subf %96, %99 : vector<2x12xf32>
    %101 = math.exp %100 : vector<2x12xf32>
    %cst_35 = arith.constant 0.000000e+00 : f32
    %102 = vector.broadcast %cst_35 : f32 to vector<2x12xf32>
    %103 = arith.select %4, %101, %102 : vector<2x12xi1>, vector<2x12xf32>
    %cst_36 = arith.constant dense<0.000000e+00> : vector<2xf32>
    %104 = vector.multi_reduction <add>, %103, %cst_36 [1] : vector<2x12xf32> to vector<2xf32>
    %105 = vector.shape_cast %104 : vector<2xf32> to vector<2x1xf32>
    %cst_37 = arith.constant 1.000000e-16 : f32
    %106 = vector.broadcast %cst_37 : f32 to vector<2x1xf32>
    %107 = arith.addf %105, %106 : vector<2x1xf32>
    %108 = vector.broadcast %107 : vector<2x1xf32> to vector<2x12xf32>
    %109 = arith.divf %103, %108 : vector<2x12xf32>
    %cst_38 = arith.constant dense<0.000000e+00> : vector<2x24xf32>
    %110 = tpu.matmul %109, %0, %cst_38 {dimension_numbers = #tpu.dot_dimension_numbers<[1], [0], [0], [1], [0, 0, 1, 1], [], []>} : vector<2x12xf32>, vector<12x24xf32>, vector<2x24xf32> -> vector<2x24xf32>
    %cst_39 = arith.constant dense<0.000000e+00> : vector<2x128xf32>
    %111 = tpu.matmul %93, %5, %cst_39 {dimension_numbers = #tpu.dot_dimension_numbers<[1], [0], [0], [1], [0, 0, 1, 1], [], []>} : vector<2x24xf32>, vector<24x128xf32>, vector<2x128xf32> -> vector<2x128xf32>
    %cst_40 = arith.constant dense<0.000000e+00> : vector<2x128xf32>
    %112 = tpu.matmul %110, %6, %cst_40 {dimension_numbers = #tpu.dot_dimension_numbers<[1], [0], [0], [1], [0, 0, 1, 1], [], []>} : vector<2x24xf32>, vector<24x128xf32>, vector<2x128xf32> -> vector<2x128xf32>
    %113 = arith.addf %111, %112 : vector<2x128xf32>
    %cst_41 = arith.constant dense<0.000000e+00> : vector<2x128xf32>
    %114 = tpu.matmul %93, %7, %cst_41 {dimension_numbers = #tpu.dot_dimension_numbers<[1], [0], [0], [1], [0, 0, 1, 1], [], []>} : vector<2x24xf32>, vector<24x128xf32>, vector<2x128xf32> -> vector<2x128xf32>
    %115 = arith.addf %113, %114 : vector<2x128xf32>
    %116 = vector.broadcast %8 : vector<1x128xf32> to vector<2x128xf32>
    %117 = arith.addf %115, %116 : vector<2x128xf32>
    %118 = vector.extract_strided_slice %117 {offsets = [0, 0], sizes = [2, 24], strides = [1, 1]} : vector<2x128xf32> to vector<2x24xf32>
    %119 = arith.negf %118 : vector<2x24xf32>
    %120 = math.exp %119 : vector<2x24xf32>
    %cst_42 = arith.constant 1.000000e+00 : f32
    %121 = vector.broadcast %cst_42 : f32 to vector<2x24xf32>
    %122 = arith.addf %121, %120 : vector<2x24xf32>
    %123 = arith.divf %121, %122 : vector<2x24xf32>
    %124 = vector.extract_strided_slice %117 {offsets = [0, 32], sizes = [2, 24], strides = [1, 1]} : vector<2x128xf32> to vector<2x24xf32>
    %125 = arith.negf %124 : vector<2x24xf32>
    %126 = math.exp %125 : vector<2x24xf32>
    %cst_43 = arith.constant 1.000000e+00 : f32
    %127 = vector.broadcast %cst_43 : f32 to vector<2x24xf32>
    %128 = arith.addf %127, %126 : vector<2x24xf32>
    %129 = arith.divf %127, %128 : vector<2x24xf32>
    %130 = vector.extract_strided_slice %117 {offsets = [0, 64], sizes = [2, 24], strides = [1, 1]} : vector<2x128xf32> to vector<2x24xf32>
    %131 = math.tanh %130 : vector<2x24xf32>
    %132 = vector.extract_strided_slice %117 {offsets = [0, 96], sizes = [2, 24], strides = [1, 1]} : vector<2x128xf32> to vector<2x24xf32>
    %133 = arith.negf %132 : vector<2x24xf32>
    %134 = math.exp %133 : vector<2x24xf32>
    %cst_44 = arith.constant 1.000000e+00 : f32
    %135 = vector.broadcast %cst_44 : f32 to vector<2x24xf32>
    %136 = arith.addf %135, %134 : vector<2x24xf32>
    %137 = arith.divf %135, %136 : vector<2x24xf32>
    %138 = arith.mulf %129, %91 : vector<2x24xf32>
    %139 = arith.mulf %123, %131 : vector<2x24xf32>
    %140 = arith.addf %138, %139 : vector<2x24xf32>
    %141 = math.tanh %140 : vector<2x24xf32>
    %142 = arith.mulf %137, %141 : vector<2x24xf32>
    %cst_45 = arith.constant dense<0.000000e+00> : vector<2x12xf32>
    %143 = tpu.matmul %142, %0, %cst_45 {dimension_numbers = #tpu.dot_dimension_numbers<[1], [1], [0], [0], [0, 0, 1, 0], [], []>} : vector<2x24xf32>, vector<12x24xf32>, vector<2x12xf32> -> vector<2x12xf32>
    %cst_46 = arith.constant -1.000000e+30 : f32
    %144 = vector.broadcast %cst_46 : f32 to vector<2x12xf32>
    %145 = arith.select %4, %143, %144 : vector<2x12xi1>, vector<2x12xf32>
    %cst_47 = arith.constant dense<0xFF800000> : vector<2xf32>
    %146 = vector.multi_reduction <maximumf>, %145, %cst_47 [1] : vector<2x12xf32> to vector<2xf32>
    %147 = vector.shape_cast %146 : vector<2xf32> to vector<2x1xf32>
    %148 = vector.broadcast %147 : vector<2x1xf32> to vector<2x12xf32>
    %149 = arith.subf %145, %148 : vector<2x12xf32>
    %150 = math.exp %149 : vector<2x12xf32>
    %cst_48 = arith.constant 0.000000e+00 : f32
    %151 = vector.broadcast %cst_48 : f32 to vector<2x12xf32>
    %152 = arith.select %4, %150, %151 : vector<2x12xi1>, vector<2x12xf32>
    %cst_49 = arith.constant dense<0.000000e+00> : vector<2xf32>
    %153 = vector.multi_reduction <add>, %152, %cst_49 [1] : vector<2x12xf32> to vector<2xf32>
    %154 = vector.shape_cast %153 : vector<2xf32> to vector<2x1xf32>
    %cst_50 = arith.constant 1.000000e-16 : f32
    %155 = vector.broadcast %cst_50 : f32 to vector<2x1xf32>
    %156 = arith.addf %154, %155 : vector<2x1xf32>
    %157 = vector.broadcast %156 : vector<2x1xf32> to vector<2x12xf32>
    %158 = arith.divf %152, %157 : vector<2x12xf32>
    %cst_51 = arith.constant dense<0.000000e+00> : vector<2x24xf32>
    %159 = tpu.matmul %158, %0, %cst_51 {dimension_numbers = #tpu.dot_dimension_numbers<[1], [0], [0], [1], [0, 0, 1, 1], [], []>} : vector<2x12xf32>, vector<12x24xf32>, vector<2x24xf32> -> vector<2x24xf32>
    %c0_52 = arith.constant 0 : index
    %c0_53 = arith.constant 0 : index
    %160 = vector.load %arg5[%c0_52, %c0_53] : memref<48x8xf32, #tpu.memory_space<vmem>>, vector<24x8xf32>
    %cst_54 = arith.constant dense<0.000000e+00> : vector<2x8xf32>
    %161 = tpu.matmul %142, %160, %cst_54 {dimension_numbers = #tpu.dot_dimension_numbers<[1], [0], [0], [1], [0, 0, 1, 1], [], []>} : vector<2x24xf32>, vector<24x8xf32>, vector<2x8xf32> -> vector<2x8xf32>
    %c24_55 = arith.constant 24 : index
    %c0_56 = arith.constant 0 : index
    %162 = vector.load %arg5[%c24_55, %c0_56] : memref<48x8xf32, #tpu.memory_space<vmem>>, vector<24x8xf32>
    %cst_57 = arith.constant dense<0.000000e+00> : vector<2x8xf32>
    %163 = tpu.matmul %159, %162, %cst_57 {dimension_numbers = #tpu.dot_dimension_numbers<[1], [0], [0], [1], [0, 0, 1, 1], [], []>} : vector<2x24xf32>, vector<24x8xf32>, vector<2x8xf32> -> vector<2x8xf32>
    %164 = arith.addf %161, %163 : vector<2x8xf32>
    %c0_58 = arith.constant 0 : index
    %c0_59 = arith.constant 0 : index
    %165 = vector.load %arg6[%c0_58, %c0_59] : memref<1x8xf32, #tpu.memory_space<vmem>>, vector<1x8xf32>
    %166 = vector.broadcast %165 : vector<1x8xf32> to vector<2x8xf32>
    %167 = arith.addf %164, %166 : vector<2x8xf32>
    %cst_60 = arith.constant 0.000000e+00 : f32
    %168 = vector.broadcast %cst_60 : f32 to vector<2x8xf32>
    %169 = arith.maximumf %167, %168 : vector<2x8xf32>
    %c0_61 = arith.constant 0 : index
    %c0_62 = arith.constant 0 : index
    %170 = vector.load %arg7[%c0_61, %c0_62] : memref<8x2xf32, #tpu.memory_space<vmem>>, vector<8x2xf32>
    %cst_63 = arith.constant dense<0.000000e+00> : vector<2x2xf32>
    %171 = tpu.matmul %169, %170, %cst_63 {dimension_numbers = #tpu.dot_dimension_numbers<[1], [0], [0], [1], [0, 0, 1, 1], [], []>} : vector<2x8xf32>, vector<8x2xf32>, vector<2x2xf32> -> vector<2x2xf32>
    %c0_64 = arith.constant 0 : index
    %c0_65 = arith.constant 0 : index
    %172 = vector.load %arg8[%c0_64, %c0_65] : memref<1x2xf32, #tpu.memory_space<vmem>>, vector<1x2xf32>
    %173 = vector.broadcast %172 : vector<1x2xf32> to vector<2x2xf32>
    %174 = arith.addf %171, %173 : vector<2x2xf32>
    %c0_66 = arith.constant 0 : index
    %c0_67 = arith.constant 0 : index
    %175 = vector.load %arg9[%c0_66, %c0_67] : memref<2x2xf32, #tpu.memory_space<vmem>>, vector<2x2xf32>
    tpu.vector_store %arg9[%c0_66, %c0_67], %174 {strides = array<i32>} : memref<2x2xf32, #tpu.memory_space<vmem>>, vector<2x2xf32>,
    return
  }
}

module attributes {stable_mosaic.version = 11 : i64} {
  func.func @_nnconv_layers_kernel(%arg0: i32, %arg1: i32, %arg2: memref<12x24xf32, #tpu.memory_space<vmem>>, %arg3: memref<16x6xf32, #tpu.memory_space<vmem>>, %arg4: memref<16x1xi32, #tpu.memory_space<vmem>>, %arg5: memref<1x16xi32, #tpu.memory_space<vmem>>, %arg6: memref<6x32xf32, #tpu.memory_space<vmem>>, %arg7: memref<1x32xf32, #tpu.memory_space<vmem>>, %arg8: memref<32x640xf32, #tpu.memory_space<vmem>>, %arg9: memref<1x640xf32, #tpu.memory_space<vmem>>, %arg10: memref<24x24xf32, #tpu.memory_space<vmem>>, %arg11: memref<1x24xf32, #tpu.memory_space<vmem>>, %arg12: memref<24x640xbf16, #tpu.memory_space<vmem>>, %arg13: memref<24x640xf32, #tpu.memory_space<vmem>>, %arg14: memref<12x24xf32, #tpu.memory_space<vmem>>, %arg15: memref<12x24xf32, #tpu.memory_space<vmem>>, %arg16: memref<12x25xf32, #tpu.memory_space<vmem>>) attributes {dimension_semantics = [#tpu.dimension_semantics<arbitrary>, #tpu.dimension_semantics<arbitrary>], iteration_bounds = array<i64: 2, 1>, scalar_prefetch = 0 : i64, scratch_operands = 2 : i64, tpu.core_type = #tpu.core_type<tc>, window_params = [{pipeline_mode = #tpu.pipeline_mode<synchronous>, transform_indices = @transform_0, window_bounds = array<i64: 12, 24>}, {transform_indices = @transform_1, window_bounds = array<i64: 16, 6>}, {transform_indices = @transform_2, window_bounds = array<i64: 16, 1>}, {transform_indices = @transform_3, window_bounds = array<i64: 1, 16>}, {pipeline_mode = #tpu.pipeline_mode<synchronous>, transform_indices = @transform_4, window_bounds = array<i64: 6, 32>}, {pipeline_mode = #tpu.pipeline_mode<synchronous>, transform_indices = @transform_5, window_bounds = array<i64: 1, 32>}, {pipeline_mode = #tpu.pipeline_mode<synchronous>, transform_indices = @transform_6, window_bounds = array<i64: 32, 640>}, {pipeline_mode = #tpu.pipeline_mode<synchronous>, transform_indices = @transform_7, window_bounds = array<i64: 1, 640>}, {pipeline_mode = #tpu.pipeline_mode<synchronous>, transform_indices = @transform_8, window_bounds = array<i64: 24, 24>}, {pipeline_mode = #tpu.pipeline_mode<synchronous>, transform_indices = @transform_9, window_bounds = array<i64: 1, 24>}, {pipeline_mode = #tpu.pipeline_mode<synchronous>, transform_indices = @transform_10, window_bounds = array<i64: 24, 640>}, {pipeline_mode = #tpu.pipeline_mode<synchronous>, transform_indices = @transform_11, window_bounds = array<i64: 24, 640>}, {pipeline_mode = #tpu.pipeline_mode<synchronous>, transform_indices = @transform_12, window_bounds = array<i64: 12, 24>}]} {
    %c0_i32 = arith.constant 0 : i32
    %0 = arith.cmpi eq, %arg0, %c0_i32 : i32
    %c0_i32_0 = arith.constant 0 : i32
    %1 = arith.cmpi eq, %arg1, %c0_i32_0 : i32
    %2 = arith.andi %0, %1 : i1
    %3 = arith.extui %2 : i1 to i32
    %c0_i32_1 = arith.constant 0 : i32
    %4 = arith.cmpi ne, %3, %c0_i32_1 : i32
    scf.if %4 {
      %c0_36 = arith.constant 0 : index
      %c0_37 = arith.constant 0 : index
      %54 = vector.load %arg2[%c0_36, %c0_37] : memref<12x24xf32, #tpu.memory_space<vmem>>, vector<12x24xf32>
      %c0_38 = arith.constant 0 : index
      %c0_39 = arith.constant 0 : index
      %55 = vector.load %arg15[%c0_38, %c0_39] : memref<12x24xf32, #tpu.memory_space<vmem>>, vector<12x24xf32>
      tpu.vector_store %arg15[%c0_38, %c0_39], %54 {strides = array<i32>} : memref<12x24xf32, #tpu.memory_space<vmem>>, vector<12x24xf32>,
    } else {
    }
    %c0_i32_2 = arith.constant 0 : i32
    %5 = arith.cmpi eq, %arg1, %c0_i32_2 : i32
    %6 = arith.extui %5 : i1 to i32
    %c0_i32_3 = arith.constant 0 : i32
    %7 = arith.cmpi ne, %6, %c0_i32_3 : i32
    scf.if %7 {
      %cst_36 = arith.constant 0.000000e+00 : f32
      %54 = vector.broadcast %cst_36 : f32 to vector<12x25xf32>
      %c0_37 = arith.constant 0 : index
      %c0_38 = arith.constant 0 : index
      %55 = vector.load %arg16[%c0_37, %c0_38] : memref<12x25xf32, #tpu.memory_space<vmem>>, vector<12x25xf32>
      tpu.vector_store %arg16[%c0_37, %c0_38], %54 {strides = array<i32>} : memref<12x25xf32, #tpu.memory_space<vmem>>, vector<12x25xf32>,
    } else {
    }
    %c0 = arith.constant 0 : index
    %c0_4 = arith.constant 0 : index
    %8 = vector.load %arg3[%c0, %c0_4] : memref<16x6xf32, #tpu.memory_space<vmem>>, vector<16x6xf32>
    %c0_5 = arith.constant 0 : index
    %c0_6 = arith.constant 0 : index
    %9 = vector.load %arg6[%c0_5, %c0_6] : memref<6x32xf32, #tpu.memory_space<vmem>>, vector<6x32xf32>
    %cst = arith.constant dense<0.000000e+00> : vector<16x32xf32>
    %10 = tpu.matmul %8, %9, %cst {dimension_numbers = #tpu.dot_dimension_numbers<[1], [0], [0], [1], [0, 0, 1, 1], [], []>} : vector<16x6xf32>, vector<6x32xf32>, vector<16x32xf32> -> vector<16x32xf32>
    %c0_7 = arith.constant 0 : index
    %c0_8 = arith.constant 0 : index
    %11 = vector.load %arg7[%c0_7, %c0_8] : memref<1x32xf32, #tpu.memory_space<vmem>>, vector<1x32xf32>
    %12 = vector.broadcast %11 : vector<1x32xf32> to vector<16x32xf32>
    %13 = arith.addf %10, %12 : vector<16x32xf32>
    %cst_9 = arith.constant 0.000000e+00 : f32
    %14 = vector.broadcast %cst_9 : f32 to vector<16x32xf32>
    %15 = arith.maximumf %13, %14 : vector<16x32xf32>
    %c0_10 = arith.constant 0 : index
    %c0_11 = arith.constant 0 : index
    %16 = vector.load %arg8[%c0_10, %c0_11] : memref<32x640xf32, #tpu.memory_space<vmem>>, vector<32x640xf32>
    %cst_12 = arith.constant dense<0.000000e+00> : vector<16x640xf32>
    %17 = tpu.matmul %15, %16, %cst_12 {dimension_numbers = #tpu.dot_dimension_numbers<[1], [0], [0], [1], [0, 0, 1, 1], [], []>} : vector<16x32xf32>, vector<32x640xf32>, vector<16x640xf32> -> vector<16x640xf32>
    %c0_13 = arith.constant 0 : index
    %c0_14 = arith.constant 0 : index
    %18 = vector.load %arg9[%c0_13, %c0_14] : memref<1x640xf32, #tpu.memory_space<vmem>>, vector<1x640xf32>
    %19 = vector.broadcast %18 : vector<1x640xf32> to vector<16x640xf32>
    %20 = arith.addf %17, %19 : vector<16x640xf32>
    %c0_15 = arith.constant 0 : index
    %c0_16 = arith.constant 0 : index
    %21 = vector.load %arg4[%c0_15, %c0_16] : memref<16x1xi32, #tpu.memory_space<vmem>>, vector<16x1xi32>
    %c0_17 = arith.constant 0 : index
    %c0_18 = arith.constant 0 : index
    %22 = vector.load %arg5[%c0_17, %c0_18] : memref<1x16xi32, #tpu.memory_space<vmem>>, vector<1x16xi32>
    %23 = tpu.iota {dimensions = array<i32: 1>} : vector<16x12xi32>
    %24 = vector.broadcast %21 : vector<16x1xi32> to vector<16x12xi32>
    %25 = arith.cmpi eq, %23, %24 : vector<16x12xi32>
    %26 = arith.extui %25 : vector<16x12xi1> to vector<16x12xi32>
    %27 = arith.sitofp %26 : vector<16x12xi32> to vector<16x12xf32>
    %28 = arith.truncf %27 : vector<16x12xf32> to vector<16x12xbf16>
    %29 = tpu.iota {dimensions = array<i32: 0>} : vector<12x16xi32>
    %30 = vector.broadcast %22 : vector<1x16xi32> to vector<12x16xi32>
    %31 = arith.cmpi eq, %29, %30 : vector<12x16xi32>
    %32 = arith.extui %31 : vector<12x16xi1> to vector<12x16xi32>
    %33 = arith.sitofp %32 : vector<12x16xi32> to vector<12x16xf32>
    %34 = arith.truncf %33 : vector<12x16xf32> to vector<12x16xbf16>
    %c0_19 = arith.constant 0 : index
    %c0_20 = arith.constant 0 : index
    %35 = vector.load %arg15[%c0_19, %c0_20] : memref<12x24xf32, #tpu.memory_space<vmem>>, vector<12x24xf32>
    %36 = arith.truncf %35 : vector<12x24xf32> to vector<12x24xbf16>
    %cst_21 = arith.constant dense<0.000000e+00> : vector<16x24xf32>
    %37 = tpu.matmul %28, %36, %cst_21 {dimension_numbers = #tpu.dot_dimension_numbers<[1], [0], [0], [1], [0, 0, 1, 1], [], []>} : vector<16x12xbf16>, vector<12x24xbf16>, vector<16x24xf32> -> vector<16x24xf32>
    %38 = arith.truncf %37 : vector<16x24xf32> to vector<16x24xbf16>
    %c0_22 = arith.constant 0 : index
    %c0_23 = arith.constant 0 : index
    %39 = vector.load %arg12[%c0_22, %c0_23] : memref<24x640xbf16, #tpu.memory_space<vmem>>, vector<24x640xbf16>
    %cst_24 = arith.constant dense<0.000000e+00> : vector<16x640xf32>
    %40 = tpu.matmul %38, %39, %cst_24 {dimension_numbers = #tpu.dot_dimension_numbers<[1], [0], [0], [1], [0, 0, 1, 1], [], []>} : vector<16x24xbf16>, vector<24x640xbf16>, vector<16x640xf32> -> vector<16x640xf32>
    %41 = arith.mulf %40, %20 : vector<16x640xf32>
    %c0_25 = arith.constant 0 : index
    %c0_26 = arith.constant 0 : index
    %42 = vector.load %arg13[%c0_25, %c0_26] : memref<24x640xf32, #tpu.memory_space<vmem>>, vector<24x640xf32>
    %cst_27 = arith.constant dense<0.000000e+00> : vector<16x24xf32>
    %43 = tpu.matmul %41, %42, %cst_27 {dimension_numbers = #tpu.dot_dimension_numbers<[1], [1], [0], [0], [0, 0, 1, 0], [], []>} : vector<16x640xf32>, vector<24x640xf32>, vector<16x24xf32> -> vector<16x24xf32>
    %cst_28 = arith.constant 1.000000e+00 : f32
    %44 = vector.broadcast %cst_28 : f32 to vector<16x1xf32>
    %45 = tpu.concatenate %43, %44 in 1 : vector<16x24xf32>, vector<16x1xf32> -> vector<16x25xf32>
    %c0_29 = arith.constant 0 : index
    %c0_30 = arith.constant 0 : index
    %46 = vector.load %arg16[%c0_29, %c0_30] : memref<12x25xf32, #tpu.memory_space<vmem>>, vector<12x25xf32>
    %47 = arith.truncf %45 : vector<16x25xf32> to vector<16x25xbf16>
    %cst_31 = arith.constant dense<0.000000e+00> : vector<12x25xf32>
    %48 = tpu.matmul %34, %47, %cst_31 {dimension_numbers = #tpu.dot_dimension_numbers<[1], [0], [0], [1], [0, 0, 1, 1], [], []>} : vector<12x16xbf16>, vector<16x25xbf16>, vector<12x25xf32> -> vector<12x25xf32>
    %49 = arith.addf %46, %48 : vector<12x25xf32>
    %c0_32 = arith.constant 0 : index
    %c0_33 = arith.constant 0 : index
    %50 = vector.load %arg16[%c0_32, %c0_33] : memref<12x25xf32, #tpu.memory_space<vmem>>, vector<12x25xf32>
    tpu.vector_store %arg16[%c0_32, %c0_33], %49 {strides = array<i32>} : memref<12x25xf32, #tpu.memory_space<vmem>>, vector<12x25xf32>,
    %c0_i32_34 = arith.constant 0 : i32
    %51 = arith.cmpi eq, %arg1, %c0_i32_34 : i32
    %52 = arith.extui %51 : i1 to i32
    %c0_i32_35 = arith.constant 0 : i32
    %53 = arith.cmpi ne, %52, %c0_i32_35 : i32
    scf.if %53 {
      %c0_36 = arith.constant 0 : index
      %c0_37 = arith.constant 0 : index
      %54 = vector.load %arg16[%c0_36, %c0_37] : memref<12x25xf32, #tpu.memory_space<vmem>>, vector<12x25xf32>
      %55 = vector.extract_strided_slice %54 {offsets = [0, 0], sizes = [12, 24], strides = [1, 1]} : vector<12x25xf32> to vector<12x24xf32>
      %56 = vector.extract_strided_slice %54 {offsets = [0, 24], sizes = [12, 1], strides = [1, 1]} : vector<12x25xf32> to vector<12x1xf32>
      %cst_38 = arith.constant 1.000000e+00 : f32
      %57 = vector.broadcast %cst_38 : f32 to vector<12x1xf32>
      %58 = arith.maximumf %56, %57 : vector<12x1xf32>
      %59 = vector.broadcast %58 : vector<12x1xf32> to vector<12x24xf32>
      %60 = arith.divf %55, %59 : vector<12x24xf32>
      %c0_39 = arith.constant 0 : index
      %c0_40 = arith.constant 0 : index
      %61 = vector.load %arg15[%c0_39, %c0_40] : memref<12x24xf32, #tpu.memory_space<vmem>>, vector<12x24xf32>
      %c0_41 = arith.constant 0 : index
      %c0_42 = arith.constant 0 : index
      %62 = vector.load %arg10[%c0_41, %c0_42] : memref<24x24xf32, #tpu.memory_space<vmem>>, vector<24x24xf32>
      %cst_43 = arith.constant dense<0.000000e+00> : vector<12x24xf32>
      %63 = tpu.matmul %61, %62, %cst_43 {dimension_numbers = #tpu.dot_dimension_numbers<[1], [0], [0], [1], [0, 0, 1, 1], [], []>} : vector<12x24xf32>, vector<24x24xf32>, vector<12x24xf32> -> vector<12x24xf32>
      %64 = arith.addf %60, %63 : vector<12x24xf32>
      %c0_44 = arith.constant 0 : index
      %c0_45 = arith.constant 0 : index
      %65 = vector.load %arg11[%c0_44, %c0_45] : memref<1x24xf32, #tpu.memory_space<vmem>>, vector<1x24xf32>
      %66 = vector.broadcast %65 : vector<1x24xf32> to vector<12x24xf32>
      %67 = arith.addf %64, %66 : vector<12x24xf32>
      %c1_i32 = arith.constant 1 : i32
      %68 = arith.cmpi ne, %arg0, %c1_i32 : i32
      %69 = arith.extui %68 : i1 to i32
      %c0_i32_46 = arith.constant 0 : i32
      %70 = arith.cmpi ne, %69, %c0_i32_46 : i32
      scf.if %70 {
        %cst_49 = arith.constant 0.000000e+00 : f32
        %74 = vector.broadcast %cst_49 : f32 to vector<12x24xf32>
        %75 = arith.maximumf %67, %74 : vector<12x24xf32>
        %c0_50 = arith.constant 0 : index
        %c0_51 = arith.constant 0 : index
        %76 = vector.load %arg15[%c0_50, %c0_51] : memref<12x24xf32, #tpu.memory_space<vmem>>, vector<12x24xf32>
        tpu.vector_store %arg15[%c0_50, %c0_51], %75 {strides = array<i32>} : memref<12x24xf32, #tpu.memory_space<vmem>>, vector<12x24xf32>,
      } else {
      }
      %c1_i32_47 = arith.constant 1 : i32
      %71 = arith.cmpi eq, %arg0, %c1_i32_47 : i32
      %72 = arith.extui %71 : i1 to i32
      %c0_i32_48 = arith.constant 0 : i32
      %73 = arith.cmpi ne, %72, %c0_i32_48 : i32
      scf.if %73 {
        %c0_49 = arith.constant 0 : index
        %c0_50 = arith.constant 0 : index
        %74 = vector.load %arg14[%c0_49, %c0_50] : memref<12x24xf32, #tpu.memory_space<vmem>>, vector<12x24xf32>
        tpu.vector_store %arg14[%c0_49, %c0_50], %67 {strides = array<i32>} : memref<12x24xf32, #tpu.memory_space<vmem>>, vector<12x24xf32>,
      } else {
      }
    } else {
    }
    return
  }
  func.func @transform_0(%arg0: i32, %arg1: i32) -> (i32, i32) {
    %c0_i32 = arith.constant 0 : i32
    %c0_i32_0 = arith.constant 0 : i32
    %c0_i32_1 = arith.constant 0 : i32
    return %c0_i32, %c0_i32_0 : i32, i32
  }
  func.func @transform_1(%arg0: i32, %arg1: i32) -> (i32, i32) {
    %c0_i32 = arith.constant 0 : i32
    %c0_i32_0 = arith.constant 0 : i32
    return %arg1, %c0_i32 : i32, i32
  }
  func.func @transform_2(%arg0: i32, %arg1: i32) -> (i32, i32) {
    %c0_i32 = arith.constant 0 : i32
    %c0_i32_0 = arith.constant 0 : i32
    return %arg1, %c0_i32 : i32, i32
  }
  func.func @transform_3(%arg0: i32, %arg1: i32) -> (i32, i32) {
    %c0_i32 = arith.constant 0 : i32
    %c0_i32_0 = arith.constant 0 : i32
    return %c0_i32, %arg1 : i32, i32
  }
  func.func @transform_4(%arg0: i32, %arg1: i32) -> (i32, i32) {
    %c0_i32 = arith.constant 0 : i32
    %c0_i32_0 = arith.constant 0 : i32
    %c0_i32_1 = arith.constant 0 : i32
    return %c0_i32, %c0_i32_0 : i32, i32
  }
  func.func @transform_5(%arg0: i32, %arg1: i32) -> (i32, i32) {
    %c0_i32 = arith.constant 0 : i32
    %c0_i32_0 = arith.constant 0 : i32
    %c0_i32_1 = arith.constant 0 : i32
    return %c0_i32, %c0_i32_0 : i32, i32
  }
  func.func @transform_6(%arg0: i32, %arg1: i32) -> (i32, i32) {
    %c0_i32 = arith.constant 0 : i32
    %c0_i32_0 = arith.constant 0 : i32
    %c0_i32_1 = arith.constant 0 : i32
    return %c0_i32, %c0_i32_0 : i32, i32
  }
  func.func @transform_7(%arg0: i32, %arg1: i32) -> (i32, i32) {
    %c0_i32 = arith.constant 0 : i32
    %c0_i32_0 = arith.constant 0 : i32
    %c0_i32_1 = arith.constant 0 : i32
    return %c0_i32, %c0_i32_0 : i32, i32
  }
  func.func @transform_8(%arg0: i32, %arg1: i32) -> (i32, i32) {
    %c0_i32 = arith.constant 0 : i32
    %c0_i32_0 = arith.constant 0 : i32
    %c0_i32_1 = arith.constant 0 : i32
    return %c0_i32, %c0_i32_0 : i32, i32
  }
  func.func @transform_9(%arg0: i32, %arg1: i32) -> (i32, i32) {
    %c0_i32 = arith.constant 0 : i32
    %c0_i32_0 = arith.constant 0 : i32
    %c0_i32_1 = arith.constant 0 : i32
    return %c0_i32, %c0_i32_0 : i32, i32
  }
  func.func @transform_10(%arg0: i32, %arg1: i32) -> (i32, i32) {
    %c0_i32 = arith.constant 0 : i32
    %c0_i32_0 = arith.constant 0 : i32
    %c0_i32_1 = arith.constant 0 : i32
    return %c0_i32, %c0_i32_0 : i32, i32
  }
  func.func @transform_11(%arg0: i32, %arg1: i32) -> (i32, i32) {
    %c0_i32 = arith.constant 0 : i32
    %c0_i32_0 = arith.constant 0 : i32
    %c0_i32_1 = arith.constant 0 : i32
    return %c0_i32, %c0_i32_0 : i32, i32
  }
  func.func @transform_12(%arg0: i32, %arg1: i32) -> (i32, i32) {
    %c0_i32 = arith.constant 0 : i32
    %c0_i32_0 = arith.constant 0 : i32
    %c0_i32_1 = arith.constant 0 : i32
    return %c0_i32, %c0_i32_0 : i32, i32
  }
}

</mosaic_0001>

<llo_original>
// kernel: tile.9
$region0: #{tile.9}
  %s0 = inlined_call_operand.vmem [shape: f32[24,24,24], index: 0, kind: input, shape index: {}]
  %s1 = inlined_call_operand.vmem [shape: f32[576,24], index: 1, kind: output, shape index: {}]
  %s2 = smov 3
  %v3 = vld [vmem:[%s0] ss:$16 sm:%s2]
  %vm4 = vcmask 195584
  %5 = vst.msk [vmem:[%s1] ss:$24 sm:$0x3] %vm4, %v3
  %s6 = scalar_lea.vmem %s0, 24
  %s7 = smov 3
  %v8 = vld [vmem:[%s6] ss:$16 sm:%s7]
  %vm9 = vcmask 195584
  %s10 = scalar_lea.vmem %s1, 1
  %11 = vst.msk [vmem:[%s10] ss:$24 sm:$0x3] %vm9, %v8
  %s12 = scalar_lea.vmem %s0, 48
  %s13 = smov 3
  %v14 = vld [vmem:[%s12] ss:$16 sm:%s13]
  %vm15 = vcmask 195584
  %s16 = scalar_lea.vmem %s1, 2
  %17 = vst.msk [vmem:[%s16] ss:$24 sm:$0x3] %vm15, %v14
  %s18 = scalar_lea.vmem %s0, 72
  %s19 = smov 3
  %v20 = vld [vmem:[%s18] ss:$16 sm:%s19]
  %vm21 = vcmask 195584
  %s22 = scalar_lea.vmem %s1, 3
  %23 = vst.msk [vmem:[%s22] ss:$24 sm:$0x3] %vm21, %v20
  %s24 = scalar_lea.vmem %s0, 96
  %s25 = smov 3
  %v26 = vld [vmem:[%s24] ss:$16 sm:%s25]
  %vm27 = vcmask 195584
  %s28 = scalar_lea.vmem %s1, 4
  %29 = vst.msk [vmem:[%s28] ss:$24 sm:$0x3] %vm27, %v26
  %s30 = scalar_lea.vmem %s0, 120
  %s31 = smov 3
  %v32 = vld [vmem:[%s30] ss:$16 sm:%s31]
  %vm33 = vcmask 195584
  %s34 = scalar_lea.vmem %s1, 5
  %35 = vst.msk [vmem:[%s34] ss:$24 sm:$0x3] %vm33, %v32
  %s36 = scalar_lea.vmem %s0, 144
  %s37 = smov 3
  %v38 = vld [vmem:[%s36] ss:$16 sm:%s37]
  %vm39 = vcmask 195584
  %s40 = scalar_lea.vmem %s1, 6
  %41 = vst.msk [vmem:[%s40] ss:$24 sm:$0x3] %vm39, %v38
  %s42 = scalar_lea.vmem %s0, 168
  %s43 = smov 3
  %v44 = vld [vmem:[%s42] ss:$16 sm:%s43]
  %vm45 = vcmask 195584
  %s46 = scalar_lea.vmem %s1, 7
  %47 = vst.msk [vmem:[%s46] ss:$24 sm:$0x3] %vm45, %v44
  %s48 = scalar_lea.vmem %s0, 192
  %s49 = smov 3
  %v50 = vld [vmem:[%s48] ss:$16 sm:%s49]
  %vm51 = vcmask 195584
  %s52 = scalar_lea.vmem %s1, 40
  %53 = vst.msk [vmem:[%s52] ss:$24 sm:$0x3] %vm51, %v50
  %s54 = scalar_lea.vmem %s0, 216
  %s55 = smov 3
  %v56 = vld [vmem:[%s54] ss:$16 sm:%s55]
  %vm57 = vcmask 195584
  %s58 = scalar_lea.vmem %s1, 41
  %59 = vst.msk [vmem:[%s58] ss:$24 sm:$0x3] %vm57, %v56
  %s60 = scalar_lea.vmem %s0, 240
  %s61 = smov 3
  %v62 = vld [vmem:[%s60] ss:$16 sm:%s61]
  %vm63 = vcmask 195584
  %s64 = scalar_lea.vmem %s1, 42
  %65 = vst.msk [vmem:[%s64] ss:$24 sm:$0x3] %vm63, %v62
  %s66 = scalar_lea.vmem %s0, 264
  %s67 = smov 3
  %v68 = vld [vmem:[%s66] ss:$16 sm:%s67]
  %vm69 = vcmask 195584
  %s70 = scalar_lea.vmem %s1, 43
  %71 = vst.msk [vmem:[%s70] ss:$24 sm:$0x3] %vm69, %v68
  %s72 = scalar_lea.vmem %s0, 288
  %s73 = smov 3
  %v74 = vld [vmem:[%s72] ss:$16 sm:%s73]
  %vm75 = vcmask 195584
  %s76 = scalar_lea.vmem %s1, 44
  %77 = vst.msk [vmem:[%s76] ss:$24 sm:$0x3] %vm75, %v74
  %s78 = scalar_lea.vmem %s0, 312
  %s79 = smov 3
  %v80 = vld [vmem:[%s78] ss:$16 sm:%s79]
  %vm81 = vcmask 195584
  %s82 = scalar_lea.vmem %s1, 45
  %83 = vst.msk [vmem:[%s82] ss:$24 sm:$0x3] %vm81, %v80
  %s84 = scalar_lea.vmem %s0, 336
  %s85 = smov 3
  %v86 = vld [vmem:[%s84] ss:$16 sm:%s85]
  %vm87 = vcmask 195584
  %s88 = scalar_lea.vmem %s1, 46
  %89 = vst.msk [vmem:[%s88] ss:$24 sm:$0x3] %vm87, %v86
  %s90 = scalar_lea.vmem %s0, 360
  %s91 = smov 3
  %v92 = vld [vmem:[%s90] ss:$16 sm:%s91]
  %vm93 = vcmask 195584
  %s94 = scalar_lea.vmem %s1, 47
  %95 = vst.msk [vmem:[%s94] ss:$24 sm:$0x3] %vm93, %v92
  %s96 = scalar_lea.vmem %s0, 384
  %s97 = smov 3
  %v98 = vld [vmem:[%s96] ss:$16 sm:%s97]
  %vm99 = vcmask 195584
  %s100 = scalar_lea.vmem %s1, 80
  %101 = vst.msk [vmem:[%s100] ss:$24 sm:$0x3] %vm99, %v98
  %s102 = scalar_lea.vmem %s0, 408
  %s103 = smov 3
  %v104 = vld [vmem:[%s102] ss:$16 sm:%s103]
  %vm105 = vcmask 195584
  %s106 = scalar_lea.vmem %s1, 81
  %107 = vst.msk [vmem:[%s106] ss:$24 sm:$0x3] %vm105, %v104
  %s108 = scalar_lea.vmem %s0, 432
  %s109 = smov 3
  %v110 = vld [vmem:[%s108] ss:$16 sm:%s109]
  %vm111 = vcmask 195584
  %s112 = scalar_lea.vmem %s1, 82
  %113 = vst.msk [vmem:[%s112] ss:$24 sm:$0x3] %vm111, %v110
  %s114 = scalar_lea.vmem %s0, 456
  %s115 = smov 3
  %v116 = vld [vmem:[%s114] ss:$16 sm:%s115]
  %vm117 = vcmask 195584
  %s118 = scalar_lea.vmem %s1, 83
  %119 = vst.msk [vmem:[%s118] ss:$24 sm:$0x3] %vm117, %v116
  %s120 = scalar_lea.vmem %s0, 480
  %s121 = smov 3
  %v122 = vld [vmem:[%s120] ss:$16 sm:%s121]
  %vm123 = vcmask 195584
  %s124 = scalar_lea.vmem %s1, 84
  %125 = vst.msk [vmem:[%s124] ss:$24 sm:$0x3] %vm123, %v122
  %s126 = scalar_lea.vmem %s0, 504
  %s127 = smov 3
  %v128 = vld [vmem:[%s126] ss:$16 sm:%s127]
  %vm129 = vcmask 195584
  %s130 = scalar_lea.vmem %s1, 85
  %131 = vst.msk [vmem:[%s130] ss:$24 sm:$0x3] %vm129, %v128
  %s132 = scalar_lea.vmem %s0, 528
  %s133 = smov 3
  %v134 = vld [vmem:[%s132] ss:$16 sm:%s133]
  %vm135 = vcmask 195584
  %s136 = scalar_lea.vmem %s1, 86
  %137 = vst.msk [vmem:[%s136] ss:$24 sm:$0x3] %vm135, %v134
  %s138 = scalar_lea.vmem %s0, 552
  %s139 = smov 3
  %v140 = vld [vmem:[%s138] ss:$16 sm:%s139]
  %vm141 = vcmask 195584
  %s142 = scalar_lea.vmem %s1, 87
  %143 = vst.msk [vmem:[%s142] ss:$24 sm:$0x3] %vm141, %v140
  %s144 = scalar_lea.vmem %s0, 21
  %v145 = vld [vmem:[%s144] ss:$24 sm:$0xf]
  %s146 = scalar_lea.vmem %s0, 21
  %v147 = vld [vmem:[%s146] ss:$24 sm:$0xf0]
  %vm148 = vcmask 1047556
  %v149 = vsel %vm148, %v147, %v145
  %s150 = scalar_lea.vmem %s0, 5
  %v151 = vld [vmem:[%s150] ss:$24 sm:$0xf]
  %s152 = scalar_lea.vmem %s0, 5
  %v153 = vld [vmem:[%s152] ss:$24 sm:$0xf0]
  %vm154 = vcmask 1047556
  %v155 = vsel %vm154, %v153, %v151
  %vm156 = vcmask 64512
  %v157 = vsel %vm156, %v155, %v149
  %158 = vrot.lane.b32.xlu0 %v157, 120
  %v159 = vpop.permute.xlu0 %158
  %vm160 = vcmask 130048
  %s161 = scalar_lea.vmem %s1, 32
  %162 = vst.msk [vmem:[%s161] sm:$0xff] %vm160, %v159
  %vm163 = vcmask 1048512
  %164 = vst.msk [vmem:[%s1] sm:$0xff] %vm163, %v159
  %s165 = scalar_lea.vmem %s0, 5
  %v166 = vld [vmem:[%s165] ss:$24 sm:$0xf]
  %s167 = scalar_lea.vmem %s0, 5
  %v168 = vld [vmem:[%s167] ss:$24 sm:$0xf0]
  %vm169 = vcmask 1047556
  %v170 = vsel %vm169, %v168, %v166
  %s171 = scalar_lea.vmem %s0, 213
  %v172 = vld [vmem:[%s171] ss:$24 sm:$0xf]
  %s173 = scalar_lea.vmem %s0, 213
  %v174 = vld [vmem:[%s173] ss:$24 sm:$0xf0]
  %vm175 = vcmask 1047556
  %v176 = vsel %vm175, %v174, %v172
  %vm177 = vcmask 64512
  %v178 = vsel %vm177, %v176, %v170
  %179 = vrot.lane.b32.xlu0 %v178, 120
  %v180 = vpop.permute.xlu0 %179
  %vm181 = vcmask 130048
  %s182 = scalar_lea.vmem %s1, 8
  %183 = vst.msk [vmem:[%s182] sm:$0xff] %vm181, %v180
  %vm184 = vcmask 1048512
  %s185 = scalar_lea.vmem %s1, 64
  %186 = vst.msk [vmem:[%s185] sm:$0xff] %vm184, %v180
  %s187 = scalar_lea.vmem %s0, 213
  %v188 = vld [vmem:[%s187] ss:$24 sm:$0xf]
  %s189 = scalar_lea.vmem %s0, 213
  %v190 = vld [vmem:[%s189] ss:$24 sm:$0xf0]
  %vm191 = vcmask 1047556
  %v192 = vsel %vm191, %v190, %v188
  %s193 = scalar_lea.vmem %s0, 197
  %v194 = vld [vmem:[%s193] ss:$24 sm:$0xf]
  %s195 = scalar_lea.vmem %s0, 197
  %v196 = vld [vmem:[%s195] ss:$24 sm:$0xf0]
  %vm197 = vcmask 1047556
  %v198 = vsel %vm197, %v196, %v194
  %vm199 = vcmask 64512
  %v200 = vsel %vm199, %v198, %v192
  %201 = vrot.lane.b32.xlu0 %v200, 120
  %v202 = vpop.permute.xlu0 %201
  %vm203 = vcmask 130048
  %s204 = scalar_lea.vmem %s1, 72
  %205 = vst.msk [vmem:[%s204] sm:$0xff] %vm203, %v202
  %vm206 = vcmask 1048512
  %s207 = scalar_lea.vmem %s1, 40
  %208 = vst.msk [vmem:[%s207] sm:$0xff] %vm206, %v202
  %s209 = scalar_lea.vmem %s0, 197
  %v210 = vld [vmem:[%s209] ss:$24 sm:$0xf]
  %s211 = scalar_lea.vmem %s0, 197
  %v212 = vld [vmem:[%s211] ss:$24 sm:$0xf0]
  %vm213 = vcmask 1047556
  %v214 = vsel %vm213, %v212, %v210
  %s215 = scalar_lea.vmem %s0, 405
  %v216 = vld [vmem:[%s215] ss:$24 sm:$0xf]
  %s217 = scalar_lea.vmem %s0, 405
  %v218 = vld [vmem:[%s217] ss:$24 sm:$0xf0]
  %vm219 = vcmask 1047556
  %v220 = vsel %vm219, %v218, %v216
  %vm221 = vcmask 64512
  %v222 = vsel %vm221, %v220, %v214
  %223 = vrot.lane.b32.xlu0 %v222, 120
  %v224 = vpop.permute.xlu0 %223
  %vm225 = vcmask 130048
  %s226 = scalar_lea.vmem %s1, 48
  %227 = vst.msk [vmem:[%s226] sm:$0xff] %vm225, %v224
  %vm228 = vcmask 1048512
  %s229 = scalar_lea.vmem %s1, 104
  %230 = vst.msk [vmem:[%s229] sm:$0xff] %vm228, %v224
  %s231 = scalar_lea.vmem %s0, 405
  %v232 = vld [vmem:[%s231] ss:$24 sm:$0xf]
  %s233 = scalar_lea.vmem %s0, 405
  %v234 = vld [vmem:[%s233] ss:$24 sm:$0xf0]
  %vm235 = vcmask 1047556
  %v236 = vsel %vm235, %v234, %v232
  %s237 = scalar_lea.vmem %s0, 389
  %v238 = vld [vmem:[%s237] ss:$24 sm:$0xf]
  %s239 = scalar_lea.vmem %s0, 389
  %v240 = vld [vmem:[%s239] ss:$24 sm:$0xf0]
  %vm241 = vcmask 1047556
  %v242 = vsel %vm241, %v240, %v238
  %vm243 = vcmask 64512
  %v244 = vsel %vm243, %v242, %v236
  %245 = vrot.lane.b32.xlu0 %v244, 120
  %v246 = vpop.permute.xlu0 %245
  %vm247 = vcmask 130048
  %s248 = scalar_lea.vmem %s1, 112
  %249 = vst.msk [vmem:[%s248] sm:$0xff] %vm247, %v246
  %vm250 = vcmask 1048512
  %s251 = scalar_lea.vmem %s1, 80
  %252 = vst.msk [vmem:[%s251] sm:$0xff] %vm250, %v246
  %s253 = scalar_lea.vmem %s0, 389
  %v254 = vld [vmem:[%s253] ss:$24 sm:$0xf]
  %s255 = scalar_lea.vmem %s0, 389
  %v256 = vld [vmem:[%s255] ss:$24 sm:$0xf0]
  %vm257 = vcmask 1047556
  %v258 = vsel %vm257, %v256, %v254
  %s259 = scalar_lea.vmem %s0, 21
  %v260 = vld [vmem:[%s259] ss:$24 sm:$0xf]
  %s261 = scalar_lea.vmem %s0, 21
  %v262 = vld [vmem:[%s261] ss:$24 sm:$0xf0]
  %vm263 = vcmask 1047556
  %v264 = vsel %vm263, %v262, %v260
  %vm265 = vcmask 64512
  %v266 = vsel %vm265, %v264, %v258
  %267 = vrot.lane.b32.xlu0 %v266, 120
  %v268 = vpop.permute.xlu0 %267
  %vm269 = vcmask 130048
  %s270 = scalar_lea.vmem %s1, 88
  %271 = vst.msk [vmem:[%s270] sm:$0xff] %vm269, %v268
  %vm272 = vcmask 1048512
  %s273 = scalar_lea.vmem %s1, 24
  %274 = vst.msk [vmem:[%s273] sm:$0xff] %vm272, %v268
  %s275 = scalar_lea.vmem %s0, 394
  %v276 = vld [vmem:[%s275] ss:$24 sm:$0xf]
  %s277 = scalar_lea.vmem %s0, 394
  %v278 = vld [vmem:[%s277] ss:$24 sm:$0xf0]
  %vm279 = vcmask 1047556
  %v280 = vsel %vm279, %v278, %v276
  %s281 = scalar_lea.vmem %s0, 10
  %v282 = vld [vmem:[%s281] ss:$24 sm:$0xf]
  %s283 = scalar_lea.vmem %s0, 10
  %v284 = vld [vmem:[%s283] ss:$24 sm:$0xf0]
  %vm285 = vcmask 1047556
  %v286 = vsel %vm285, %v284, %v282
  %vm287 = vcmask 130048
  %v288 = vsel %vm287, %v286, %v280
  %289 = vrot.lane.b32.xlu0 %v288, 112
  %v290 = vpop.permute.xlu0 %289
  %vm291 = vcmask 64512
  %s292 = scalar_lea.vmem %s1, 96
  %293 = vst.msk [vmem:[%s292] sm:$0xff] %vm291, %v290
  %vm294 = vcmask 1048448
  %s295 = scalar_lea.vmem %s1, 8
  %296 = vst.msk [vmem:[%s295] sm:$0xff] %vm294, %v290
  %s297 = scalar_lea.vmem %s0, 10
  %v298 = vld [vmem:[%s297] ss:$24 sm:$0xf]
  %s299 = scalar_lea.vmem %s0, 10
  %v300 = vld [vmem:[%s299] ss:$24 sm:$0xf0]
  %vm301 = vcmask 1047556
  %v302 = vsel %vm301, %v300, %v298
  %s303 = scalar_lea.vmem %s0, 202
  %v304 = vld [vmem:[%s303] ss:$24 sm:$0xf]
  %s305 = scalar_lea.vmem %s0, 202
  %v306 = vld [vmem:[%s305] ss:$24 sm:$0xf0]
  %vm307 = vcmask 1047556
  %v308 = vsel %vm307, %v306, %v304
  %vm309 = vcmask 130048
  %v310 = vsel %vm309, %v308, %v302
  %311 = vrot.lane.b32.xlu0 %v310, 112
  %v312 = vpop.permute.xlu0 %311
  %vm313 = vcmask 64512
  %s314 = scalar_lea.vmem %s1, 16
  %315 = vst.msk [vmem:[%s314] sm:$0xff] %vm313, %v312
  %vm316 = vcmask 1048448
  %s317 = scalar_lea.vmem %s1, 48
  %318 = vst.msk [vmem:[%s317] sm:$0xff] %vm316, %v312
  %s319 = scalar_lea.vmem %s0, 202
  %v320 = vld [vmem:[%s319] ss:$24 sm:$0xf]
  %s321 = scalar_lea.vmem %s0, 202
  %v322 = vld [vmem:[%s321] ss:$24 sm:$0xf0]
  %vm323 = vcmask 1047556
  %v324 = vsel %vm323, %v322, %v320
  %s325 = scalar_lea.vmem %s0, 394
  %v326 = vld [vmem:[%s325] ss:$24 sm:$0xf]
  %s327 = scalar_lea.vmem %s0, 394
  %v328 = vld [vmem:[%s327] ss:$24 sm:$0xf0]
  %vm329 = vcmask 1047556
  %v330 = vsel %vm329, %v328, %v326
  %vm331 = vcmask 130048
  %v332 = vsel %vm331, %v330, %v324
  %333 = vrot.lane.b32.xlu0 %v332, 112
  %v334 = vpop.permute.xlu0 %333
  %vm335 = vcmask 64512
  %s336 = scalar_lea.vmem %s1, 56
  %337 = vst.msk [vmem:[%s336] sm:$0xff] %vm335, %v334
  %vm338 = vcmask 1048448
  %s339 = scalar_lea.vmem %s1, 88
  %340 = vst.msk [vmem:[%s339] sm:$0xff] %vm338, %v334
  %s341 = scalar_lea.vmem %s0, 399
  %v342 = vld [vmem:[%s341] ss:$24 sm:$0xf]
  %s343 = scalar_lea.vmem %s0, 399
  %v344 = vld [vmem:[%s343] ss:$24 sm:$0xf0]
  %vm345 = vcmask 1047556
  %v346 = vsel %vm345, %v344, %v342
  %347 = vrot.lane.b32.xlu0 %v346, 104
  %v348 = vpop.permute.xlu0 %347
  %vm349 = vcmask 1048384
  %s350 = scalar_lea.vmem %s1, 96
  %351 = vst.msk [vmem:[%s350] sm:$0xff] %vm349, %v348
  %s352 = scalar_lea.vmem %s0, 15
  %v353 = vld [vmem:[%s352] ss:$24 sm:$0xf]
  %s354 = scalar_lea.vmem %s0, 15
  %v355 = vld [vmem:[%s354] ss:$24 sm:$0xf0]
  %vm356 = vcmask 1047556
  %v357 = vsel %vm356, %v355, %v353
  %358 = vrot.lane.b32.xlu0 %v357, 104
  %v359 = vpop.permute.xlu0 %358
  %vm360 = vcmask 1048384
  %s361 = scalar_lea.vmem %s1, 16
  %362 = vst.msk [vmem:[%s361] sm:$0xff] %vm360, %v359
  %s363 = scalar_lea.vmem %s0, 207
  %v364 = vld [vmem:[%s363] ss:$24 sm:$0xf]
  %s365 = scalar_lea.vmem %s0, 207
  %v366 = vld [vmem:[%s365] ss:$24 sm:$0xf0]
  %vm367 = vcmask 1047556
  %v368 = vsel %vm367, %v366, %v364
  %369 = vrot.lane.b32.xlu0 %v368, 104
  %v370 = vpop.permute.xlu0 %369
  %vm371 = vcmask 1048384
  %s372 = scalar_lea.vmem %s1, 56
  %373 = vst.msk [vmem:[%s372] sm:$0xff] %vm371, %v370
  %s374 = scalar_lea.vmem %s0, 4
  %v375 = vld [vmem:[%s374] ss:$24 sm:$0xf]
  %s376 = scalar_lea.vmem %s0, 4
  %v377 = vld [vmem:[%s376] ss:$24 sm:$0xf0]
  %vm378 = vcmask 1047556
  %v379 = vsel %vm378, %v377, %v375
  %380 = vrot.lane.b32.xlu0 %v379, 96
  %v381 = vpop.permute.xlu0 %380
  %vm382 = vcmask 982784
  %383 = vst.msk [vmem:[%s1] sm:$0xff] %vm382, %v381
  %s384 = scalar_lea.vmem %s0, 212
  %v385 = vld [vmem:[%s384] ss:$24 sm:$0xf]
  %s386 = scalar_lea.vmem %s0, 212
  %v387 = vld [vmem:[%s386] ss:$24 sm:$0xf0]
  %vm388 = vcmask 1047556
  %v389 = vsel %vm388, %v387, %v385
  %390 = vrot.lane.b32.xlu0 %v389, 96
  %v391 = vpop.permute.xlu0 %390
  %vm392 = vcmask 982784
  %s393 = scalar_lea.vmem %s1, 64
  %394 = vst.msk [vmem:[%s393] sm:$0xff] %vm392, %v391
  %s395 = scalar_lea.vmem %s0, 196
  %v396 = vld [vmem:[%s395] ss:$24 sm:$0xf]
  %s397 = scalar_lea.vmem %s0, 196
  %v398 = vld [vmem:[%s397] ss:$24 sm:$0xf0]
  %vm399 = vcmask 1047556
  %v400 = vsel %vm399, %v398, %v396
  %401 = vrot.lane.b32.xlu0 %v400, 96
  %v402 = vpop.permute.xlu0 %401
  %vm403 = vcmask 982784
  %s404 = scalar_lea.vmem %s1, 40
  %405 = vst.msk [vmem:[%s404] sm:$0xff] %vm403, %v402
  %s406 = scalar_lea.vmem %s0, 404
  %v407 = vld [vmem:[%s406] ss:$24 sm:$0xf]
  %s408 = scalar_lea.vmem %s0, 404
  %v409 = vld [vmem:[%s408] ss:$24 sm:$0xf0]
  %vm410 = vcmask 1047556
  %v411 = vsel %vm410, %v409, %v407
  %412 = vrot.lane.b32.xlu0 %v411, 96
  %v413 = vpop.permute.xlu0 %412
  %vm414 = vcmask 982784
  %s415 = scalar_lea.vmem %s1, 104
  %416 = vst.msk [vmem:[%s415] sm:$0xff] %vm414, %v413
  %s417 = scalar_lea.vmem %s0, 388
  %v418 = vld [vmem:[%s417] ss:$24 sm:$0xf]
  %s419 = scalar_lea.vmem %s0, 388
  %v420 = vld [vmem:[%s419] ss:$24 sm:$0xf0]
  %vm421 = vcmask 1047556
  %v422 = vsel %vm421, %v420, %v418
  %423 = vrot.lane.b32.xlu0 %v422, 96
  %v424 = vpop.permute.xlu0 %423
  %vm425 = vcmask 982784
  %s426 = scalar_lea.vmem %s1, 80
  %427 = vst.msk [vmem:[%s426] sm:$0xff] %vm425, %v424
  %s428 = scalar_lea.vmem %s0, 20
  %v429 = vld [vmem:[%s428] ss:$24 sm:$0xf]
  %s430 = scalar_lea.vmem %s0, 20
  %v431 = vld [vmem:[%s430] ss:$24 sm:$0xf0]
  %vm432 = vcmask 1047556
  %v433 = vsel %vm432, %v431, %v429
  %434 = vrot.lane.b32.xlu0 %v433, 96
  %v435 = vpop.permute.xlu0 %434
  %vm436 = vcmask 982784
  %s437 = scalar_lea.vmem %s1, 24
  %438 = vst.msk [vmem:[%s437] sm:$0xff] %vm436, %v435
  %s439 = scalar_lea.vmem %s0, 9
  %v440 = vld [vmem:[%s439] ss:$24 sm:$0xf]
  %s441 = scalar_lea.vmem %s0, 9
  %v442 = vld [vmem:[%s441] ss:$24 sm:$0xf0]
  %vm443 = vcmask 1047556
  %v444 = vsel %vm443, %v442, %v440
  %445 = vrot.lane.b32.xlu0 %v444, 88
  %v446 = vpop.permute.xlu0 %445
  %vm447 = vcmask 917184
  %s448 = scalar_lea.vmem %s1, 8
  %449 = vst.msk [vmem:[%s448] sm:$0xff] %vm447, %v446
  %s450 = scalar_lea.vmem %s0, 201
  %v451 = vld [vmem:[%s450] ss:$24 sm:$0xf]
  %s452 = scalar_lea.vmem %s0, 201
  %v453 = vld [vmem:[%s452] ss:$24 sm:$0xf0]
  %vm454 = vcmask 1047556
  %v455 = vsel %vm454, %v453, %v451
  %456 = vrot.lane.b32.xlu0 %v455, 88
  %v457 = vpop.permute.xlu0 %456
  %vm458 = vcmask 917184
  %s459 = scalar_lea.vmem %s1, 48
  %460 = vst.msk [vmem:[%s459] sm:$0xff] %vm458, %v457
  %s461 = scalar_lea.vmem %s0, 393
  %v462 = vld [vmem:[%s461] ss:$24 sm:$0xf]
  %s463 = scalar_lea.vmem %s0, 393
  %v464 = vld [vmem:[%s463] ss:$24 sm:$0xf0]
  %vm465 = vcmask 1047556
  %v466 = vsel %vm465, %v464, %v462
  %467 = vrot.lane.b32.xlu0 %v466, 88
  %v468 = vpop.permute.xlu0 %467
  %vm469 = vcmask 917184
  %s470 = scalar_lea.vmem %s1, 88
  %471 = vst.msk [vmem:[%s470] sm:$0xff] %vm469, %v468
  %s472 = scalar_lea.vmem %s0, 398
  %v473 = vld [vmem:[%s472] ss:$24 sm:$0xf]
  %s474 = scalar_lea.vmem %s0, 398
  %v475 = vld [vmem:[%s474] ss:$24 sm:$0xf0]
  %vm476 = vcmask 1047556
  %v477 = vsel %vm476, %v475, %v473
  %478 = vrot.lane.b32.xlu0 %v477, 80
  %v479 = vpop.permute.xlu0 %478
  %vm480 = vcmask 851584
  %s481 = scalar_lea.vmem %s1, 96
  %482 = vst.msk [vmem:[%s481] sm:$0xff] %vm480, %v479
  %s483 = scalar_lea.vmem %s0, 14
  %v484 = vld [vmem:[%s483] ss:$24 sm:$0xf]
  %s485 = scalar_lea.vmem %s0, 14
  %v486 = vld [vmem:[%s485] ss:$24 sm:$0xf0]
  %vm487 = vcmask 1047556
  %v488 = vsel %vm487, %v486, %v484
  %489 = vrot.lane.b32.xlu0 %v488, 80
  %v490 = vpop.permute.xlu0 %489
  %vm491 = vcmask 851584
  %s492 = scalar_lea.vmem %s1, 16
  %493 = vst.msk [vmem:[%s492] sm:$0xff] %vm491, %v490
  %s494 = scalar_lea.vmem %s0, 206
  %v495 = vld [vmem:[%s494] ss:$24 sm:$0xf]
  %s496 = scalar_lea.vmem %s0, 206
  %v497 = vld [vmem:[%s496] ss:$24 sm:$0xf0]
  %vm498 = vcmask 1047556
  %v499 = vsel %vm498, %v497, %v495
  %500 = vrot.lane.b32.xlu0 %v499, 80
  %v501 = vpop.permute.xlu0 %500
  %vm502 = vcmask 851584
  %s503 = scalar_lea.vmem %s1, 56
  %504 = vst.msk [vmem:[%s503] sm:$0xff] %vm502, %v501
  %s505 = scalar_lea.vmem %s0, 3
  %v506 = vld [vmem:[%s505] ss:$24 sm:$0xf]
  %s507 = scalar_lea.vmem %s0, 3
  %v508 = vld [vmem:[%s507] ss:$24 sm:$0xf0]
  %vm509 = vcmask 1047556
  %v510 = vsel %vm509, %v508, %v506
  %511 = vrot.lane.b32.xlu0 %v510, 72
  %v512 = vpop.permute.xlu0 %511
  %vm513 = vcmask 785984
  %514 = vst.msk [vmem:[%s1] sm:$0xff] %vm513, %v512
  %s515 = scalar_lea.vmem %s0, 211
  %v516 = vld [vmem:[%s515] ss:$24 sm:$0xf]
  %s517 = scalar_lea.vmem %s0, 211
  %v518 = vld [vmem:[%s517] ss:$24 sm:$0xf0]
  %vm519 = vcmask 1047556
  %v520 = vsel %vm519, %v518, %v516
  %521 = vrot.lane.b32.xlu0 %v520, 72
  %v522 = vpop.permute.xlu0 %521
  %vm523 = vcmask 785984
  %s524 = scalar_lea.vmem %s1, 64
  %525 = vst.msk [vmem:[%s524] sm:$0xff] %vm523, %v522
  %s526 = scalar_lea.vmem %s0, 195
  %v527 = vld [vmem:[%s526] ss:$24 sm:$0xf]
  %s528 = scalar_lea.vmem %s0, 195
  %v529 = vld [vmem:[%s528] ss:$24 sm:$0xf0]
  %vm530 = vcmask 1047556
  %v531 = vsel %vm530, %v529, %v527
  %532 = vrot.lane.b32.xlu0 %v531, 72
  %v533 = vpop.permute.xlu0 %532
  %vm534 = vcmask 785984
  %s535 = scalar_lea.vmem %s1, 40
  %536 = vst.msk [vmem:[%s535] sm:$0xff] %vm534, %v533
  %s537 = scalar_lea.vmem %s0, 403
  %v538 = vld [vmem:[%s537] ss:$24 sm:$0xf]
  %s539 = scalar_lea.vmem %s0, 403
  %v540 = vld [vmem:[%s539] ss:$24 sm:$0xf0]
  %vm541 = vcmask 1047556
  %v542 = vsel %vm541, %v540, %v538
  %543 = vrot.lane.b32.xlu0 %v542, 72
  %v544 = vpop.permute.xlu0 %543
  %vm545 = vcmask 785984
  %s546 = scalar_lea.vmem %s1, 104
  %547 = vst.msk [vmem:[%s546] sm:$0xff] %vm545, %v544
  %s548 = scalar_lea.vmem %s0, 387
  %v549 = vld [vmem:[%s548] ss:$24 sm:$0xf]
  %s550 = scalar_lea.vmem %s0, 387
  %v551 = vld [vmem:[%s550] ss:$24 sm:$0xf0]
  %vm552 = vcmask 1047556
  %v553 = vsel %vm552, %v551, %v549
  %554 = vrot.lane.b32.xlu0 %v553, 72
  %v555 = vpop.permute.xlu0 %554
  %vm556 = vcmask 785984
  %s557 = scalar_lea.vmem %s1, 80
  %558 = vst.msk [vmem:[%s557] sm:$0xff] %vm556, %v555
  %s559 = scalar_lea.vmem %s0, 19
  %v560 = vld [vmem:[%s559] ss:$24 sm:$0xf]
  %s561 = scalar_lea.vmem %s0, 19
  %v562 = vld [vmem:[%s561] ss:$24 sm:$0xf0]
  %vm563 = vcmask 1047556
  %v564 = vsel %vm563, %v562, %v560
  %565 = vrot.lane.b32.xlu0 %v564, 72
  %v566 = vpop.permute.xlu0 %565
  %vm567 = vcmask 785984
  %s568 = scalar_lea.vmem %s1, 24
  %569 = vst.msk [vmem:[%s568] sm:$0xff] %vm567, %v566
  %s570 = scalar_lea.vmem %s0, 8
  %v571 = vld [vmem:[%s570] ss:$24 sm:$0xf]
  %s572 = scalar_lea.vmem %s0, 8
  %v573 = vld [vmem:[%s572] ss:$24 sm:$0xf0]
  %vm574 = vcmask 1047556
  %v575 = vsel %vm574, %v573, %v571
  %576 = vrot.lane.b32.xlu0 %v575, 64
  %v577 = vpop.permute.xlu0 %576
  %vm578 = vcmask 720384
  %s579 = scalar_lea.vmem %s1, 8
  %580 = vst.msk [vmem:[%s579] sm:$0xff] %vm578, %v577
  %s581 = scalar_lea.vmem %s0, 200
  %v582 = vld [vmem:[%s581] ss:$24 sm:$0xf]
  %s583 = scalar_lea.vmem %s0, 200
  %v584 = vld [vmem:[%s583] ss:$24 sm:$0xf0]
  %vm585 = vcmask 1047556
  %v586 = vsel %vm585, %v584, %v582
  %587 = vrot.lane.b32.xlu0 %v586, 64
  %v588 = vpop.permute.xlu0 %587
  %vm589 = vcmask 720384
  %s590 = scalar_lea.vmem %s1, 48
  %591 = vst.msk [vmem:[%s590] sm:$0xff] %vm589, %v588
  %s592 = scalar_lea.vmem %s0, 392
  %v593 = vld [vmem:[%s592] ss:$24 sm:$0xf]
  %s594 = scalar_lea.vmem %s0, 392
  %v595 = vld [vmem:[%s594] ss:$24 sm:$0xf0]
  %vm596 = vcmask 1047556
  %v597 = vsel %vm596, %v595, %v593
  %598 = vrot.lane.b32.xlu0 %v597, 64
  %v599 = vpop.permute.xlu0 %598
  %vm600 = vcmask 720384
  %s601 = scalar_lea.vmem %s1, 88
  %602 = vst.msk [vmem:[%s601] sm:$0xff] %vm600, %v599
  %s603 = scalar_lea.vmem %s0, 397
  %v604 = vld [vmem:[%s603] ss:$24 sm:$0xf]
  %s605 = scalar_lea.vmem %s0, 397
  %v606 = vld [vmem:[%s605] ss:$24 sm:$0xf0]
  %vm607 = vcmask 1047556
  %v608 = vsel %vm607, %v606, %v604
  %609 = vrot.lane.b32.xlu0 %v608, 56
  %v610 = vpop.permute.xlu0 %609
  %vm611 = vcmask 654784
  %s612 = scalar_lea.vmem %s1, 96
  %613 = vst.msk [vmem:[%s612] sm:$0xff] %vm611, %v610
  %s614 = scalar_lea.vmem %s0, 13
  %v615 = vld [vmem:[%s614] ss:$24 sm:$0xf]
  %s616 = scalar_lea.vmem %s0, 13
  %v617 = vld [vmem:[%s616] ss:$24 sm:$0xf0]
  %vm618 = vcmask 1047556
  %v619 = vsel %vm618, %v617, %v615
  %620 = vrot.lane.b32.xlu0 %v619, 56
  %v621 = vpop.permute.xlu0 %620
  %vm622 = vcmask 654784
  %s623 = scalar_lea.vmem %s1, 16
  %624 = vst.msk [vmem:[%s623] sm:$0xff] %vm622, %v621
  %s625 = scalar_lea.vmem %s0, 205
  %v626 = vld [vmem:[%s625] ss:$24 sm:$0xf]
  %s627 = scalar_lea.vmem %s0, 205
  %v628 = vld [vmem:[%s627] ss:$24 sm:$0xf0]
  %vm629 = vcmask 1047556
  %v630 = vsel %vm629, %v628, %v626
  %631 = vrot.lane.b32.xlu0 %v630, 56
  %v632 = vpop.permute.xlu0 %631
  %vm633 = vcmask 654784
  %s634 = scalar_lea.vmem %s1, 56
  %635 = vst.msk [vmem:[%s634] sm:$0xff] %vm633, %v632
  %s636 = scalar_lea.vmem %s0, 2
  %v637 = vld [vmem:[%s636] ss:$24 sm:$0xf]
  %s638 = scalar_lea.vmem %s0, 2
  %v639 = vld [vmem:[%s638] ss:$24 sm:$0xf0]
  %vm640 = vcmask 1047556
  %v641 = vsel %vm640, %v639, %v637
  %642 = vrot.lane.b32.xlu0 %v641, 48
  %v643 = vpop.permute.xlu0 %642
  %vm644 = vcmask 589184
  %645 = vst.msk [vmem:[%s1] sm:$0xff] %vm644, %v643
  %s646 = scalar_lea.vmem %s0, 210
  %v647 = vld [vmem:[%s646] ss:$24 sm:$0xf]
  %s648 = scalar_lea.vmem %s0, 210
  %v649 = vld [vmem:[%s648] ss:$24 sm:$0xf0]
  %vm650 = vcmask 1047556
  %v651 = vsel %vm650, %v649, %v647
  %652 = vrot.lane.b32.xlu0 %v651, 48
  %v653 = vpop.permute.xlu0 %652
  %vm654 = vcmask 589184
  %s655 = scalar_lea.vmem %s1, 64
  %656 = vst.msk [vmem:[%s655] sm:$0xff] %vm654, %v653
  %s657 = scalar_lea.vmem %s0, 194
  %v658 = vld [vmem:[%s657] ss:$24 sm:$0xf]
  %s659 = scalar_lea.vmem %s0, 194
  %v660 = vld [vmem:[%s659] ss:$24 sm:$0xf0]
  %vm661 = vcmask 1047556
  %v662 = vsel %vm661, %v660, %v658
  %663 = vrot.lane.b32.xlu0 %v662, 48
  %v664 = vpop.permute.xlu0 %663
  %vm665 = vcmask 589184
  %s666 = scalar_lea.vmem %s1, 40
  %667 = vst.msk [vmem:[%s666] sm:$0xff] %vm665, %v664
  %s668 = scalar_lea.vmem %s0, 402
  %v669 = vld [vmem:[%s668] ss:$24 sm:$0xf]
  %s670 = scalar_lea.vmem %s0, 402
  %v671 = vld [vmem:[%s670] ss:$24 sm:$0xf0]
  %vm672 = vcmask 1047556
  %v673 = vsel %vm672, %v671, %v669
  %674 = vrot.lane.b32.xlu0 %v673, 48
  %v675 = vpop.permute.xlu0 %674
  %vm676 = vcmask 589184
  %s677 = scalar_lea.vmem %s1, 104
  %678 = vst.msk [vmem:[%s677] sm:$0xff] %vm676, %v675
  %s679 = scalar_lea.vmem %s0, 386
  %v680 = vld [vmem:[%s679] ss:$24 sm:$0xf]
  %s681 = scalar_lea.vmem %s0, 386
  %v682 = vld [vmem:[%s681] ss:$24 sm:$0xf0]
  %vm683 = vcmask 1047556
  %v684 = vsel %vm683, %v682, %v680
  %685 = vrot.lane.b32.xlu0 %v684, 48
  %v686 = vpop.permute.xlu0 %685
  %vm687 = vcmask 589184
  %s688 = scalar_lea.vmem %s1, 80
  %689 = vst.msk [vmem:[%s688] sm:$0xff] %vm687, %v686
  %s690 = scalar_lea.vmem %s0, 18
  %v691 = vld [vmem:[%s690] ss:$24 sm:$0xf]
  %s692 = scalar_lea.vmem %s0, 18
  %v693 = vld [vmem:[%s692] ss:$24 sm:$0xf0]
  %vm694 = vcmask 1047556
  %v695 = vsel %vm694, %v693, %v691
  %696 = vrot.lane.b32.xlu0 %v695, 48
  %v697 = vpop.permute.xlu0 %696
  %vm698 = vcmask 589184
  %s699 = scalar_lea.vmem %s1, 24
  %700 = vst.msk [vmem:[%s699] sm:$0xff] %vm698, %v697
  %s701 = scalar_lea.vmem %s0, 23
  %v702 = vld [vmem:[%s701] ss:$24 sm:$0xf]
  %s703 = scalar_lea.vmem %s0, 23
  %v704 = vld [vmem:[%s703] ss:$24 sm:$0xf0]
  %vm705 = vcmask 1047556
  %v706 = vsel %vm705, %v704, %v702
  %707 = vrot.lane.b32.xlu0 %v706, 40
  %v708 = vpop.permute.xlu0 %707
  %vm709 = vcmask 523584
  %s710 = scalar_lea.vmem %s1, 32
  %711 = vst.msk [vmem:[%s710] sm:$0xff] %vm709, %v708
  %s712 = scalar_lea.vmem %s0, 7
  %v713 = vld [vmem:[%s712] ss:$24 sm:$0xf]
  %s714 = scalar_lea.vmem %s0, 7
  %v715 = vld [vmem:[%s714] ss:$24 sm:$0xf0]
  %vm716 = vcmask 1047556
  %v717 = vsel %vm716, %v715, %v713
  %718 = vrot.lane.b32.xlu0 %v717, 40
  %v719 = vpop.permute.xlu0 %718
  %vm720 = vcmask 523584
  %s721 = scalar_lea.vmem %s1, 8
  %722 = vst.msk [vmem:[%s721] sm:$0xff] %vm720, %v719
  %s723 = scalar_lea.vmem %s0, 215
  %v724 = vld [vmem:[%s723] ss:$24 sm:$0xf]
  %s725 = scalar_lea.vmem %s0, 215
  %v726 = vld [vmem:[%s725] ss:$24 sm:$0xf0]
  %vm727 = vcmask 1047556
  %v728 = vsel %vm727, %v726, %v724
  %729 = vrot.lane.b32.xlu0 %v728, 40
  %v730 = vpop.permute.xlu0 %729
  %vm731 = vcmask 523584
  %s732 = scalar_lea.vmem %s1, 72
  %733 = vst.msk [vmem:[%s732] sm:$0xff] %vm731, %v730
  %s734 = scalar_lea.vmem %s0, 199
  %v735 = vld [vmem:[%s734] ss:$24 sm:$0xf]
  %s736 = scalar_lea.vmem %s0, 199
  %v737 = vld [vmem:[%s736] ss:$24 sm:$0xf0]
  %vm738 = vcmask 1047556
  %v739 = vsel %vm738, %v737, %v735
  %740 = vrot.lane.b32.xlu0 %v739, 40
  %v741 = vpop.permute.xlu0 %740
  %vm742 = vcmask 523584
  %s743 = scalar_lea.vmem %s1, 48
  %744 = vst.msk [vmem:[%s743] sm:$0xff] %vm742, %v741
  %s745 = scalar_lea.vmem %s0, 407
  %v746 = vld [vmem:[%s745] ss:$24 sm:$0xf]
  %s747 = scalar_lea.vmem %s0, 407
  %v748 = vld [vmem:[%s747] ss:$24 sm:$0xf0]
  %vm749 = vcmask 1047556
  %v750 = vsel %vm749, %v748, %v746
  %751 = vrot.lane.b32.xlu0 %v750, 40
  %v752 = vpop.permute.xlu0 %751
  %vm753 = vcmask 523584
  %s754 = scalar_lea.vmem %s1, 112
  %755 = vst.msk [vmem:[%s754] sm:$0xff] %vm753, %v752
  %s756 = scalar_lea.vmem %s0, 391
  %v757 = vld [vmem:[%s756] ss:$24 sm:$0xf]
  %s758 = scalar_lea.vmem %s0, 391
  %v759 = vld [vmem:[%s758] ss:$24 sm:$0xf0]
  %vm760 = vcmask 1047556
  %v761 = vsel %vm760, %v759, %v757
  %762 = vrot.lane.b32.xlu0 %v761, 40
  %v763 = vpop.permute.xlu0 %762
  %vm764 = vcmask 523584
  %s765 = scalar_lea.vmem %s1, 88
  %766 = vst.msk [vmem:[%s765] sm:$0xff] %vm764, %v763
  %s767 = scalar_lea.vmem %s0, 396
  %v768 = vld [vmem:[%s767] ss:$24 sm:$0xf]
  %s769 = scalar_lea.vmem %s0, 396
  %v770 = vld [vmem:[%s769] ss:$24 sm:$0xf0]
  %vm771 = vcmask 1047556
  %v772 = vsel %vm771, %v770, %v768
  %773 = vrot.lane.b32.xlu0 %v772, 32
  %v774 = vpop.permute.xlu0 %773
  %vm775 = vcmask 457984
  %s776 = scalar_lea.vmem %s1, 96
  %777 = vst.msk [vmem:[%s776] sm:$0xff] %vm775, %v774
  %s778 = scalar_lea.vmem %s0, 12
  %v779 = vld [vmem:[%s778] ss:$24 sm:$0xf]
  %s780 = scalar_lea.vmem %s0, 12
  %v781 = vld [vmem:[%s780] ss:$24 sm:$0xf0]
  %vm782 = vcmask 1047556
  %v783 = vsel %vm782, %v781, %v779
  %784 = vrot.lane.b32.xlu0 %v783, 32
  %v785 = vpop.permute.xlu0 %784
  %vm786 = vcmask 457984
  %s787 = scalar_lea.vmem %s1, 16
  %788 = vst.msk [vmem:[%s787] sm:$0xff] %vm786, %v785
  %s789 = scalar_lea.vmem %s0, 204
  %v790 = vld [vmem:[%s789] ss:$24 sm:$0xf]
  %s791 = scalar_lea.vmem %s0, 204
  %v792 = vld [vmem:[%s791] ss:$24 sm:$0xf0]
  %vm793 = vcmask 1047556
  %v794 = vsel %vm793, %v792, %v790
  %795 = vrot.lane.b32.xlu0 %v794, 32
  %v796 = vpop.permute.xlu0 %795
  %vm797 = vcmask 457984
  %s798 = scalar_lea.vmem %s1, 56
  %799 = vst.msk [vmem:[%s798] sm:$0xff] %vm797, %v796
  %s800 = scalar_lea.vmem %s0, 1
  %v801 = vld [vmem:[%s800] ss:$24 sm:$0xf]
  %s802 = scalar_lea.vmem %s0, 1
  %v803 = vld [vmem:[%s802] ss:$24 sm:$0xf0]
  %vm804 = vcmask 1047556
  %v805 = vsel %vm804, %v803, %v801
  %806 = vrot.lane.b32.xlu0 %v805, 24
  %v807 = vpop.permute.xlu0 %806
  %vm808 = vcmask 392384
  %809 = vst.msk [vmem:[%s1] sm:$0xff] %vm808, %v807
  %s810 = scalar_lea.vmem %s0, 209
  %v811 = vld [vmem:[%s810] ss:$24 sm:$0xf]
  %s812 = scalar_lea.vmem %s0, 209
  %v813 = vld [vmem:[%s812] ss:$24 sm:$0xf0]
  %vm814 = vcmask 1047556
  %v815 = vsel %vm814, %v813, %v811
  %816 = vrot.lane.b32.xlu0 %v815, 24
  %v817 = vpop.permute.xlu0 %816
  %vm818 = vcmask 392384
  %s819 = scalar_lea.vmem %s1, 64
  %820 = vst.msk [vmem:[%s819] sm:$0xff] %vm818, %v817
  %s821 = scalar_lea.vmem %s0, 193
  %v822 = vld [vmem:[%s821] ss:$24 sm:$0xf]
  %s823 = scalar_lea.vmem %s0, 193
  %v824 = vld [vmem:[%s823] ss:$24 sm:$0xf0]
  %vm825 = vcmask 1047556
  %v826 = vsel %vm825, %v824, %v822
  %827 = vrot.lane.b32.xlu0 %v826, 24
  %v828 = vpop.permute.xlu0 %827
  %vm829 = vcmask 392384
  %s830 = scalar_lea.vmem %s1, 40
  %831 = vst.msk [vmem:[%s830] sm:$0xff] %vm829, %v828
  %s832 = scalar_lea.vmem %s0, 401
  %v833 = vld [vmem:[%s832] ss:$24 sm:$0xf]
  %s834 = scalar_lea.vmem %s0, 401
  %v835 = vld [vmem:[%s834] ss:$24 sm:$0xf0]
  %vm836 = vcmask 1047556
  %v837 = vsel %vm836, %v835, %v833
  %838 = vrot.lane.b32.xlu0 %v837, 24
  %v839 = vpop.permute.xlu0 %838
  %vm840 = vcmask 392384
  %s841 = scalar_lea.vmem %s1, 104
  %842 = vst.msk [vmem:[%s841] sm:$0xff] %vm840, %v839
  %s843 = scalar_lea.vmem %s0, 385
  %v844 = vld [vmem:[%s843] ss:$24 sm:$0xf]
  %s845 = scalar_lea.vmem %s0, 385
  %v846 = vld [vmem:[%s845] ss:$24 sm:$0xf0]
  %vm847 = vcmask 1047556
  %v848 = vsel %vm847, %v846, %v844
  %849 = vrot.lane.b32.xlu0 %v848, 24
  %v850 = vpop.permute.xlu0 %849
  %vm851 = vcmask 392384
  %s852 = scalar_lea.vmem %s1, 80
  %853 = vst.msk [vmem:[%s852] sm:$0xff] %vm851, %v850
  %s854 = scalar_lea.vmem %s0, 17
  %v855 = vld [vmem:[%s854] ss:$24 sm:$0xf]
  %s856 = scalar_lea.vmem %s0, 17
  %v857 = vld [vmem:[%s856] ss:$24 sm:$0xf0]
  %vm858 = vcmask 1047556
  %v859 = vsel %vm858, %v857, %v855
  %860 = vrot.lane.b32.xlu0 %v859, 24
  %v861 = vpop.permute.xlu0 %860
  %vm862 = vcmask 392384
  %s863 = scalar_lea.vmem %s1, 24
  %864 = vst.msk [vmem:[%s863] sm:$0xff] %vm862, %v861
  %s865 = scalar_lea.vmem %s0, 22
  %v866 = vld [vmem:[%s865] ss:$24 sm:$0xf]
  %s867 = scalar_lea.vmem %s0, 22
  %v868 = vld [vmem:[%s867] ss:$24 sm:$0xf0]
  %vm869 = vcmask 1047556
  %v870 = vsel %vm869, %v868, %v866
  %871 = vrot.lane.b32.xlu0 %v870, 16
  %v872 = vpop.permute.xlu0 %871
  %vm873 = vcmask 326784
  %s874 = scalar_lea.vmem %s1, 32
  %875 = vst.msk [vmem:[%s874] sm:$0xff] %vm873, %v872
  %s876 = scalar_lea.vmem %s0, 6
  %v877 = vld [vmem:[%s876] ss:$24 sm:$0xf]
  %s878 = scalar_lea.vmem %s0, 6
  %v879 = vld [vmem:[%s878] ss:$24 sm:$0xf0]
  %vm880 = vcmask 1047556
  %v881 = vsel %vm880, %v879, %v877
  %882 = vrot.lane.b32.xlu0 %v881, 16
  %v883 = vpop.permute.xlu0 %882
  %vm884 = vcmask 326784
  %s885 = scalar_lea.vmem %s1, 8
  %886 = vst.msk [vmem:[%s885] sm:$0xff] %vm884, %v883
  %s887 = scalar_lea.vmem %s0, 214
  %v888 = vld [vmem:[%s887] ss:$24 sm:$0xf]
  %s889 = scalar_lea.vmem %s0, 214
  %v890 = vld [vmem:[%s889] ss:$24 sm:$0xf0]
  %vm891 = vcmask 1047556
  %v892 = vsel %vm891, %v890, %v888
  %893 = vrot.lane.b32.xlu0 %v892, 16
  %v894 = vpop.permute.xlu0 %893
  %vm895 = vcmask 326784
  %s896 = scalar_lea.vmem %s1, 72
  %897 = vst.msk [vmem:[%s896] sm:$0xff] %vm895, %v894
  %s898 = scalar_lea.vmem %s0, 198
  %v899 = vld [vmem:[%s898] ss:$24 sm:$0xf]
  %s900 = scalar_lea.vmem %s0, 198
  %v901 = vld [vmem:[%s900] ss:$24 sm:$0xf0]
  %vm902 = vcmask 1047556
  %v903 = vsel %vm902, %v901, %v899
  %904 = vrot.lane.b32.xlu0 %v903, 16
  %v905 = vpop.permute.xlu0 %904
  %vm906 = vcmask 326784
  %s907 = scalar_lea.vmem %s1, 48
  %908 = vst.msk [vmem:[%s907] sm:$0xff] %vm906, %v905
  %s909 = scalar_lea.vmem %s0, 406
  %v910 = vld [vmem:[%s909] ss:$24 sm:$0xf]
  %s911 = scalar_lea.vmem %s0, 406
  %v912 = vld [vmem:[%s911] ss:$24 sm:$0xf0]
  %vm913 = vcmask 1047556
  %v914 = vsel %vm913, %v912, %v910
  %915 = vrot.lane.b32.xlu0 %v914, 16
  %v916 = vpop.permute.xlu0 %915
  %vm917 = vcmask 326784
  %s918 = scalar_lea.vmem %s1, 112
  %919 = vst.msk [vmem:[%s918] sm:$0xff] %vm917, %v916
  %s920 = scalar_lea.vmem %s0, 390
  %v921 = vld [vmem:[%s920] ss:$24 sm:$0xf]
  %s922 = scalar_lea.vmem %s0, 390
  %v923 = vld [vmem:[%s922] ss:$24 sm:$0xf0]
  %vm924 = vcmask 1047556
  %v925 = vsel %vm924, %v923, %v921
  %926 = vrot.lane.b32.xlu0 %v925, 16
  %v927 = vpop.permute.xlu0 %926
  %vm928 = vcmask 326784
  %s929 = scalar_lea.vmem %s1, 88
  %930 = vst.msk [vmem:[%s929] sm:$0xff] %vm928, %v927
  %s931 = scalar_lea.vmem %s0, 395
  %v932 = vld [vmem:[%s931] ss:$24 sm:$0xf]
  %s933 = scalar_lea.vmem %s0, 395
  %v934 = vld [vmem:[%s933] ss:$24 sm:$0xf0]
  %vm935 = vcmask 1047556
  %v936 = vsel %vm935, %v934, %v932
  %937 = vrot.lane.b32.xlu0 %v936, 8
  %v938 = vpop.permute.xlu0 %937
  %vm939 = vcmask 261184
  %s940 = scalar_lea.vmem %s1, 96
  %941 = vst.msk [vmem:[%s940] sm:$0xff] %vm939, %v938
  %s942 = scalar_lea.vmem %s0, 11
  %v943 = vld [vmem:[%s942] ss:$24 sm:$0xf]
  %s944 = scalar_lea.vmem %s0, 11
  %v945 = vld [vmem:[%s944] ss:$24 sm:$0xf0]
  %vm946 = vcmask 1047556
  %v947 = vsel %vm946, %v945, %v943
  %948 = vrot.lane.b32.xlu0 %v947, 8
  %v949 = vpop.permute.xlu0 %948
  %vm950 = vcmask 261184
  %s951 = scalar_lea.vmem %s1, 16
  %952 = vst.msk [vmem:[%s951] sm:$0xff] %vm950, %v949
  %s953 = scalar_lea.vmem %s0, 203
  %v954 = vld [vmem:[%s953] ss:$24 sm:$0xf]
  %s955 = scalar_lea.vmem %s0, 203
  %v956 = vld [vmem:[%s955] ss:$24 sm:$0xf0]
  %vm957 = vcmask 1047556
  %v958 = vsel %vm957, %v956, %v954
  %959 = vrot.lane.b32.xlu0 %v958, 8
  %v960 = vpop.permute.xlu0 %959
  %vm961 = vcmask 261184
  %s962 = scalar_lea.vmem %s1, 56
  %963 = vst.msk [vmem:[%s962] sm:$0xff] %vm961, %v960

// kernel: nnconvnet_forward.3
$region0: #{nnconvnet_forward.3}
  #allocation0 [shape = 'u32[]', space=smem, size = 0x4, offset = 0x4, fixed_abs, tag = 'smem constant byte address 0x4 - core index']
  #allocation1 [shape = 'u32[144,128]{1,0:T(1,128)}', space=vmem, size = 0x12000, scoped, tag = 'internal scratch']
  %s0 = inlined_call_operand.vmem [shape: f32[12,24], index: 0, kind: input, shape index: {}]
  %s1 = inlined_call_operand.vmem [shape: s32[1,12], index: 1, kind: input, shape index: {}]
  %s2 = inlined_call_operand.vmem [shape: f32[48,128], index: 2, kind: input, shape index: {}]
  %s3 = inlined_call_operand.vmem [shape: f32[24,128], index: 3, kind: input, shape index: {}]
  %s4 = inlined_call_operand.vmem [shape: f32[1,128], index: 4, kind: input, shape index: {}]
  %s5 = inlined_call_operand.vmem [shape: f32[48,8], index: 5, kind: input, shape index: {}]
  %s6 = inlined_call_operand.vmem [shape: f32[1,8], index: 6, kind: input, shape index: {}]
  %s7 = inlined_call_operand.vmem [shape: f32[8,2], index: 7, kind: input, shape index: {}]
  %s8 = inlined_call_operand.vmem [shape: f32[1,2], index: 8, kind: input, shape index: {}]
  %s9 = inlined_call_operand.hbm [shape: f32[2,2], index: 9, kind: output, shape index: {}]
  %s10 = sld [smem:[#allocation0]]
  $region46: #{nnconvnet_forward.3} parent=0
    _
  %s12 = ssub.s32 1, %s10
  %s13 = scalar_select 0, %s12, %s10
  $region1: #{nnconvnet_forward.3} parent=0
    #allocation2 [shape = 'u8[1024]{0}', space=vmem, size = 0x400, scoped, tag = 'output window, operand 0, single buffered']
    #allocation3 [shape = 's32[1]{0}', space=sflag, size = 0x4, scoped, tag = 'scoped memory for nnconvnet_forward.3']
    %14 = vsyncpa [#allocation3], 0
    // Predicated region
    $region2: #{nnconvnet_forward.3} parent=1 // pred_check
      _
    $region3: #{nnconvnet_forward.3} parent=1 // pred_check_branch
      %16 = sbr.rel (0) target = $region5
    $region4: #{nnconvnet_forward.3} parent=1 // pred_region
      _
    $region5: #{nnconvnet_forward.3} parent=1 // pred_fallthru
      _
    // Predicated region
    $region6: #{nnconvnet_forward.3} parent=1 // pred_check
      _
    $region7: #{nnconvnet_forward.3} parent=1 // pred_check_branch
      %18 = sbr.rel (0) target = $region9
    $region8: #{nnconvnet_forward.3} parent=1 // pred_region
      _
    $region9: #{nnconvnet_forward.3} parent=1 // pred_fallthru
      _
    // Predicated region
    $region10: #{nnconvnet_forward.3} parent=1 // pred_check
      _
    $region11: #{nnconvnet_forward.3} parent=1 // pred_check_branch
      %20 = sbr.rel (0) target = $region13
    $region12: #{nnconvnet_forward.3} parent=1 // pred_region
      _
    $region13: #{nnconvnet_forward.3} parent=1 // pred_fallthru
      _
    // Predicated region
    $region14: #{nnconvnet_forward.3} parent=1 // pred_check
      _
    $region15: #{nnconvnet_forward.3} parent=1 // pred_check_branch
      %22 = sbr.rel (0) target = $region17
    $region16: #{nnconvnet_forward.3} parent=1 // pred_region
      _
    $region17: #{nnconvnet_forward.3} parent=1 // pred_fallthru
      _
    // Predicated region
    $region18: #{nnconvnet_forward.3} parent=1 // pred_check
      _
    $region19: #{nnconvnet_forward.3} parent=1 // pred_check_branch
      %24 = sbr.rel (0) target = $region21
    $region20: #{nnconvnet_forward.3} parent=1 // pred_region
      _
    $region21: #{nnconvnet_forward.3} parent=1 // pred_fallthru
      _
    // Predicated region
    $region22: #{nnconvnet_forward.3} parent=1 // pred_check
      _
    $region23: #{nnconvnet_forward.3} parent=1 // pred_check_branch
      %26 = sbr.rel (0) target = $region25
    $region24: #{nnconvnet_forward.3} parent=1 // pred_region
      _
    $region25: #{nnconvnet_forward.3} parent=1 // pred_fallthru
      _
    // Predicated region
    $region26: #{nnconvnet_forward.3} parent=1 // pred_check
      _
    $region27: #{nnconvnet_forward.3} parent=1 // pred_check_branch
      %28 = sbr.rel (0) target = $region29
    $region28: #{nnconvnet_forward.3} parent=1 // pred_region
      _
    $region29: #{nnconvnet_forward.3} parent=1 // pred_fallthru
      _
    // Predicated region
    $region30: #{nnconvnet_forward.3} parent=1 // pred_check
      _
    $region31: #{nnconvnet_forward.3} parent=1 // pred_check_branch
      %30 = sbr.rel (0) target = $region33
    $region32: #{nnconvnet_forward.3} parent=1 // pred_region
      _
    $region33: #{nnconvnet_forward.3} parent=1 // pred_fallthru
      _
    // Predicated region
    $region34: #{nnconvnet_forward.3} parent=1 // pred_check
      _
    $region35: #{nnconvnet_forward.3} parent=1 // pred_check_branch
      %32 = sbr.rel (0) target = $region37
    $region36: #{nnconvnet_forward.3} parent=1 // pred_region
      _
    $region37: #{nnconvnet_forward.3} parent=1 // pred_fallthru
      _
    %v33 = vld [vmem:[%s0] sm:$0xff]
    %v34 = vld [vmem:[%s0 + $0x8] sm:$0xf]
    %v35 = vlaneseq
    %v36 = vshrl.u32 %v35, 7
    %v37 = vld [vmem:[%s1] sm:$0x1]
    %v38 = vlaneseq
    %v39 = vshrl.u32 %v38, 7
    %v40 = vsub.s32 0, %v39
    %v41 = vrot.slane %v37, %v40
    %vm42 = vcmp.eq.s32.totalorder %v36, %v41
    %v43 = vld [vmem:[%s2] sm:$0xff]
    %v44 = vld [vmem:[%s2 + $0x8] sm:$0xff]
    %v45 = vld [vmem:[%s2 + $0x10] sm:$0xff]
    %v46 = vld [vmem:[%s2 + $0x18] sm:$0xff]
    %v47 = vld [vmem:[%s2 + $0x20] sm:$0xff]
    %v48 = vld [vmem:[%s2 + $0x28] sm:$0xff]
    %v49 = vld [vmem:[%s3] sm:$0xff]
    %v50 = vld [vmem:[%s3 + $0x8] sm:$0xff]
    %v51 = vld [vmem:[%s3 + $0x10] sm:$0xff]
    %v52 = vld [vmem:[%s4] sm:$0x1]
    %vm53 = vcmask 195584
    %v55 = vsel %vm53, 0.0, 0
    %57 = vmatprep.subr.mxu0 0.0
    %58 = vmatpush1.msra.mxu0 %v46
    %59 = vmatprep.subr.mxu0 0.0
    %60 = vmatpush1.msra.mxu0 %v47
    %61 = vmatprep.subr.mxu0 0.0
    %62 = vmatpush1.msra.mxu0 %v48
    %63 = vmatprep.subr.mxu0 0.0
    %64 = vmatpush1.msra.mxu0 0.0
    %65 = vmatprep.subr.mxu0 0.0
    %66 = vmatpush1.msra.mxu0 0.0
    %67 = vmatprep.subr.mxu0 0.0
    %68 = vmatpush1.msra.mxu0 0.0
    %69 = vmatprep.subr.mxu0 0.0
    %70 = vmatpush1.msra.mxu0 0.0
    %71 = vmatprep.subr.mxu0 0.0
    %72 = vmatpush1.msra.mxu0 0.0
    %73 = vmatprep.subr.mxu0 0.0
    %74 = vmatpush1.msra.mxu0 0.0
    %75 = vmatprep.subr.mxu0 0.0
    %76 = vmatpush1.msra.mxu0 0.0
    %77 = vmatprep.subr.mxu0 0.0
    %78 = vmatpush1.msra.mxu0 0.0
    %79 = vmatprep.subr.mxu0 0.0
    %80 = vmatpush1.msra.mxu0 0.0
    %81 = vmatprep.subr.mxu0 0.0
    %82 = vmatpush1.msra.mxu0 0.0
    %83 = vmatprep.subr.mxu0 0.0
    %84 = vmatpush1.msra.mxu0 0.0
    %85 = vmatprep.subr.mxu0 0.0
    %86 = vmatpush1.msra.mxu0 0.0
    %87 = vmatprep.subr.mxu0 0.0
    %88 = vmatpush1.msra.mxu0 0.0
    %89 = vmatprep.subr.mxu0 0.0
    %90 = vmatpush1.msra.mxu0 0.0
    %91 = vmatprep.subr.mxu0 0.0
    %92 = vmatpush1.msra.mxu0 0.0
    %93 = vmatprep.subr.mxu0 0.0
    %94 = vmatpush1.msra.mxu0 0.0
    %95 = vmatprep.subr.mxu0 0.0
    %96 = vmatpush1.msra.mxu0 0.0
    %97 = vmatprep.subr.mxu0 0.0
    %98 = vmatpush1.msra.mxu0 0.0
    %99 = vmatprep.subr.mxu0 0.0
    %100 = vmatpush1.msra.mxu0 0.0
    %101 = vmatprep.subr.mxu0 0.0
    %102 = vmatpush1.msra.mxu0 0.0
    %103 = vmatprep.subr.mxu0 0.0
    %104 = vmatpush1.msra.mxu0 0.0
    %105 = vmatprep.subr.mxu0 0.0
    %106 = vmatpush1.msra.mxu0 0.0
    %107 = vmatprep.subr.mxu0 0.0
    %108 = vmatpush1.msra.mxu0 0.0
    %109 = vmatprep.subr.mxu0 0.0
    %110 = vmatpush1.msra.mxu0 0.0
    %111 = vmatprep.subr.mxu0 0.0
    %112 = vmatpush1.msra.mxu0 0.0
    %113 = vmatprep.subr.mxu0 0.0
    %114 = vmatpush1.msra.mxu0 0.0
    %115 = vmatprep.subr.mxu0 0.0
    %116 = vmatpush1.msra.mxu0 0.0
    %117 = vmatprep.subr.mxu0 0.0
    %118 = vmatpush1.msra.mxu0 0.0
    %119 = vmatprep.subr.mxu0 0.0
    %120 = vmatpush1.msra.mxu0 0.0
    %121 = vmatprep.mubr.f32.mxu0 0.0
    %122 = vmatmul.mubr.f32.gmra.mrb[0].mxu0 %v55
    %v123 = vpop.f32.mrb[0].mxu0
    %v124 = vadd.f32 0.0, %v123
    %v125 = vpop.f32.mrb[0].mxu0
    %126 = vdwg.mxu0
    %127 = vmatprep.subr.mxu0 0.0
    %128 = vmatpush1.msra.mxu0 %v43
    %129 = vmatprep.subr.mxu0 0.0
    %130 = vmatpush1.msra.mxu0 %v44
    %131 = vmatprep.subr.mxu0 0.0
    %132 = vmatpush1.msra.mxu0 %v45
    %133 = vmatprep.subr.mxu0 0.0
    %134 = vmatpush1.msra.mxu0 0.0
    %135 = vmatprep.subr.mxu0 0.0
    %136 = vmatpush1.msra.mxu0 0.0
    %137 = vmatprep.subr.mxu0 0.0
    %138 = vmatpush1.msra.mxu0 0.0
    %139 = vmatprep.subr.mxu0 0.0
    %140 = vmatpush1.msra.mxu0 0.0
    %141 = vmatprep.subr.mxu0 0.0
    %142 = vmatpush1.msra.mxu0 0.0
    %143 = vmatprep.subr.mxu0 0.0
    %144 = vmatpush1.msra.mxu0 0.0
    %145 = vmatprep.subr.mxu0 0.0
    %146 = vmatpush1.msra.mxu0 0.0
    %147 = vmatprep.subr.mxu0 0.0
    %148 = vmatpush1.msra.mxu0 0.0
    %149 = vmatprep.subr.mxu0 0.0
    %150 = vmatpush1.msra.mxu0 0.0
    %151 = vmatprep.subr.mxu0 0.0
    %152 = vmatpush1.msra.mxu0 0.0
    %153 = vmatprep.subr.mxu0 0.0
    %154 = vmatpush1.msra.mxu0 0.0
    %155 = vmatprep.subr.mxu0 0.0
    %156 = vmatpush1.msra.mxu0 0.0
    %157 = vmatprep.subr.mxu0 0.0
    %158 = vmatpush1.msra.mxu0 0.0
    %159 = vmatprep.subr.mxu0 0.0
    %160 = vmatpush1.msra.mxu0 0.0
    %161 = vmatprep.subr.mxu0 0.0
    %162 = vmatpush1.msra.mxu0 0.0
    %163 = vmatprep.subr.mxu0 0.0
    %164 = vmatpush1.msra.mxu0 0.0
    %165 = vmatprep.subr.mxu0 0.0
    %166 = vmatpush1.msra.mxu0 0.0
    %167 = vmatprep.subr.mxu0 0.0
    %168 = vmatpush1.msra.mxu0 0.0
    %169 = vmatprep.subr.mxu0 0.0
    %170 = vmatpush1.msra.mxu0 0.0
    %171 = vmatprep.subr.mxu0 0.0
    %172 = vmatpush1.msra.mxu0 0.0
    %173 = vmatprep.subr.mxu0 0.0
    %174 = vmatpush1.msra.mxu0 0.0
    %175 = vmatprep.subr.mxu0 0.0
    %176 = vmatpush1.msra.mxu0 0.0
    %177 = vmatprep.subr.mxu0 0.0
    %178 = vmatpush1.msra.mxu0 0.0
    %179 = vmatprep.subr.mxu0 0.0
    %180 = vmatpush1.msra.mxu0 0.0
    %181 = vmatprep.subr.mxu0 0.0
    %182 = vmatpush1.msra.mxu0 0.0
    %183 = vmatprep.subr.mxu0 0.0
    %184 = vmatpush1.msra.mxu0 0.0
    %185 = vmatprep.subr.mxu0 0.0
    %186 = vmatpush1.msra.mxu0 0.0
    %187 = vmatprep.subr.mxu0 0.0
    %188 = vmatpush1.msra.mxu0 0.0
    %189 = vmatprep.subr.mxu0 0.0
    %190 = vmatpush1.msra.mxu0 0.0
    %191 = vmatprep.mubr.f32.mxu0 0.0
    %192 = vmatmul.mubr.f32.gmra.mrb[0].mxu0 %v55
    %v193 = vpop.f32.mrb[0].mxu0
    %v194 = vadd.f32 %v124, %v193
    %v195 = vpop.f32.mrb[0].mxu0
    %196 = vdwg.mxu0
    %197 = vmatprep.subr.mxu0 0.0
    %198 = vmatpush1.msra.mxu0 %v49
    %199 = vmatprep.subr.mxu0 0.0
    %200 = vmatpush1.msra.mxu0 %v50
    %201 = vmatprep.subr.mxu0 0.0
    %202 = vmatpush1.msra.mxu0 %v51
    %203 = vmatprep.subr.mxu0 0.0
    %204 = vmatpush1.msra.mxu0 0.0
    %205 = vmatprep.subr.mxu0 0.0
    %206 = vmatpush1.msra.mxu0 0.0
    %207 = vmatprep.subr.mxu0 0.0
    %208 = vmatpush1.msra.mxu0 0.0
    %209 = vmatprep.subr.mxu0 0.0
    %210 = vmatpush1.msra.mxu0 0.0
    %211 = vmatprep.subr.mxu0 0.0
    %212 = vmatpush1.msra.mxu0 0.0
    %213 = vmatprep.subr.mxu0 0.0
    %214 = vmatpush1.msra.mxu0 0.0
    %215 = vmatprep.subr.mxu0 0.0
    %216 = vmatpush1.msra.mxu0 0.0
    %217 = vmatprep.subr.mxu0 0.0
    %218 = vmatpush1.msra.mxu0 0.0
    %219 = vmatprep.subr.mxu0 0.0
    %220 = vmatpush1.msra.mxu0 0.0
    %221 = vmatprep.subr.mxu0 0.0
    %222 = vmatpush1.msra.mxu0 0.0
    %223 = vmatprep.subr.mxu0 0.0
    %224 = vmatpush1.msra.mxu0 0.0
    %225 = vmatprep.subr.mxu0 0.0
    %226 = vmatpush1.msra.mxu0 0.0
    %227 = vmatprep.subr.mxu0 0.0
    %228 = vmatpush1.msra.mxu0 0.0
    %229 = vmatprep.subr.mxu0 0.0
    %230 = vmatpush1.msra.mxu0 0.0
    %231 = vmatprep.subr.mxu0 0.0
    %232 = vmatpush1.msra.mxu0 0.0
    %233 = vmatprep.subr.mxu0 0.0
    %234 = vmatpush1.msra.mxu0 0.0
    %235 = vmatprep.subr.mxu0 0.0
    %236 = vmatpush1.msra.mxu0 0.0
    %237 = vmatprep.subr.mxu0 0.0
    %238 = vmatpush1.msra.mxu0 0.0
    %239 = vmatprep.subr.mxu0 0.0
    %240 = vmatpush1.msra.mxu0 0.0
    %241 = vmatprep.subr.mxu0 0.0
    %242 = vmatpush1.msra.mxu0 0.0
    %243 = vmatprep.subr.mxu0 0.0
    %244 = vmatpush1.msra.mxu0 0.0
    %245 = vmatprep.subr.mxu0 0.0
    %246 = vmatpush1.msra.mxu0 0.0
    %247 = vmatprep.subr.mxu0 0.0
    %248 = vmatpush1.msra.mxu0 0.0
    %249 = vmatprep.subr.mxu0 0.0
    %250 = vmatpush1.msra.mxu0 0.0
    %251 = vmatprep.subr.mxu0 0.0
    %252 = vmatpush1.msra.mxu0 0.0
    %253 = vmatprep.subr.mxu0 0.0
    %254 = vmatpush1.msra.mxu0 0.0
    %255 = vmatprep.subr.mxu0 0.0
    %256 = vmatpush1.msra.mxu0 0.0
    %257 = vmatprep.subr.mxu0 0.0
    %258 = vmatpush1.msra.mxu0 0.0
    %259 = vmatprep.subr.mxu0 0.0
    %260 = vmatpush1.msra.mxu0 0.0
    %261 = vmatprep.mubr.f32.mxu0 0.0
    %262 = vmatmul.mubr.f32.gmra.mrb[0].mxu0 %v55
    %v263 = vpop.f32.mrb[0].mxu0
    %v264 = vadd.f32 0.0, %v263
    %v265 = vpop.f32.mrb[0].mxu0
    %266 = vdwg.mxu0
    %v267 = vadd.f32 %v194, %v264
    %v269 = vlaneseq
    %v270 = vshrl.u32 %v269, 7
    %v271 = vsub.s32 0, %v270
    %v272 = vrot.slane %v52, %v271
    %v274 = vadd.f32 %v267, %v272
    %v275 = vxor.u32 %v274, 2147483648
    %v276 = vmul.f32 %v275, 1.442695
    %v277 = vpow.pop %v276
    %v278 = vadd.f32 %v277, 1.0
    %v279 = vrcp.pop %v278
    %v280 = vmul.f32 1.0, %v279
    %v281 = vtanh.pop %v274
    %v282 = vmul.f32 %v280, 0.0
    %284 = vrot.lane.b32.xlu0 %v281, 64
    %v285 = vpop.permute.xlu0 %284
    %v287 = vmul.f32 %v280, %v285
    %289 = vrot.lane.b32.xlu0 %v287, 32
    %v290 = vpop.permute.xlu0 %289
    %v292 = vadd.f32 %v282, %v290
    %v293 = vtanh.pop %v292
    %295 = vrot.lane.b32.xlu0 %v293, 64
    %v296 = vpop.permute.xlu0 %295
    %v298 = vmul.f32 %v280, %v296
    %300 = vrot.lane.b32.xlu0 %v298, 32
    %v301 = vpop.permute.xlu0 %300
    %v302 = vsel %vm53, %v301, 0
    %v305 = vsel %vm53, %v33, 0
    %v308 = vsel %vm53, %v34, 0
    %310 = vmatprep.subr.mxu0 0.0
    %311 = vmatpush1.xpose.msra.mxu0 %v305
    %312 = vmatprep.subr.mxu0 0.0
    %313 = vmatpush1.xpose.msra.mxu0 %v308
    %314 = vmatprep.subr.mxu0 0.0
    %315 = vmatpush1.xpose.msra.mxu0 0.0
    %316 = vmatprep.subr.mxu0 0.0
    %317 = vmatpush1.xpose.msra.mxu0 0.0
    %318 = vmatprep.subr.mxu0 0.0
    %319 = vmatpush1.xpose.msra.mxu0 0.0
    %320 = vmatprep.subr.mxu0 0.0
    %321 = vmatpush1.xpose.msra.mxu0 0.0
    %322 = vmatprep.subr.mxu0 0.0
    %323 = vmatpush1.xpose.msra.mxu0 0.0
    %324 = vmatprep.subr.mxu0 0.0
    %325 = vmatpush1.xpose.msra.mxu0 0.0
    %326 = vmatprep.subr.mxu0 0.0
    %327 = vmatpush1.xpose.msra.mxu0 0.0
    %328 = vmatprep.subr.mxu0 0.0
    %329 = vmatpush1.xpose.msra.mxu0 0.0
    %330 = vmatprep.subr.mxu0 0.0
    %331 = vmatpush1.xpose.msra.mxu0 0.0
    %332 = vmatprep.subr.mxu0 0.0
    %333 = vmatpush1.xpose.msra.mxu0 0.0
    %334 = vmatprep.subr.mxu0 0.0
    %335 = vmatpush1.xpose.msra.mxu0 0.0
    %336 = vmatprep.subr.mxu0 0.0
    %337 = vmatpush1.xpose.msra.mxu0 0.0
    %338 = vmatprep.subr.mxu0 0.0
    %339 = vmatpush1.xpose.msra.mxu0 0.0
    %340 = vmatprep.subr.mxu0 0.0
    %341 = vmatpush1.xpose.msra.mxu0 0.0
    %342 = vmatprep.subr.mxu0 0.0
    %343 = vmatpush1.xpose.msra.mxu0 0.0
    %344 = vmatprep.subr.mxu0 0.0
    %345 = vmatpush1.xpose.msra.mxu0 0.0
    %346 = vmatprep.subr.mxu0 0.0
    %347 = vmatpush1.xpose.msra.mxu0 0.0
    %348 = vmatprep.subr.mxu0 0.0
    %349 = vmatpush1.xpose.msra.mxu0 0.0
    %350 = vmatprep.subr.mxu0 0.0
    %351 = vmatpush1.xpose.msra.mxu0 0.0
    %352 = vmatprep.subr.mxu0 0.0
    %353 = vmatpush1.xpose.msra.mxu0 0.0
    %354 = vmatprep.subr.mxu0 0.0
    %355 = vmatpush1.xpose.msra.mxu0 0.0
    %356 = vmatprep.subr.mxu0 0.0
    %357 = vmatpush1.xpose.msra.mxu0 0.0
    %358 = vmatprep.subr.mxu0 0.0
    %359 = vmatpush1.xpose.msra.mxu0 0.0
    %360 = vmatprep.subr.mxu0 0.0
    %361 = vmatpush1.xpose.msra.mxu0 0.0
    %362 = vmatprep.subr.mxu0 0.0
    %363 = vmatpush1.xpose.msra.mxu0 0.0
    %364 = vmatprep.subr.mxu0 0.0
    %365 = vmatpush1.xpose.msra.mxu0 0.0
    %366 = vmatprep.subr.mxu0 0.0
    %367 = vmatpush1.xpose.msra.mxu0 0.0
    %368 = vmatprep.subr.mxu0 0.0
    %369 = vmatpush1.xpose.msra.mxu0 0.0
    %370 = vmatprep.subr.mxu0 0.0
    %371 = vmatpush1.xpose.msra.mxu0 0.0
    %372 = vmatprep.subr.mxu0 0.0
    %373 = vmatpush1.xpose.msra.mxu0 0.0
    %374 = vmatprep.mubr.f32.mxu0 0.0
    %375 = vmatmul.mubr.f32.gmra.mrb[0].mxu0 %v302
    %v376 = vpop.f32.mrb[0].mxu0
    %v377 = vadd.f32 0.0, %v376
    %v378 = vpop.f32.mrb[0].mxu0
    %379 = vdwg.mxu0
    %v380 = vsel %vm42, %v377, -1e+30
    %vm381 = vcmask 91136
    %v382 = vsel %vm381, %v380, -inf
    %383 = vmax.xlane.f32.xlu0 %v382
    %v384 = vpop.xlane.xlu0 %383
    %v385 = vsub.f32 %v380, %v384
    %v386 = vmul.f32 %v385, 1.442695
    %v387 = vpow.pop %v386
    %v388 = vsel %vm42, %v387, 0.0
    %v389 = vsel %vm381, %v388, 0.0
    %390 = vadd.xlane.f32.xlu0 %v389
    %v391 = vpop.xlane.xlu0 %390
    %v392 = vadd.f32 %v391, 1e-16
    %v393 = vrcp.pop %v392
    %v394 = vmul.f32 %v388, %v393
    %vm395 = vcmask 97280
    %v397 = vsel %vm395, %v394, 0
    %vm399 = vcmask 1043456
    %v400 = vsel %vm399, %v34, 0
    %402 = vmatprep.subr.mxu0 0.0
    %403 = vmatpush1.msra.mxu0 %v33
    %404 = vmatprep.subr.mxu0 0.0
    %405 = vmatpush1.msra.mxu0 %v400
    %406 = vmatprep.subr.mxu0 0.0
    %407 = vmatpush1.msra.mxu0 0.0
    %408 = vmatprep.subr.mxu0 0.0
    %409 = vmatpush1.msra.mxu0 0.0
    %410 = vmatprep.subr.mxu0 0.0
    %411 = vmatpush1.msra.mxu0 0.0
    %412 = vmatprep.subr.mxu0 0.0
    %413 = vmatpush1.msra.mxu0 0.0
    %414 = vmatprep.subr.mxu0 0.0
    %415 = vmatpush1.msra.mxu0 0.0
    %416 = vmatprep.subr.mxu0 0.0
    %417 = vmatpush1.msra.mxu0 0.0
    %418 = vmatprep.subr.mxu0 0.0
    %419 = vmatpush1.msra.mxu0 0.0
    %420 = vmatprep.subr.mxu0 0.0
    %421 = vmatpush1.msra.mxu0 0.0
    %422 = vmatprep.subr.mxu0 0.0
    %423 = vmatpush1.msra.mxu0 0.0
    %424 = vmatprep.subr.mxu0 0.0
    %425 = vmatpush1.msra.mxu0 0.0
    %426 = vmatprep.subr.mxu0 0.0
    %427 = vmatpush1.msra.mxu0 0.0
    %428 = vmatprep.subr.mxu0 0.0
    %429 = vmatpush1.msra.mxu0 0.0
    %430 = vmatprep.subr.mxu0 0.0
    %431 = vmatpush1.msra.mxu0 0.0
    %432 = vmatprep.subr.mxu0 0.0
    %433 = vmatpush1.msra.mxu0 0.0
    %434 = vmatprep.subr.mxu0 0.0
    %435 = vmatpush1.msra.mxu0 0.0
    %436 = vmatprep.subr.mxu0 0.0
    %437 = vmatpush1.msra.mxu0 0.0
    %438 = vmatprep.subr.mxu0 0.0
    %439 = vmatpush1.msra.mxu0 0.0
    %440 = vmatprep.subr.mxu0 0.0
    %441 = vmatpush1.msra.mxu0 0.0
    %442 = vmatprep.subr.mxu0 0.0
    %443 = vmatpush1.msra.mxu0 0.0
    %444 = vmatprep.subr.mxu0 0.0
    %445 = vmatpush1.msra.mxu0 0.0
    %446 = vmatprep.subr.mxu0 0.0
    %447 = vmatpush1.msra.mxu0 0.0
    %448 = vmatprep.subr.mxu0 0.0
    %449 = vmatpush1.msra.mxu0 0.0
    %450 = vmatprep.subr.mxu0 0.0
    %451 = vmatpush1.msra.mxu0 0.0
    %452 = vmatprep.subr.mxu0 0.0
    %453 = vmatpush1.msra.mxu0 0.0
    %454 = vmatprep.subr.mxu0 0.0
    %455 = vmatpush1.msra.mxu0 0.0
    %456 = vmatprep.subr.mxu0 0.0
    %457 = vmatpush1.msra.mxu0 0.0
    %458 = vmatprep.subr.mxu0 0.0
    %459 = vmatpush1.msra.mxu0 0.0
    %460 = vmatprep.subr.mxu0 0.0
    %461 = vmatpush1.msra.mxu0 0.0
    %462 = vmatprep.subr.mxu0 0.0
    %463 = vmatpush1.msra.mxu0 0.0
    %464 = vmatprep.subr.mxu0 0.0
    %465 = vmatpush1.msra.mxu0 0.0
    %466 = vmatprep.mubr.f32.mxu0 0.0
    %467 = vmatmul.mubr.f32.gmra.mrb[0].mxu0 %v397
    %v468 = vpop.f32.mrb[0].mxu0
    %v469 = vadd.f32 0.0, %v468
    %v470 = vpop.f32.mrb[0].mxu0
    %471 = vdwg.mxu0
    %v473 = vsel %vm53, %v469, 0
    %475 = vmatprep.subr.mxu0 0.0
    %476 = vmatpush1.msra.mxu0 %v46
    %477 = vmatprep.subr.mxu0 0.0
    %478 = vmatpush1.msra.mxu0 %v47
    %479 = vmatprep.subr.mxu0 0.0
    %480 = vmatpush1.msra.mxu0 %v48
    %481 = vmatprep.subr.mxu0 0.0
    %482 = vmatpush1.msra.mxu0 0.0
    %483 = vmatprep.subr.mxu0 0.0
    %484 = vmatpush1.msra.mxu0 0.0
    %485 = vmatprep.subr.mxu0 0.0
    %486 = vmatpush1.msra.mxu0 0.0
    %487 = vmatprep.subr.mxu0 0.0
    %488 = vmatpush1.msra.mxu0 0.0
    %489 = vmatprep.subr.mxu0 0.0
    %490 = vmatpush1.msra.mxu0 0.0
    %491 = vmatprep.subr.mxu0 0.0
    %492 = vmatpush1.msra.mxu0 0.0
    %493 = vmatprep.subr.mxu0 0.0
    %494 = vmatpush1.msra.mxu0 0.0
    %495 = vmatprep.subr.mxu0 0.0
    %496 = vmatpush1.msra.mxu0 0.0
    %497 = vmatprep.subr.mxu0 0.0
    %498 = vmatpush1.msra.mxu0 0.0
    %499 = vmatprep.subr.mxu0 0.0
    %500 = vmatpush1.msra.mxu0 0.0
    %501 = vmatprep.subr.mxu0 0.0
    %502 = vmatpush1.msra.mxu0 0.0
    %503 = vmatprep.subr.mxu0 0.0
    %504 = vmatpush1.msra.mxu0 0.0
    %505 = vmatprep.subr.mxu0 0.0
    %506 = vmatpush1.msra.mxu0 0.0
    %507 = vmatprep.subr.mxu0 0.0
    %508 = vmatpush1.msra.mxu0 0.0
    %509 = vmatprep.subr.mxu0 0.0
    %510 = vmatpush1.msra.mxu0 0.0
    %511 = vmatprep.subr.mxu0 0.0
    %512 = vmatpush1.msra.mxu0 0.0
    %513 = vmatprep.subr.mxu0 0.0
    %514 = vmatpush1.msra.mxu0 0.0
    %515 = vmatprep.subr.mxu0 0.0
    %516 = vmatpush1.msra.mxu0 0.0
    %517 = vmatprep.subr.mxu0 0.0
    %518 = vmatpush1.msra.mxu0 0.0
    %519 = vmatprep.subr.mxu0 0.0
    %520 = vmatpush1.msra.mxu0 0.0
    %521 = vmatprep.subr.mxu0 0.0
    %522 = vmatpush1.msra.mxu0 0.0
    %523 = vmatprep.subr.mxu0 0.0
    %524 = vmatpush1.msra.mxu0 0.0
    %525 = vmatprep.subr.mxu0 0.0
    %526 = vmatpush1.msra.mxu0 0.0
    %527 = vmatprep.subr.mxu0 0.0
    %528 = vmatpush1.msra.mxu0 0.0
    %529 = vmatprep.subr.mxu0 0.0
    %530 = vmatpush1.msra.mxu0 0.0
    %531 = vmatprep.subr.mxu0 0.0
    %532 = vmatpush1.msra.mxu0 0.0
    %533 = vmatprep.subr.mxu0 0.0
    %534 = vmatpush1.msra.mxu0 0.0
    %535 = vmatprep.subr.mxu0 0.0
    %536 = vmatpush1.msra.mxu0 0.0
    %537 = vmatprep.subr.mxu0 0.0
    %538 = vmatpush1.msra.mxu0 0.0
    %539 = vmatprep.mubr.f32.mxu0 0.0
    %540 = vmatmul.mubr.f32.gmra.mrb[0].mxu0 %v473
    %v541 = vpop.f32.mrb[0].mxu0
    %v542 = vadd.f32 0.0, %v541
    %v543 = vpop.f32.mrb[0].mxu0
    %544 = vdwg.mxu0
    %545 = vmatprep.subr.mxu0 0.0
    %546 = vmatpush1.msra.mxu0 %v43
    %547 = vmatprep.subr.mxu0 0.0
    %548 = vmatpush1.msra.mxu0 %v44
    %549 = vmatprep.subr.mxu0 0.0
    %550 = vmatpush1.msra.mxu0 %v45
    %551 = vmatprep.subr.mxu0 0.0
    %552 = vmatpush1.msra.mxu0 0.0
    %553 = vmatprep.subr.mxu0 0.0
    %554 = vmatpush1.msra.mxu0 0.0
    %555 = vmatprep.subr.mxu0 0.0
    %556 = vmatpush1.msra.mxu0 0.0
    %557 = vmatprep.subr.mxu0 0.0
    %558 = vmatpush1.msra.mxu0 0.0
    %559 = vmatprep.subr.mxu0 0.0
    %560 = vmatpush1.msra.mxu0 0.0
    %561 = vmatprep.subr.mxu0 0.0
    %562 = vmatpush1.msra.mxu0 0.0
    %563 = vmatprep.subr.mxu0 0.0
    %564 = vmatpush1.msra.mxu0 0.0
    %565 = vmatprep.subr.mxu0 0.0
    %566 = vmatpush1.msra.mxu0 0.0
    %567 = vmatprep.subr.mxu0 0.0
    %568 = vmatpush1.msra.mxu0 0.0
    %569 = vmatprep.subr.mxu0 0.0
    %570 = vmatpush1.msra.mxu0 0.0
    %571 = vmatprep.subr.mxu0 0.0
    %572 = vmatpush1.msra.mxu0 0.0
    %573 = vmatprep.subr.mxu0 0.0
    %574 = vmatpush1.msra.mxu0 0.0
    %575 = vmatprep.subr.mxu0 0.0
    %576 = vmatpush1.msra.mxu0 0.0
    %577 = vmatprep.subr.mxu0 0.0
    %578 = vmatpush1.msra.mxu0 0.0
    %579 = vmatprep.subr.mxu0 0.0
    %580 = vmatpush1.msra.mxu0 0.0
    %581 = vmatprep.subr.mxu0 0.0
    %582 = vmatpush1.msra.mxu0 0.0
    %583 = vmatprep.subr.mxu0 0.0
    %584 = vmatpush1.msra.mxu0 0.0
    %585 = vmatprep.subr.mxu0 0.0
    %586 = vmatpush1.msra.mxu0 0.0
    %587 = vmatprep.subr.mxu0 0.0
    %588 = vmatpush1.msra.mxu0 0.0
    %589 = vmatprep.subr.mxu0 0.0
    %590 = vmatpush1.msra.mxu0 0.0
    %591 = vmatprep.subr.mxu0 0.0
    %592 = vmatpush1.msra.mxu0 0.0
    %593 = vmatprep.subr.mxu0 0.0
    %594 = vmatpush1.msra.mxu0 0.0
    %595 = vmatprep.subr.mxu0 0.0
    %596 = vmatpush1.msra.mxu0 0.0
    %597 = vmatprep.subr.mxu0 0.0
    %598 = vmatpush1.msra.mxu0 0.0
    %599 = vmatprep.subr.mxu0 0.0
    %600 = vmatpush1.msra.mxu0 0.0
    %601 = vmatprep.subr.mxu0 0.0
    %602 = vmatpush1.msra.mxu0 0.0
    %603 = vmatprep.subr.mxu0 0.0
    %604 = vmatpush1.msra.mxu0 0.0
    %605 = vmatprep.subr.mxu0 0.0
    %606 = vmatpush1.msra.mxu0 0.0
    %607 = vmatprep.subr.mxu0 0.0
    %608 = vmatpush1.msra.mxu0 0.0
    %609 = vmatprep.mubr.f32.mxu0 0.0
    %610 = vmatmul.mubr.f32.gmra.mrb[0].mxu0 %v302
    %v611 = vpop.f32.mrb[0].mxu0
    %v612 = vadd.f32 %v542, %v611
    %v613 = vpop.f32.mrb[0].mxu0
    %614 = vdwg.mxu0
    %615 = vmatprep.subr.mxu0 0.0
    %616 = vmatpush1.msra.mxu0 %v49
    %617 = vmatprep.subr.mxu0 0.0
    %618 = vmatpush1.msra.mxu0 %v50
    %619 = vmatprep.subr.mxu0 0.0
    %620 = vmatpush1.msra.mxu0 %v51
    %621 = vmatprep.subr.mxu0 0.0
    %622 = vmatpush1.msra.mxu0 0.0
    %623 = vmatprep.subr.mxu0 0.0
    %624 = vmatpush1.msra.mxu0 0.0
    %625 = vmatprep.subr.mxu0 0.0
    %626 = vmatpush1.msra.mxu0 0.0
    %627 = vmatprep.subr.mxu0 0.0
    %628 = vmatpush1.msra.mxu0 0.0
    %629 = vmatprep.subr.mxu0 0.0
    %630 = vmatpush1.msra.mxu0 0.0
    %631 = vmatprep.subr.mxu0 0.0
    %632 = vmatpush1.msra.mxu0 0.0
    %633 = vmatprep.subr.mxu0 0.0
    %634 = vmatpush1.msra.mxu0 0.0
    %635 = vmatprep.subr.mxu0 0.0
    %636 = vmatpush1.msra.mxu0 0.0
    %637 = vmatprep.subr.mxu0 0.0
    %638 = vmatpush1.msra.mxu0 0.0
    %639 = vmatprep.subr.mxu0 0.0
    %640 = vmatpush1.msra.mxu0 0.0
    %641 = vmatprep.subr.mxu0 0.0
    %642 = vmatpush1.msra.mxu0 0.0
    %643 = vmatprep.subr.mxu0 0.0
    %644 = vmatpush1.msra.mxu0 0.0
    %645 = vmatprep.subr.mxu0 0.0
    %646 = vmatpush1.msra.mxu0 0.0
    %647 = vmatprep.subr.mxu0 0.0
    %648 = vmatpush1.msra.mxu0 0.0
    %649 = vmatprep.subr.mxu0 0.0
    %650 = vmatpush1.msra.mxu0 0.0
    %651 = vmatprep.subr.mxu0 0.0
    %652 = vmatpush1.msra.mxu0 0.0
    %653 = vmatprep.subr.mxu0 0.0
    %654 = vmatpush1.msra.mxu0 0.0
    %655 = vmatprep.subr.mxu0 0.0
    %656 = vmatpush1.msra.mxu0 0.0
    %657 = vmatprep.subr.mxu0 0.0
    %658 = vmatpush1.msra.mxu0 0.0
    %659 = vmatprep.subr.mxu0 0.0
    %660 = vmatpush1.msra.mxu0 0.0
    %661 = vmatprep.subr.mxu0 0.0
    %662 = vmatpush1.msra.mxu0 0.0
    %663 = vmatprep.subr.mxu0 0.0
    %664 = vmatpush1.msra.mxu0 0.0
    %665 = vmatprep.subr.mxu0 0.0
    %666 = vmatpush1.msra.mxu0 0.0
    %667 = vmatprep.subr.mxu0 0.0
    %668 = vmatpush1.msra.mxu0 0.0
    %669 = vmatprep.subr.mxu0 0.0
    %670 = vmatpush1.msra.mxu0 0.0
    %671 = vmatprep.subr.mxu0 0.0
    %672 = vmatpush1.msra.mxu0 0.0
    %673 = vmatprep.subr.mxu0 0.0
    %674 = vmatpush1.msra.mxu0 0.0
    %675 = vmatprep.subr.mxu0 0.0
    %676 = vmatpush1.msra.mxu0 0.0
    %677 = vmatprep.subr.mxu0 0.0
    %678 = vmatpush1.msra.mxu0 0.0
    %679 = vmatprep.mubr.f32.mxu0 0.0
    %680 = vmatmul.mubr.f32.gmra.mrb[0].mxu0 %v302
    %v681 = vpop.f32.mrb[0].mxu0
    %v682 = vadd.f32 0.0, %v681
    %v683 = vpop.f32.mrb[0].mxu0
    %684 = vdwg.mxu0
    %v685 = vadd.f32 %v612, %v682
    %v686 = vadd.f32 %v685, %v272
    %v687 = vxor.u32 %v686, 2147483648
    %v688 = vmul.f32 %v687, 1.442695
    %v689 = vpow.pop %v688
    %v690 = vadd.f32 %v689, 1.0
    %v691 = vrcp.pop %v690
    %v692 = vmul.f32 1.0, %v691
    %v693 = vtanh.pop %v686
    %v694 = vmul.f32 %v692, %v292
    %696 = vrot.lane.b32.xlu0 %v693, 64
    %v697 = vpop.permute.xlu0 %696
    %v699 = vmul.f32 %v692, %v697
    %701 = vrot.lane.b32.xlu0 %v699, 32
    %v702 = vpop.permute.xlu0 %701
    %v704 = vadd.f32 %v694, %v702
    %v705 = vtanh.pop %v704
    %707 = vrot.lane.b32.xlu0 %v705, 64
    %v708 = vpop.permute.xlu0 %707
    %v710 = vmul.f32 %v692, %v708
    %712 = vrot.lane.b32.xlu0 %v710, 32
    %v713 = vpop.permute.xlu0 %712
    %v714 = vsel %vm53, %v713, 0
    %716 = vmatprep.subr.mxu0 0.0
    %717 = vmatpush1.xpose.msra.mxu0 %v305
    %718 = vmatprep.subr.mxu0 0.0
    %719 = vmatpush1.xpose.msra.mxu0 %v308
    %720 = vmatprep.subr.mxu0 0.0
    %721 = vmatpush1.xpose.msra.mxu0 0.0
    %722 = vmatprep.subr.mxu0 0.0
    %723 = vmatpush1.xpose.msra.mxu0 0.0
    %724 = vmatprep.subr.mxu0 0.0
    %725 = vmatpush1.xpose.msra.mxu0 0.0
    %726 = vmatprep.subr.mxu0 0.0
    %727 = vmatpush1.xpose.msra.mxu0 0.0
    %728 = vmatprep.subr.mxu0 0.0
    %729 = vmatpush1.xpose.msra.mxu0 0.0
    %730 = vmatprep.subr.mxu0 0.0
    %731 = vmatpush1.xpose.msra.mxu0 0.0
    %732 = vmatprep.subr.mxu0 0.0
    %733 = vmatpush1.xpose.msra.mxu0 0.0
    %734 = vmatprep.subr.mxu0 0.0
    %735 = vmatpush1.xpose.msra.mxu0 0.0
    %736 = vmatprep.subr.mxu0 0.0
    %737 = vmatpush1.xpose.msra.mxu0 0.0
    %738 = vmatprep.subr.mxu0 0.0
    %739 = vmatpush1.xpose.msra.mxu0 0.0
    %740 = vmatprep.subr.mxu0 0.0
    %741 = vmatpush1.xpose.msra.mxu0 0.0
    %742 = vmatprep.subr.mxu0 0.0
    %743 = vmatpush1.xpose.msra.mxu0 0.0
    %744 = vmatprep.subr.mxu0 0.0
    %745 = vmatpush1.xpose.msra.mxu0 0.0
    %746 = vmatprep.subr.mxu0 0.0
    %747 = vmatpush1.xpose.msra.mxu0 0.0
    %748 = vmatprep.subr.mxu0 0.0
    %749 = vmatpush1.xpose.msra.mxu0 0.0
    %750 = vmatprep.subr.mxu0 0.0
    %751 = vmatpush1.xpose.msra.mxu0 0.0
    %752 = vmatprep.subr.mxu0 0.0
    %753 = vmatpush1.xpose.msra.mxu0 0.0
    %754 = vmatprep.subr.mxu0 0.0
    %755 = vmatpush1.xpose.msra.mxu0 0.0
    %756 = vmatprep.subr.mxu0 0.0
    %757 = vmatpush1.xpose.msra.mxu0 0.0
    %758 = vmatprep.subr.mxu0 0.0
    %759 = vmatpush1.xpose.msra.mxu0 0.0
    %760 = vmatprep.subr.mxu0 0.0
    %761 = vmatpush1.xpose.msra.mxu0 0.0
    %762 = vmatprep.subr.mxu0 0.0
    %763 = vmatpush1.xpose.msra.mxu0 0.0
    %764 = vmatprep.subr.mxu0 0.0
    %765 = vmatpush1.xpose.msra.mxu0 0.0
    %766 = vmatprep.subr.mxu0 0.0
    %767 = vmatpush1.xpose.msra.mxu0 0.0
    %768 = vmatprep.subr.mxu0 0.0
    %769 = vmatpush1.xpose.msra.mxu0 0.0
    %770 = vmatprep.subr.mxu0 0.0
    %771 = vmatpush1.xpose.msra.mxu0 0.0
    %772 = vmatprep.subr.mxu0 0.0
    %773 = vmatpush1.xpose.msra.mxu0 0.0
    %774 = vmatprep.subr.mxu0 0.0
    %775 = vmatpush1.xpose.msra.mxu0 0.0
    %776 = vmatprep.subr.mxu0 0.0
    %777 = vmatpush1.xpose.msra.mxu0 0.0
    %778 = vmatprep.subr.mxu0 0.0
    %779 = vmatpush1.xpose.msra.mxu0 0.0
    %780 = vmatprep.mubr.f32.mxu0 0.0
    %781 = vmatmul.mubr.f32.gmra.mrb[0].mxu0 %v714
    %v782 = vpop.f32.mrb[0].mxu0
    %v783 = vadd.f32 0.0, %v782
    %v784 = vpop.f32.mrb[0].mxu0
    %785 = vdwg.mxu0
    %v786 = vsel %vm42, %v783, -1e+30
    %v787 = vsel %vm381, %v786, -inf
    %788 = vmax.xlane.f32.xlu0 %v787
    %v789 = vpop.xlane.xlu0 %788
    %v790 = vsub.f32 %v786, %v789
    %v791 = vmul.f32 %v790, 1.442695
    %v792 = vpow.pop %v791
    %v793 = vsel %vm42, %v792, 0.0
    %v794 = vsel %vm381, %v793, 0.0
    %795 = vadd.xlane.f32.xlu0 %v794
    %v796 = vpop.xlane.xlu0 %795
    %v797 = vadd.f32 %v796, 1e-16
    %v798 = vrcp.pop %v797
    %v799 = vmul.f32 %v793, %v798
    %v801 = vsel %vm395, %v799, 0
    %803 = vmatprep.subr.mxu0 0.0
    %804 = vmatpush1.msra.mxu0 %v33
    %805 = vmatprep.subr.mxu0 0.0
    %806 = vmatpush1.msra.mxu0 %v400
    %807 = vmatprep.subr.mxu0 0.0
    %808 = vmatpush1.msra.mxu0 0.0
    %809 = vmatprep.subr.mxu0 0.0
    %810 = vmatpush1.msra.mxu0 0.0
    %811 = vmatprep.subr.mxu0 0.0
    %812 = vmatpush1.msra.mxu0 0.0
    %813 = vmatprep.subr.mxu0 0.0
    %814 = vmatpush1.msra.mxu0 0.0
    %815 = vmatprep.subr.mxu0 0.0
    %816 = vmatpush1.msra.mxu0 0.0
    %817 = vmatprep.subr.mxu0 0.0
    %818 = vmatpush1.msra.mxu0 0.0
    %819 = vmatprep.subr.mxu0 0.0
    %820 = vmatpush1.msra.mxu0 0.0
    %821 = vmatprep.subr.mxu0 0.0
    %822 = vmatpush1.msra.mxu0 0.0
    %823 = vmatprep.subr.mxu0 0.0
    %824 = vmatpush1.msra.mxu0 0.0
    %825 = vmatprep.subr.mxu0 0.0
    %826 = vmatpush1.msra.mxu0 0.0
    %827 = vmatprep.subr.mxu0 0.0
    %828 = vmatpush1.msra.mxu0 0.0
    %829 = vmatprep.subr.mxu0 0.0
    %830 = vmatpush1.msra.mxu0 0.0
    %831 = vmatprep.subr.mxu0 0.0
    %832 = vmatpush1.msra.mxu0 0.0
    %833 = vmatprep.subr.mxu0 0.0
    %834 = vmatpush1.msra.mxu0 0.0
    %835 = vmatprep.subr.mxu0 0.0
    %836 = vmatpush1.msra.mxu0 0.0
    %837 = vmatprep.subr.mxu0 0.0
    %838 = vmatpush1.msra.mxu0 0.0
    %839 = vmatprep.subr.mxu0 0.0
    %840 = vmatpush1.msra.mxu0 0.0
    %841 = vmatprep.subr.mxu0 0.0
    %842 = vmatpush1.msra.mxu0 0.0
    %843 = vmatprep.subr.mxu0 0.0
    %844 = vmatpush1.msra.mxu0 0.0
    %845 = vmatprep.subr.mxu0 0.0
    %846 = vmatpush1.msra.mxu0 0.0
    %847 = vmatprep.subr.mxu0 0.0
    %848 = vmatpush1.msra.mxu0 0.0
    %849 = vmatprep.subr.mxu0 0.0
    %850 = vmatpush1.msra.mxu0 0.0
    %851 = vmatprep.subr.mxu0 0.0
    %852 = vmatpush1.msra.mxu0 0.0
    %853 = vmatprep.subr.mxu0 0.0
    %854 = vmatpush1.msra.mxu0 0.0
    %855 = vmatprep.subr.mxu0 0.0
    %856 = vmatpush1.msra.mxu0 0.0
    %857 = vmatprep.subr.mxu0 0.0
    %858 = vmatpush1.msra.mxu0 0.0
    %859 = vmatprep.subr.mxu0 0.0
    %860 = vmatpush1.msra.mxu0 0.0
    %861 = vmatprep.subr.mxu0 0.0
    %862 = vmatpush1.msra.mxu0 0.0
    %863 = vmatprep.subr.mxu0 0.0
    %864 = vmatpush1.msra.mxu0 0.0
    %865 = vmatprep.subr.mxu0 0.0
    %866 = vmatpush1.msra.mxu0 0.0
    %867 = vmatprep.mubr.f32.mxu0 0.0
    %868 = vmatmul.mubr.f32.gmra.mrb[0].mxu0 %v801
    %v869 = vpop.f32.mrb[0].mxu0
    %v870 = vadd.f32 0.0, %v869
    %v871 = vpop.f32.mrb[0].mxu0
    %872 = vdwg.mxu0
    %v874 = vsel %vm53, %v870, 0
    %876 = vmatprep.subr.mxu0 0.0
    %877 = vmatpush1.msra.mxu0 %v46
    %878 = vmatprep.subr.mxu0 0.0
    %879 = vmatpush1.msra.mxu0 %v47
    %880 = vmatprep.subr.mxu0 0.0
    %881 = vmatpush1.msra.mxu0 %v48
    %882 = vmatprep.subr.mxu0 0.0
    %883 = vmatpush1.msra.mxu0 0.0
    %884 = vmatprep.subr.mxu0 0.0
    %885 = vmatpush1.msra.mxu0 0.0
    %886 = vmatprep.subr.mxu0 0.0
    %887 = vmatpush1.msra.mxu0 0.0
    %888 = vmatprep.subr.mxu0 0.0
    %889 = vmatpush1.msra.mxu0 0.0
    %890 = vmatprep.subr.mxu0 0.0
    %891 = vmatpush1.msra.mxu0 0.0
    %892 = vmatprep.subr.mxu0 0.0
    %893 = vmatpush1.msra.mxu0 0.0
    %894 = vmatprep.subr.mxu0 0.0
    %895 = vmatpush1.msra.mxu0 0.0
    %896 = vmatprep.subr.mxu0 0.0
    %897 = vmatpush1.msra.mxu0 0.0
    %898 = vmatprep.subr.mxu0 0.0
    %899 = vmatpush1.msra.mxu0 0.0
    %900 = vmatprep.subr.mxu0 0.0
    %901 = vmatpush1.msra.mxu0 0.0
    %902 = vmatprep.subr.mxu0 0.0
    %903 = vmatpush1.msra.mxu0 0.0
    %904 = vmatprep.subr.mxu0 0.0
    %905 = vmatpush1.msra.mxu0 0.0
    %906 = vmatprep.subr.mxu0 0.0
    %907 = vmatpush1.msra.mxu0 0.0
    %908 = vmatprep.subr.mxu0 0.0
    %909 = vmatpush1.msra.mxu0 0.0
    %910 = vmatprep.subr.mxu0 0.0
    %911 = vmatpush1.msra.mxu0 0.0
    %912 = vmatprep.subr.mxu0 0.0
    %913 = vmatpush1.msra.mxu0 0.0
    %914 = vmatprep.subr.mxu0 0.0
    %915 = vmatpush1.msra.mxu0 0.0
    %916 = vmatprep.subr.mxu0 0.0
    %917 = vmatpush1.msra.mxu0 0.0
    %918 = vmatprep.subr.mxu0 0.0
    %919 = vmatpush1.msra.mxu0 0.0
    %920 = vmatprep.subr.mxu0 0.0
    %921 = vmatpush1.msra.mxu0 0.0
    %922 = vmatprep.subr.mxu0 0.0
    %923 = vmatpush1.msra.mxu0 0.0
    %924 = vmatprep.subr.mxu0 0.0
    %925 = vmatpush1.msra.mxu0 0.0
    %926 = vmatprep.subr.mxu0 0.0
    %927 = vmatpush1.msra.mxu0 0.0
    %928 = vmatprep.subr.mxu0 0.0
    %929 = vmatpush1.msra.mxu0 0.0
    %930 = vmatprep.subr.mxu0 0.0
    %931 = vmatpush1.msra.mxu0 0.0
    %932 = vmatprep.subr.mxu0 0.0
    %933 = vmatpush1.msra.mxu0 0.0
    %934 = vmatprep.subr.mxu0 0.0
    %935 = vmatpush1.msra.mxu0 0.0
    %936 = vmatprep.subr.mxu0 0.0
    %937 = vmatpush1.msra.mxu0 0.0
    %938 = vmatprep.subr.mxu0 0.0
    %939 = vmatpush1.msra.mxu0 0.0
    %940 = vmatprep.mubr.f32.mxu0 0.0
    %941 = vmatmul.mubr.f32.gmra.mrb[0].mxu0 %v874
    %v942 = vpop.f32.mrb[0].mxu0
    %v943 = vadd.f32 0.0, %v942
    %v944 = vpop.f32.mrb[0].mxu0
    %945 = vdwg.mxu0
    %946 = vmatprep.subr.mxu0 0.0
    %947 = vmatpush1.msra.mxu0 %v43
    %948 = vmatprep.subr.mxu0 0.0
    %949 = vmatpush1.msra.mxu0 %v44
    %950 = vmatprep.subr.mxu0 0.0
    %951 = vmatpush1.msra.mxu0 %v45
    %952 = vmatprep.subr.mxu0 0.0
    %953 = vmatpush1.msra.mxu0 0.0
    %954 = vmatprep.subr.mxu0 0.0
    %955 = vmatpush1.msra.mxu0 0.0
    %956 = vmatprep.subr.mxu0 0.0
    %957 = vmatpush1.msra.mxu0 0.0
    %958 = vmatprep.subr.mxu0 0.0
    %959 = vmatpush1.msra.mxu0 0.0
    %960 = vmatprep.subr.mxu0 0.0
    %961 = vmatpush1.msra.mxu0 0.0
    %962 = vmatprep.subr.mxu0 0.0
    %963 = vmatpush1.msra.mxu0 0.0
    %964 = vmatprep.subr.mxu0 0.0
    %965 = vmatpush1.msra.mxu0 0.0
    %966 = vmatprep.subr.mxu0 0.0
    %967 = vmatpush1.msra.mxu0 0.0
    %968 = vmatprep.subr.mxu0 0.0
    %969 = vmatpush1.msra.mxu0 0.0
    %970 = vmatprep.subr.mxu0 0.0
    %971 = vmatpush1.msra.mxu0 0.0
    %972 = vmatprep.subr.mxu0 0.0
    %973 = vmatpush1.msra.mxu0 0.0
    %974 = vmatprep.subr.mxu0 0.0
    %975 = vmatpush1.msra.mxu0 0.0
    %976 = vmatprep.subr.mxu0 0.0
    %977 = vmatpush1.msra.mxu0 0.0
    %978 = vmatprep.subr.mxu0 0.0
    %979 = vmatpush1.msra.mxu0 0.0
    %980 = vmatprep.subr.mxu0 0.0
    %981 = vmatpush1.msra.mxu0 0.0
    %982 = vmatprep.subr.mxu0 0.0
    %983 = vmatpush1.msra.mxu0 0.0
    %984 = vmatprep.subr.mxu0 0.0
    %985 = vmatpush1.msra.mxu0 0.0
    %986 = vmatprep.subr.mxu0 0.0
    %987 = vmatpush1.msra.mxu0 0.0
    %988 = vmatprep.subr.mxu0 0.0
    %989 = vmatpush1.msra.mxu0 0.0
    %990 = vmatprep.subr.mxu0 0.0
    %991 = vmatpush1.msra.mxu0 0.0
    %992 = vmatprep.subr.mxu0 0.0
    %993 = vmatpush1.msra.mxu0 0.0
    %994 = vmatprep.subr.mxu0 0.0
    %995 = vmatpush1.msra.mxu0 0.0
    %996 = vmatprep.subr.mxu0 0.0
    %997 = vmatpush1.msra.mxu0 0.0
    %998 = vmatprep.subr.mxu0 0.0
    %999 = vmatpush1.msra.mxu0 0.0
    %1000 = vmatprep.subr.mxu0 0.0
    %1001 = vmatpush1.msra.mxu0 0.0
    %1002 = vmatprep.subr.mxu0 0.0
    %1003 = vmatpush1.msra.mxu0 0.0
    %1004 = vmatprep.subr.mxu0 0.0
    %1005 = vmatpush1.msra.mxu0 0.0
    %1006 = vmatprep.subr.mxu0 0.0
    %1007 = vmatpush1.msra.mxu0 0.0
    %1008 = vmatprep.subr.mxu0 0.0
    %1009 = vmatpush1.msra.mxu0 0.0
    %1010 = vmatprep.mubr.f32.mxu0 0.0
    %1011 = vmatmul.mubr.f32.gmra.mrb[0].mxu0 %v714
    %v1012 = vpop.f32.mrb[0].mxu0
    %v1013 = vadd.f32 %v943, %v1012
    %v1014 = vpop.f32.mrb[0].mxu0
    %1015 = vdwg.mxu0
    %1016 = vmatprep.subr.mxu0 0.0
    %1017 = vmatpush1.msra.mxu0 %v49
    %1018 = vmatprep.subr.mxu0 0.0
    %1019 = vmatpush1.msra.mxu0 %v50
    %1020 = vmatprep.subr.mxu0 0.0
    %1021 = vmatpush1.msra.mxu0 %v51
    %1022 = vmatprep.subr.mxu0 0.0
    %1023 = vmatpush1.msra.mxu0 0.0
    %1024 = vmatprep.subr.mxu0 0.0
    %1025 = vmatpush1.msra.mxu0 0.0
    %1026 = vmatprep.subr.mxu0 0.0
    %1027 = vmatpush1.msra.mxu0 0.0
    %1028 = vmatprep.subr.mxu0 0.0
    %1029 = vmatpush1.msra.mxu0 0.0
    %1030 = vmatprep.subr.mxu0 0.0
    %1031 = vmatpush1.msra.mxu0 0.0
    %1032 = vmatprep.subr.mxu0 0.0
    %1033 = vmatpush1.msra.mxu0 0.0
    %1034 = vmatprep.subr.mxu0 0.0
    %1035 = vmatpush1.msra.mxu0 0.0
    %1036 = vmatprep.subr.mxu0 0.0
    %1037 = vmatpush1.msra.mxu0 0.0
    %1038 = vmatprep.subr.mxu0 0.0
    %1039 = vmatpush1.msra.mxu0 0.0
    %1040 = vmatprep.subr.mxu0 0.0
    %1041 = vmatpush1.msra.mxu0 0.0
    %1042 = vmatprep.subr.mxu0 0.0
    %1043 = vmatpush1.msra.mxu0 0.0
    %1044 = vmatprep.subr.mxu0 0.0
    %1045 = vmatpush1.msra.mxu0 0.0
    %1046 = vmatprep.subr.mxu0 0.0
    %1047 = vmatpush1.msra.mxu0 0.0
    %1048 = vmatprep.subr.mxu0 0.0
    %1049 = vmatpush1.msra.mxu0 0.0
    %1050 = vmatprep.subr.mxu0 0.0
    %1051 = vmatpush1.msra.mxu0 0.0
    %1052 = vmatprep.subr.mxu0 0.0
    %1053 = vmatpush1.msra.mxu0 0.0
    %1054 = vmatprep.subr.mxu0 0.0
    %1055 = vmatpush1.msra.mxu0 0.0
    %1056 = vmatprep.subr.mxu0 0.0
    %1057 = vmatpush1.msra.mxu0 0.0
    %1058 = vmatprep.subr.mxu0 0.0
    %1059 = vmatpush1.msra.mxu0 0.0
    %1060 = vmatprep.subr.mxu0 0.0
    %1061 = vmatpush1.msra.mxu0 0.0
    %1062 = vmatprep.subr.mxu0 0.0
    %1063 = vmatpush1.msra.mxu0 0.0
    %1064 = vmatprep.subr.mxu0 0.0
    %1065 = vmatpush1.msra.mxu0 0.0
    %1066 = vmatprep.subr.mxu0 0.0
    %1067 = vmatpush1.msra.mxu0 0.0
    %1068 = vmatprep.subr.mxu0 0.0
    %1069 = vmatpush1.msra.mxu0 0.0
    %1070 = vmatprep.subr.mxu0 0.0
    %1071 = vmatpush1.msra.mxu0 0.0
    %1072 = vmatprep.subr.mxu0 0.0
    %1073 = vmatpush1.msra.mxu0 0.0
    %1074 = vmatprep.subr.mxu0 0.0
    %1075 = vmatpush1.msra.mxu0 0.0
    %1076 = vmatprep.subr.mxu0 0.0
    %1077 = vmatpush1.msra.mxu0 0.0
    %1078 = vmatprep.subr.mxu0 0.0
    %1079 = vmatpush1.msra.mxu0 0.0
    %1080 = vmatprep.mubr.f32.mxu0 0.0
    %1081 = vmatmul.mubr.f32.gmra.mrb[0].mxu0 %v714
    %v1082 = vpop.f32.mrb[0].mxu0
    %v1083 = vadd.f32 0.0, %v1082
    %v1084 = vpop.f32.mrb[0].mxu0
    %1085 = vdwg.mxu0
    %v1086 = vadd.f32 %v1013, %v1083
    %v1087 = vadd.f32 %v1086, %v272
    %v1088 = vxor.u32 %v1087, 2147483648
    %v1089 = vmul.f32 %v1088, 1.442695
    %v1090 = vpow.pop %v1089
    %v1091 = vadd.f32 %v1090, 1.0
    %v1092 = vrcp.pop %v1091
    %v1093 = vmul.f32 1.0, %v1092
    %v1094 = vtanh.pop %v1087
    %v1095 = vmul.f32 %v1093, %v704
    %1097 = vrot.lane.b32.xlu0 %v1094, 64
    %v1098 = vpop.permute.xlu0 %1097
    %v1100 = vmul.f32 %v1093, %v1098
    %1102 = vrot.lane.b32.xlu0 %v1100, 32
    %v1103 = vpop.permute.xlu0 %1102
    %v1105 = vadd.f32 %v1095, %v1103
    %v1106 = vtanh.pop %v1105
    %1108 = vrot.lane.b32.xlu0 %v1106, 64
    %v1109 = vpop.permute.xlu0 %1108
    %v1111 = vmul.f32 %v1093, %v1109
    %1113 = vrot.lane.b32.xlu0 %v1111, 32
    %v1114 = vpop.permute.xlu0 %1113
    %v1115 = vsel %vm53, %v1114, 0
    %1117 = vmatprep.subr.mxu0 0.0
    %1118 = vmatpush1.xpose.msra.mxu0 %v305
    %1119 = vmatprep.subr.mxu0 0.0
    %1120 = vmatpush1.xpose.msra.mxu0 %v308
    %1121 = vmatprep.subr.mxu0 0.0
    %1122 = vmatpush1.xpose.msra.mxu0 0.0
    %1123 = vmatprep.subr.mxu0 0.0
    %1124 = vmatpush1.xpose.msra.mxu0 0.0
    %1125 = vmatprep.subr.mxu0 0.0
    %1126 = vmatpush1.xpose.msra.mxu0 0.0
    %1127 = vmatprep.subr.mxu0 0.0
    %1128 = vmatpush1.xpose.msra.mxu0 0.0
    %1129 = vmatprep.subr.mxu0 0.0
    %1130 = vmatpush1.xpose.msra.mxu0 0.0
    %1131 = vmatprep.subr.mxu0 0.0
    %1132 = vmatpush1.xpose.msra.mxu0 0.0
    %1133 = vmatprep.subr.mxu0 0.0
    %1134 = vmatpush1.xpose.msra.mxu0 0.0
    %1135 = vmatprep.subr.mxu0 0.0
    %1136 = vmatpush1.xpose.msra.mxu0 0.0
    %1137 = vmatprep.subr.mxu0 0.0
    %1138 = vmatpush1.xpose.msra.mxu0 0.0
    %1139 = vmatprep.subr.mxu0 0.0
    %1140 = vmatpush1.xpose.msra.mxu0 0.0
    %1141 = vmatprep.subr.mxu0 0.0
    %1142 = vmatpush1.xpose.msra.mxu0 0.0
    %1143 = vmatprep.subr.mxu0 0.0
    %1144 = vmatpush1.xpose.msra.mxu0 0.0
    %1145 = vmatprep.subr.mxu0 0.0
    %1146 = vmatpush1.xpose.msra.mxu0 0.0
    %1147 = vmatprep.subr.mxu0 0.0
    %1148 = vmatpush1.xpose.msra.mxu0 0.0
    %1149 = vmatprep.subr.mxu0 0.0
    %1150 = vmatpush1.xpose.msra.mxu0 0.0
    %1151 = vmatprep.subr.mxu0 0.0
    %1152 = vmatpush1.xpose.msra.mxu0 0.0
    %1153 = vmatprep.subr.mxu0 0.0
    %1154 = vmatpush1.xpose.msra.mxu0 0.0
    %1155 = vmatprep.subr.mxu0 0.0
    %1156 = vmatpush1.xpose.msra.mxu0 0.0
    %1157 = vmatprep.subr.mxu0 0.0
    %1158 = vmatpush1.xpose.msra.mxu0 0.0
    %1159 = vmatprep.subr.mxu0 0.0
    %1160 = vmatpush1.xpose.msra.mxu0 0.0
    %1161 = vmatprep.subr.mxu0 0.0
    %1162 = vmatpush1.xpose.msra.mxu0 0.0
    %1163 = vmatprep.subr.mxu0 0.0
    %1164 = vmatpush1.xpose.msra.mxu0 0.0
    %1165 = vmatprep.subr.mxu0 0.0
    %1166 = vmatpush1.xpose.msra.mxu0 0.0
    %1167 = vmatprep.subr.mxu0 0.0
    %1168 = vmatpush1.xpose.msra.mxu0 0.0
    %1169 = vmatprep.subr.mxu0 0.0
    %1170 = vmatpush1.xpose.msra.mxu0 0.0
    %1171 = vmatprep.subr.mxu0 0.0
    %1172 = vmatpush1.xpose.msra.mxu0 0.0
    %1173 = vmatprep.subr.mxu0 0.0
    %1174 = vmatpush1.xpose.msra.mxu0 0.0
    %1175 = vmatprep.subr.mxu0 0.0
    %1176 = vmatpush1.xpose.msra.mxu0 0.0
    %1177 = vmatprep.subr.mxu0 0.0
    %1178 = vmatpush1.xpose.msra.mxu0 0.0
    %1179 = vmatprep.subr.mxu0 0.0
    %1180 = vmatpush1.xpose.msra.mxu0 0.0
    %1181 = vmatprep.mubr.f32.mxu0 0.0
    %1182 = vmatmul.mubr.f32.gmra.mrb[0].mxu0 %v1115
    %v1183 = vpop.f32.mrb[0].mxu0
    %v1184 = vadd.f32 0.0, %v1183
    %v1185 = vpop.f32.mrb[0].mxu0
    %1186 = vdwg.mxu0
    %v1187 = vsel %vm42, %v1184, -1e+30
    %v1188 = vsel %vm381, %v1187, -inf
    %1189 = vmax.xlane.f32.xlu0 %v1188
    %v1190 = vpop.xlane.xlu0 %1189
    %v1191 = vsub.f32 %v1187, %v1190
    %v1192 = vmul.f32 %v1191, 1.442695
    %v1193 = vpow.pop %v1192
    %v1194 = vsel %vm42, %v1193, 0.0
    %v1195 = vsel %vm381, %v1194, 0.0
    %1196 = vadd.xlane.f32.xlu0 %v1195
    %v1197 = vpop.xlane.xlu0 %1196
    %v1198 = vadd.f32 %v1197, 1e-16
    %v1199 = vrcp.pop %v1198
    %v1200 = vmul.f32 %v1194, %v1199
    %v1202 = vsel %vm395, %v1200, 0
    %1204 = vmatprep.subr.mxu0 0.0
    %1205 = vmatpush1.msra.mxu0 %v33
    %1206 = vmatprep.subr.mxu0 0.0
    %1207 = vmatpush1.msra.mxu0 %v400
    %1208 = vmatprep.subr.mxu0 0.0
    %1209 = vmatpush1.msra.mxu0 0.0
    %1210 = vmatprep.subr.mxu0 0.0
    %1211 = vmatpush1.msra.mxu0 0.0
    %1212 = vmatprep.subr.mxu0 0.0
    %1213 = vmatpush1.msra.mxu0 0.0
    %1214 = vmatprep.subr.mxu0 0.0
    %1215 = vmatpush1.msra.mxu0 0.0
    %1216 = vmatprep.subr.mxu0 0.0
    %1217 = vmatpush1.msra.mxu0 0.0
    %1218 = vmatprep.subr.mxu0 0.0
    %1219 = vmatpush1.msra.mxu0 0.0
    %1220 = vmatprep.subr.mxu0 0.0
    %1221 = vmatpush1.msra.mxu0 0.0
    %1222 = vmatprep.subr.mxu0 0.0
    %1223 = vmatpush1.msra.mxu0 0.0
    %1224 = vmatprep.subr.mxu0 0.0
    %1225 = vmatpush1.msra.mxu0 0.0
    %1226 = vmatprep.subr.mxu0 0.0
    %1227 = vmatpush1.msra.mxu0 0.0
    %1228 = vmatprep.subr.mxu0 0.0
    %1229 = vmatpush1.msra.mxu0 0.0
    %1230 = vmatprep.subr.mxu0 0.0
    %1231 = vmatpush1.msra.mxu0 0.0
    %1232 = vmatprep.subr.mxu0 0.0
    %1233 = vmatpush1.msra.mxu0 0.0
    %1234 = vmatprep.subr.mxu0 0.0
    %1235 = vmatpush1.msra.mxu0 0.0
    %1236 = vmatprep.subr.mxu0 0.0
    %1237 = vmatpush1.msra.mxu0 0.0
    %1238 = vmatprep.subr.mxu0 0.0
    %1239 = vmatpush1.msra.mxu0 0.0
    %1240 = vmatprep.subr.mxu0 0.0
    %1241 = vmatpush1.msra.mxu0 0.0
    %1242 = vmatprep.subr.mxu0 0.0
    %1243 = vmatpush1.msra.mxu0 0.0
    %1244 = vmatprep.subr.mxu0 0.0
    %1245 = vmatpush1.msra.mxu0 0.0
    %1246 = vmatprep.subr.mxu0 0.0
    %1247 = vmatpush1.msra.mxu0 0.0
    %1248 = vmatprep.subr.mxu0 0.0
    %1249 = vmatpush1.msra.mxu0 0.0
    %1250 = vmatprep.subr.mxu0 0.0
    %1251 = vmatpush1.msra.mxu0 0.0
    %1252 = vmatprep.subr.mxu0 0.0
    %1253 = vmatpush1.msra.mxu0 0.0
    %1254 = vmatprep.subr.mxu0 0.0
    %1255 = vmatpush1.msra.mxu0 0.0
    %1256 = vmatprep.subr.mxu0 0.0
    %1257 = vmatpush1.msra.mxu0 0.0
    %1258 = vmatprep.subr.mxu0 0.0
    %1259 = vmatpush1.msra.mxu0 0.0
    %1260 = vmatprep.subr.mxu0 0.0
    %1261 = vmatpush1.msra.mxu0 0.0
    %1262 = vmatprep.subr.mxu0 0.0
    %1263 = vmatpush1.msra.mxu0 0.0
    %1264 = vmatprep.subr.mxu0 0.0
    %1265 = vmatpush1.msra.mxu0 0.0
    %1266 = vmatprep.subr.mxu0 0.0
    %1267 = vmatpush1.msra.mxu0 0.0
    %1268 = vmatprep.mubr.f32.mxu0 0.0
    %1269 = vmatmul.mubr.f32.gmra.mrb[0].mxu0 %v1202
    %v1270 = vpop.f32.mrb[0].mxu0
    %v1271 = vadd.f32 0.0, %v1270
    %v1272 = vpop.f32.mrb[0].mxu0
    %1273 = vdwg.mxu0
    %v1274 = vld [vmem:[%s5] sm:$0xff]
    %v1275 = vld [vmem:[%s5 + $0x8] sm:$0xff]
    %v1276 = vld [vmem:[%s5 + $0x10] sm:$0xff]
    %v1277 = vld [vmem:[%s5 + $0x18] sm:$0xff]
    %v1278 = vld [vmem:[%s5 + $0x20] sm:$0xff]
    %v1279 = vld [vmem:[%s5 + $0x28] sm:$0xff]
    %v1281 = vsel %vm53, %v1271, 0
    %1283 = vmatprep.subr.mxu0 0.0
    %1284 = vmatpush1.msra.mxu0 %v1277
    %1285 = vmatprep.subr.mxu0 0.0
    %1286 = vmatpush1.msra.mxu0 %v1278
    %1287 = vmatprep.subr.mxu0 0.0
    %1288 = vmatpush1.msra.mxu0 %v1279
    %1289 = vmatprep.subr.mxu0 0.0
    %1290 = vmatpush1.msra.mxu0 0.0
    %1291 = vmatprep.subr.mxu0 0.0
    %1292 = vmatpush1.msra.mxu0 0.0
    %1293 = vmatprep.subr.mxu0 0.0
    %1294 = vmatpush1.msra.mxu0 0.0
    %1295 = vmatprep.subr.mxu0 0.0
    %1296 = vmatpush1.msra.mxu0 0.0
    %1297 = vmatprep.subr.mxu0 0.0
    %1298 = vmatpush1.msra.mxu0 0.0
    %1299 = vmatprep.subr.mxu0 0.0
    %1300 = vmatpush1.msra.mxu0 0.0
    %1301 = vmatprep.subr.mxu0 0.0
    %1302 = vmatpush1.msra.mxu0 0.0
    %1303 = vmatprep.subr.mxu0 0.0
    %1304 = vmatpush1.msra.mxu0 0.0
    %1305 = vmatprep.subr.mxu0 0.0
    %1306 = vmatpush1.msra.mxu0 0.0
    %1307 = vmatprep.subr.mxu0 0.0
    %1308 = vmatpush1.msra.mxu0 0.0
    %1309 = vmatprep.subr.mxu0 0.0
    %1310 = vmatpush1.msra.mxu0 0.0
    %1311 = vmatprep.subr.mxu0 0.0
    %1312 = vmatpush1.msra.mxu0 0.0
    %1313 = vmatprep.subr.mxu0 0.0
    %1314 = vmatpush1.msra.mxu0 0.0
    %1315 = vmatprep.subr.mxu0 0.0
    %1316 = vmatpush1.msra.mxu0 0.0
    %1317 = vmatprep.subr.mxu0 0.0
    %1318 = vmatpush1.msra.mxu0 0.0
    %1319 = vmatprep.subr.mxu0 0.0
    %1320 = vmatpush1.msra.mxu0 0.0
    %1321 = vmatprep.subr.mxu0 0.0
    %1322 = vmatpush1.msra.mxu0 0.0
    %1323 = vmatprep.subr.mxu0 0.0
    %1324 = vmatpush1.msra.mxu0 0.0
    %1325 = vmatprep.subr.mxu0 0.0
    %1326 = vmatpush1.msra.mxu0 0.0
    %1327 = vmatprep.subr.mxu0 0.0
    %1328 = vmatpush1.msra.mxu0 0.0
    %1329 = vmatprep.subr.mxu0 0.0
    %1330 = vmatpush1.msra.mxu0 0.0
    %1331 = vmatprep.subr.mxu0 0.0
    %1332 = vmatpush1.msra.mxu0 0.0
    %1333 = vmatprep.subr.mxu0 0.0
    %1334 = vmatpush1.msra.mxu0 0.0
    %1335 = vmatprep.subr.mxu0 0.0
    %1336 = vmatpush1.msra.mxu0 0.0
    %1337 = vmatprep.subr.mxu0 0.0
    %1338 = vmatpush1.msra.mxu0 0.0
    %1339 = vmatprep.subr.mxu0 0.0
    %1340 = vmatpush1.msra.mxu0 0.0
    %1341 = vmatprep.subr.mxu0 0.0
    %1342 = vmatpush1.msra.mxu0 0.0
    %1343 = vmatprep.subr.mxu0 0.0
    %1344 = vmatpush1.msra.mxu0 0.0
    %1345 = vmatprep.subr.mxu0 0.0
    %1346 = vmatpush1.msra.mxu0 0.0
    %1347 = vmatprep.mubr.f32.mxu0 0.0
    %1348 = vmatmul.mubr.f32.gmra.mrb[0].mxu0 %v1281
    %v1349 = vpop.f32.mrb[0].mxu0
    %v1350 = vadd.f32 0.0, %v1349
    %v1351 = vpop.f32.mrb[0].mxu0
    %1352 = vdwg.mxu0
    %1353 = vmatprep.subr.mxu0 0.0
    %1354 = vmatpush1.msra.mxu0 %v1274
    %1355 = vmatprep.subr.mxu0 0.0
    %1356 = vmatpush1.msra.mxu0 %v1275
    %1357 = vmatprep.subr.mxu0 0.0
    %1358 = vmatpush1.msra.mxu0 %v1276
    %1359 = vmatprep.subr.mxu0 0.0
    %1360 = vmatpush1.msra.mxu0 0.0
    %1361 = vmatprep.subr.mxu0 0.0
    %1362 = vmatpush1.msra.mxu0 0.0
    %1363 = vmatprep.subr.mxu0 0.0
    %1364 = vmatpush1.msra.mxu0 0.0
    %1365 = vmatprep.subr.mxu0 0.0
    %1366 = vmatpush1.msra.mxu0 0.0
    %1367 = vmatprep.subr.mxu0 0.0
    %1368 = vmatpush1.msra.mxu0 0.0
    %1369 = vmatprep.subr.mxu0 0.0
    %1370 = vmatpush1.msra.mxu0 0.0
    %1371 = vmatprep.subr.mxu0 0.0
    %1372 = vmatpush1.msra.mxu0 0.0
    %1373 = vmatprep.subr.mxu0 0.0
    %1374 = vmatpush1.msra.mxu0 0.0
    %1375 = vmatprep.subr.mxu0 0.0
    %1376 = vmatpush1.msra.mxu0 0.0
    %1377 = vmatprep.subr.mxu0 0.0
    %1378 = vmatpush1.msra.mxu0 0.0
    %1379 = vmatprep.subr.mxu0 0.0
    %1380 = vmatpush1.msra.mxu0 0.0
    %1381 = vmatprep.subr.mxu0 0.0
    %1382 = vmatpush1.msra.mxu0 0.0
    %1383 = vmatprep.subr.mxu0 0.0
    %1384 = vmatpush1.msra.mxu0 0.0
    %1385 = vmatprep.subr.mxu0 0.0
    %1386 = vmatpush1.msra.mxu0 0.0
    %1387 = vmatprep.subr.mxu0 0.0
    %1388 = vmatpush1.msra.mxu0 0.0
    %1389 = vmatprep.subr.mxu0 0.0
    %1390 = vmatpush1.msra.mxu0 0.0
    %1391 = vmatprep.subr.mxu0 0.0
    %1392 = vmatpush1.msra.mxu0 0.0
    %1393 = vmatprep.subr.mxu0 0.0
    %1394 = vmatpush1.msra.mxu0 0.0
    %1395 = vmatprep.subr.mxu0 0.0
    %1396 = vmatpush1.msra.mxu0 0.0
    %1397 = vmatprep.subr.mxu0 0.0
    %1398 = vmatpush1.msra.mxu0 0.0
    %1399 = vmatprep.subr.mxu0 0.0
    %1400 = vmatpush1.msra.mxu0 0.0
    %1401 = vmatprep.subr.mxu0 0.0
    %1402 = vmatpush1.msra.mxu0 0.0
    %1403 = vmatprep.subr.mxu0 0.0
    %1404 = vmatpush1.msra.mxu0 0.0
    %1405 = vmatprep.subr.mxu0 0.0
    %1406 = vmatpush1.msra.mxu0 0.0
    %1407 = vmatprep.subr.mxu0 0.0
    %1408 = vmatpush1.msra.mxu0 0.0
    %1409 = vmatprep.subr.mxu0 0.0
    %1410 = vmatpush1.msra.mxu0 0.0
    %1411 = vmatprep.subr.mxu0 0.0
    %1412 = vmatpush1.msra.mxu0 0.0
    %1413 = vmatprep.subr.mxu0 0.0
    %1414 = vmatpush1.msra.mxu0 0.0
    %1415 = vmatprep.subr.mxu0 0.0
    %1416 = vmatpush1.msra.mxu0 0.0
    %1417 = vmatprep.mubr.f32.mxu0 0.0
    %1418 = vmatmul.mubr.f32.gmra.mrb[0].mxu0 %v1115
    %v1419 = vpop.f32.mrb[0].mxu0
    %v1420 = vadd.f32 %v1350, %v1419
    %v1421 = vpop.f32.mrb[0].mxu0
    %1422 = vdwg.mxu0
    %v1423 = vld [vmem:[%s6] sm:$0x1]
    %v1425 = vlaneseq
    %v1426 = vshrl.u32 %v1425, 7
    %v1427 = vsub.s32 0, %v1426
    %v1428 = vrot.slane %v1423, %v1427
    %v1430 = vadd.f32 %v1420, %v1428
    %v1431 = vmax.f32 %v1430, 0.0
    %v1432 = vld [vmem:[%s7] sm:$0xff]
    %v1433 = vld [vmem:[%s8] sm:$0x1]
    %v1435 = vlaneseq
    %v1436 = vshrl.u32 %v1435, 7
    %v1437 = vsub.s32 0, %v1436
    %v1438 = vrot.slane %v1433, %v1437
    %vm1440 = vcmask 64512
    %v1442 = vsel %vm1440, %v1431, 0
    %1444 = vmatprep.subr.mxu0 0.0
    %1445 = vmatpush1.msra.mxu0 %v1432
    %1446 = vmatprep.subr.mxu0 0.0
    %1447 = vmatpush1.msra.mxu0 0.0
    %1448 = vmatprep.subr.mxu0 0.0
    %1449 = vmatpush1.msra.mxu0 0.0
    %1450 = vmatprep.subr.mxu0 0.0
    %1451 = vmatpush1.msra.mxu0 0.0
    %1452 = vmatprep.subr.mxu0 0.0
    %1453 = vmatpush1.msra.mxu0 0.0
    %1454 = vmatprep.subr.mxu0 0.0
    %1455 = vmatpush1.msra.mxu0 0.0
    %1456 = vmatprep.subr.mxu0 0.0
    %1457 = vmatpush1.msra.mxu0 0.0
    %1458 = vmatprep.subr.mxu0 0.0
    %1459 = vmatpush1.msra.mxu0 0.0
    %1460 = vmatprep.subr.mxu0 0.0
    %1461 = vmatpush1.msra.mxu0 0.0
    %1462 = vmatprep.subr.mxu0 0.0
    %1463 = vmatpush1.msra.mxu0 0.0
    %1464 = vmatprep.subr.mxu0 0.0
    %1465 = vmatpush1.msra.mxu0 0.0
    %1466 = vmatprep.subr.mxu0 0.0
    %1467 = vmatpush1.msra.mxu0 0.0
    %1468 = vmatprep.subr.mxu0 0.0
    %1469 = vmatpush1.msra.mxu0 0.0
    %1470 = vmatprep.subr.mxu0 0.0
    %1471 = vmatpush1.msra.mxu0 0.0
    %1472 = vmatprep.subr.mxu0 0.0
    %1473 = vmatpush1.msra.mxu0 0.0
    %1474 = vmatprep.subr.mxu0 0.0
    %1475 = vmatpush1.msra.mxu0 0.0
    %1476 = vmatprep.subr.mxu0 0.0
    %1477 = vmatpush1.msra.mxu0 0.0
    %1478 = vmatprep.subr.mxu0 0.0
    %1479 = vmatpush1.msra.mxu0 0.0
    %1480 = vmatprep.subr.mxu0 0.0
    %1481 = vmatpush1.msra.mxu0 0.0
    %1482 = vmatprep.subr.mxu0 0.0
    %1483 = vmatpush1.msra.mxu0 0.0
    %1484 = vmatprep.subr.mxu0 0.0
    %1485 = vmatpush1.msra.mxu0 0.0
    %1486 = vmatprep.subr.mxu0 0.0
    %1487 = vmatpush1.msra.mxu0 0.0
    %1488 = vmatprep.subr.mxu0 0.0
    %1489 = vmatpush1.msra.mxu0 0.0
    %1490 = vmatprep.subr.mxu0 0.0
    %1491 = vmatpush1.msra.mxu0 0.0
    %1492 = vmatprep.subr.mxu0 0.0
    %1493 = vmatpush1.msra.mxu0 0.0
    %1494 = vmatprep.subr.mxu0 0.0
    %1495 = vmatpush1.msra.mxu0 0.0
    %1496 = vmatprep.subr.mxu0 0.0
    %1497 = vmatpush1.msra.mxu0 0.0
    %1498 = vmatprep.subr.mxu0 0.0
    %1499 = vmatpush1.msra.mxu0 0.0
    %1500 = vmatprep.subr.mxu0 0.0
    %1501 = vmatpush1.msra.mxu0 0.0
    %1502 = vmatprep.subr.mxu0 0.0
    %1503 = vmatpush1.msra.mxu0 0.0
    %1504 = vmatprep.subr.mxu0 0.0
    %1505 = vmatpush1.msra.mxu0 0.0
    %1506 = vmatprep.subr.mxu0 0.0
    %1507 = vmatpush1.msra.mxu0 0.0
    %1508 = vmatprep.mubr.f32.mxu0 0.0
    %1509 = vmatmul.mubr.f32.gmra.mrb[0].mxu0 %v1442
    %v1510 = vpop.f32.mrb[0].mxu0
    %v1511 = vadd.f32 %v1438, %v1510
    %v1512 = vpop.f32.mrb[0].mxu0
    %1513 = vdwg.mxu0
    %vm1514 = vcmask 9216
    %1515 = vst.msk [vmem:[#allocation2] sm:$0x3] %vm1514, %v1511
    // Predicated region
    $region38: #{nnconvnet_forward.3} parent=1 // pred_check
      _
    $region39: #{nnconvnet_forward.3} parent=1 // pred_check_branch
      %1517 = sbr.rel (0) target = $region41
    $region40: #{nnconvnet_forward.3} parent=1 // pred_region
      %s1519 = ssub.s32 32, 32
      %1520 = vsyncadd [#allocation3], %s1519
      %s1522 = sshll.u32 [#allocation2], 4
      %s1523 = int_to_ptr.vmem [resolvable:$true] %s1522
      %1525 = dma.vmem_to_hbm [thread:$0]  %s1523, 32, %s9, [#allocation3]
    $region41: #{nnconvnet_forward.3} parent=1 // pred_fallthru
      _
    // Predicated region
    $region42: #{nnconvnet_forward.3} parent=1 // pred_check
      _
    $region43: #{nnconvnet_forward.3} parent=1 // pred_check_branch
      %1527 = sbr.rel (0) target = $region45
    $region44: #{nnconvnet_forward.3} parent=1 // pred_region
      %1528 = dma.done [#allocation3], 32
    $region45: #{nnconvnet_forward.3} parent=1 // pred_fallthru
      _
    %1529 = vsyncpa [#allocation3], 1

// kernel: nnconvnet_forward.2
$region0: #{nnconvnet_forward.2}
  #allocation0 [shape = 'u32[]', space=smem, size = 0x4, offset = 0x4, fixed_abs, tag = 'smem constant byte address 0x4 - core index']
  #allocation1 [shape = 'u32[144,128]{1,0:T(1,128)}', space=vmem, size = 0x12000, scoped, tag = 'internal scratch']
  #allocation2 [shape = 'f32[12,24]{1,0:T(8,128)}', space=vmem, size = 0x2000, scoped, tag = 'scratch operand']
  #allocation3 [shape = 'f32[12,25]{1,0:T(8,128)}', space=vmem, size = 0x2000, scoped, tag = 'scratch operand']
  %s0 = inlined_call_operand.vmem [shape: f32[12,24], index: 0, kind: input, shape index: {}]
  %s1 = inlined_call_operand.vmem [shape: f32[16,6], index: 1, kind: input, shape index: {}]
  %s2 = inlined_call_operand.vmem [shape: s32[16,1], index: 2, kind: input, shape index: {}]
  %s3 = inlined_call_operand.vmem [shape: s32[1,16], index: 3, kind: input, shape index: {}]
  %s4 = inlined_call_operand.vmem [shape: f32[6,32], index: 4, kind: input, shape index: {}]
  %s5 = inlined_call_operand.vmem [shape: f32[1,32], index: 5, kind: input, shape index: {}]
  %s6 = inlined_call_operand.vmem [shape: f32[32,640], index: 6, kind: input, shape index: {}]
  %s7 = inlined_call_operand.vmem [shape: f32[1,640], index: 7, kind: input, shape index: {}]
  %s8 = inlined_call_operand.vmem [shape: f32[24,24], index: 8, kind: input, shape index: {}]
  %s9 = inlined_call_operand.vmem [shape: f32[1,24], index: 9, kind: input, shape index: {}]
  %s10 = inlined_call_operand.vmem [shape: bf16[24,640], index: 10, kind: input, shape index: {}]
  %s11 = inlined_call_operand.vmem [shape: f32[24,640], index: 11, kind: input, shape index: {}]
  %s12 = inlined_call_operand.vmem [shape: f32[12,24], index: 12, kind: output, shape index: {}]
  %s13 = sld [smem:[#allocation0]]
  $region101: #{nnconvnet_forward.2} parent=0
    _
  %s15 = ssub.s32 1, %s13
  %s16 = scalar_select 0, %s15, %s13
  loop: start=0, step=1, limit=4
  $region2: #{nnconvnet_forward.2} parent=0 // loop_pre_header
    _
  $region3: #{nnconvnet_forward.2} parent=0 // loop_header
    %s18 = sphi 0, %s22
    %p19 = scmp.ge.s32.totalorder %s18, 4
    %s25 = sphi 0, %s37
    %s26 = sphi 0, %s33
    %s27 = sphi 0, %s25
    %s28 = sphi 0, %s26
    %s29 = sphi 0, %s27
    %s30 = sphi 0, %s28
    %s38 = sphi 0, %s38
    %s40 = sphi 0, %s38
    %s41 = sphi 0, %s40
    %s55 = sphi 0, %s41
    %s61 = sphi 0, %s63
    %s64 = sphi 0, %s61
    %s65 = sphi 0, %s64
    %s81 = sphi 0, %s65
    %s87 = sphi 0, %s89
    %s90 = sphi 0, %s87
    %s91 = sphi 0, %s90
    %s107 = sphi 0, %s91
    %s113 = sphi 0, %s115
    %s116 = sphi 0, %s113
    %s117 = sphi 0, %s116
    %s133 = sphi 0, %s117
    %s137 = sphi 0, %s137
    %s139 = sphi 0, %s137
    %s140 = sphi 0, %s139
    %s154 = sphi 0, %s140
    %s158 = sphi 0, %s158
    %s160 = sphi 0, %s158
    %s161 = sphi 0, %s160
    %s175 = sphi 0, %s161
    %s179 = sphi 0, %s179
    %s181 = sphi 0, %s179
    %s182 = sphi 0, %s181
    %s196 = sphi 0, %s182
    %s200 = sphi 0, %s200
    %s202 = sphi 0, %s200
    %s203 = sphi 0, %s202
    %s217 = sphi 0, %s203
    %s221 = sphi 0, %s221
    %s223 = sphi 0, %s221
    %s224 = sphi 0, %s223
    %s238 = sphi 0, %s224
    %s242 = sphi 0, %s242
    %s244 = sphi 0, %s242
    %s245 = sphi 0, %s244
    %s259 = sphi 0, %s245
    %s263 = sphi 0, %s263
    %s265 = sphi 0, %s263
    %s266 = sphi 0, %s265
    %s280 = sphi 0, %s266
    %s284 = sphi 0, %s284
    %s286 = sphi 0, %s284
    %s287 = sphi 0, %s286
    %s301 = sphi 0, %s287
    %s305 = sphi 0, %s305
    %s307 = sphi 0, %s305
    %s308 = sphi 0, %s307
    %s322 = sphi 0, %s308
  $region4: #{nnconvnet_forward.2} parent=0 // loop_header_branch
    %21 = sbr.rel (%p19) target = $region8
  $region5: #{nnconvnet_forward.2} parent=0 // loop_body
    %s23 = ssub.s32 %s18, 1
    %s24 = ssub.s32 %s18, 2
    %s31 = sadd.s32 1, %s26
    %p32 = scmp.ge.s32.totalorder %s31, 1
    %s33 = scalar_select %p32, 0, %s31
    %s34 = sadd.s32 1, %s25
    %s35 = scalar_select %p32, %s34, %s25
    %p36 = scmp.ge.s32.totalorder %s35, 2
    %s37 = scalar_select %p36, 0, %s35
    %s39 = sadd.s32 %s38, 1
    %p42 = scmp.eq.s32.totalorder %s18, 1
    %p43 = scmp.ne.s32.totalorder %s38, %s40
    %p44 = scmp.eq.s32.totalorder %s18, 0
    %p45 = por %p43, %p44
    %p46 = scmp.ne.s32.totalorder %s38, %s40
    %p47 = scmp.eq.s32.totalorder %s23, 1
    %p48 = por %p46, %p47
    %p49 = scmp.ne.s32.totalorder %s40, %s41
    %p50 = scmp.eq.s32.totalorder %s23, 0
    %p51 = por %p49, %p50
    %p52 = scmp.ne.s32.totalorder %s40, %s41
    %p53 = scmp.eq.s32.totalorder %s24, 1
    %p54 = por %p52, %p53
    %p56 = scmp.ne.s32.totalorder %s41, %s55
    %p57 = scmp.eq.s32.totalorder %s24, 0
    %p58 = por %p56, %p57
    %s59 = ssub.s32 %s26, %s33
    %p60 = scmp.eq.s32.totalorder %s59, 0
    %s62 = sadd.s32 %s61, 1
    %s63 = scalar_select %p60, %s61, %s62
    %p66 = pneg %p60
    %p67 = scmp.eq.s32.totalorder %s18, 1
    %p68 = por %p66, %p67
    %p69 = scmp.ne.s32.totalorder %s61, %s64
    %p70 = scmp.eq.s32.totalorder %s18, 0
    %p71 = por %p69, %p70
    %p72 = scmp.ne.s32.totalorder %s61, %s64
    %p73 = scmp.eq.s32.totalorder %s23, 1
    %p74 = por %p72, %p73
    %p75 = scmp.ne.s32.totalorder %s64, %s65
    %p76 = scmp.eq.s32.totalorder %s23, 0
    %p77 = por %p75, %p76
    %p78 = scmp.ne.s32.totalorder %s64, %s65
    %p79 = scmp.eq.s32.totalorder %s24, 1
    %p80 = por %p78, %p79
    %p82 = scmp.ne.s32.totalorder %s65, %s81
    %p83 = scmp.eq.s32.totalorder %s24, 0
    %p84 = por %p82, %p83
    %s85 = ssub.s32 %s26, %s33
    %p86 = scmp.eq.s32.totalorder %s85, 0
    %s88 = sadd.s32 %s87, 1
    %s89 = scalar_select %p86, %s87, %s88
    %p92 = pneg %p86
    %p93 = scmp.eq.s32.totalorder %s18, 1
    %p94 = por %p92, %p93
    %p95 = scmp.ne.s32.totalorder %s87, %s90
    %p96 = scmp.eq.s32.totalorder %s18, 0
    %p97 = por %p95, %p96
    %p98 = scmp.ne.s32.totalorder %s87, %s90
    %p99 = scmp.eq.s32.totalorder %s23, 1
    %p100 = por %p98, %p99
    %p101 = scmp.ne.s32.totalorder %s90, %s91
    %p102 = scmp.eq.s32.totalorder %s23, 0
    %p103 = por %p101, %p102
    %p104 = scmp.ne.s32.totalorder %s90, %s91
    %p105 = scmp.eq.s32.totalorder %s24, 1
    %p106 = por %p104, %p105
    %p108 = scmp.ne.s32.totalorder %s91, %s107
    %p109 = scmp.eq.s32.totalorder %s24, 0
    %p110 = por %p108, %p109
    %s111 = ssub.s32 %s26, %s33
    %p112 = scmp.eq.s32.totalorder %s111, 0
    %s114 = sadd.s32 %s113, 1
    %s115 = scalar_select %p112, %s113, %s114
    %p118 = pneg %p112
    %p119 = scmp.eq.s32.totalorder %s18, 1
    %p120 = por %p118, %p119
    %p121 = scmp.ne.s32.totalorder %s113, %s116
    %p122 = scmp.eq.s32.totalorder %s18, 0
    %p123 = por %p121, %p122
    %p124 = scmp.ne.s32.totalorder %s113, %s116
    %p125 = scmp.eq.s32.totalorder %s23, 1
    %p126 = por %p124, %p125
    %p127 = scmp.ne.s32.totalorder %s116, %s117
    %p128 = scmp.eq.s32.totalorder %s23, 0
    %p129 = por %p127, %p128
    %p130 = scmp.ne.s32.totalorder %s116, %s117
    %p131 = scmp.eq.s32.totalorder %s24, 1
    %p132 = por %p130, %p131
    %p134 = scmp.ne.s32.totalorder %s117, %s133
    %p135 = scmp.eq.s32.totalorder %s24, 0
    %p136 = por %p134, %p135
    %s138 = sadd.s32 %s137, 1
    %p141 = scmp.eq.s32.totalorder %s18, 1
    %p142 = scmp.ne.s32.totalorder %s137, %s139
    %p143 = scmp.eq.s32.totalorder %s18, 0
    %p144 = por %p142, %p143
    %p145 = scmp.ne.s32.totalorder %s137, %s139
    %p146 = scmp.eq.s32.totalorder %s23, 1
    %p147 = por %p145, %p146
    %p148 = scmp.ne.s32.totalorder %s139, %s140
    %p149 = scmp.eq.s32.totalorder %s23, 0
    %p150 = por %p148, %p149
    %p151 = scmp.ne.s32.totalorder %s139, %s140
    %p152 = scmp.eq.s32.totalorder %s24, 1
    %p153 = por %p151, %p152
    %p155 = scmp.ne.s32.totalorder %s140, %s154
    %p156 = scmp.eq.s32.totalorder %s24, 0
    %p157 = por %p155, %p156
    %s159 = sadd.s32 %s158, 1
    %p162 = scmp.eq.s32.totalorder %s18, 1
    %p163 = scmp.ne.s32.totalorder %s158, %s160
    %p164 = scmp.eq.s32.totalorder %s18, 0
    %p165 = por %p163, %p164
    %p166 = scmp.ne.s32.totalorder %s158, %s160
    %p167 = scmp.eq.s32.totalorder %s23, 1
    %p168 = por %p166, %p167
    %p169 = scmp.ne.s32.totalorder %s160, %s161
    %p170 = scmp.eq.s32.totalorder %s23, 0
    %p171 = por %p169, %p170
    %p172 = scmp.ne.s32.totalorder %s160, %s161
    %p173 = scmp.eq.s32.totalorder %s24, 1
    %p174 = por %p172, %p173
    %p176 = scmp.ne.s32.totalorder %s161, %s175
    %p177 = scmp.eq.s32.totalorder %s24, 0
    %p178 = por %p176, %p177
    %s180 = sadd.s32 %s179, 1
    %p183 = scmp.eq.s32.totalorder %s18, 1
    %p184 = scmp.ne.s32.totalorder %s179, %s181
    %p185 = scmp.eq.s32.totalorder %s18, 0
    %p186 = por %p184, %p185
    %p187 = scmp.ne.s32.totalorder %s179, %s181
    %p188 = scmp.eq.s32.totalorder %s23, 1
    %p189 = por %p187, %p188
    %p190 = scmp.ne.s32.totalorder %s181, %s182
    %p191 = scmp.eq.s32.totalorder %s23, 0
    %p192 = por %p190, %p191
    %p193 = scmp.ne.s32.totalorder %s181, %s182
    %p194 = scmp.eq.s32.totalorder %s24, 1
    %p195 = por %p193, %p194
    %p197 = scmp.ne.s32.totalorder %s182, %s196
    %p198 = scmp.eq.s32.totalorder %s24, 0
    %p199 = por %p197, %p198
    %s201 = sadd.s32 %s200, 1
    %p204 = scmp.eq.s32.totalorder %s18, 1
    %p205 = scmp.ne.s32.totalorder %s200, %s202
    %p206 = scmp.eq.s32.totalorder %s18, 0
    %p207 = por %p205, %p206
    %p208 = scmp.ne.s32.totalorder %s200, %s202
    %p209 = scmp.eq.s32.totalorder %s23, 1
    %p210 = por %p208, %p209
    %p211 = scmp.ne.s32.totalorder %s202, %s203
    %p212 = scmp.eq.s32.totalorder %s23, 0
    %p213 = por %p211, %p212
    %p214 = scmp.ne.s32.totalorder %s202, %s203
    %p215 = scmp.eq.s32.totalorder %s24, 1
    %p216 = por %p214, %p215
    %p218 = scmp.ne.s32.totalorder %s203, %s217
    %p219 = scmp.eq.s32.totalorder %s24, 0
    %p220 = por %p218, %p219
    %s222 = sadd.s32 %s221, 1
    %p225 = scmp.eq.s32.totalorder %s18, 1
    %p226 = scmp.ne.s32.totalorder %s221, %s223
    %p227 = scmp.eq.s32.totalorder %s18, 0
    %p228 = por %p226, %p227
    %p229 = scmp.ne.s32.totalorder %s221, %s223
    %p230 = scmp.eq.s32.totalorder %s23, 1
    %p231 = por %p229, %p230
    %p232 = scmp.ne.s32.totalorder %s223, %s224
    %p233 = scmp.eq.s32.totalorder %s23, 0
    %p234 = por %p232, %p233
    %p235 = scmp.ne.s32.totalorder %s223, %s224
    %p236 = scmp.eq.s32.totalorder %s24, 1
    %p237 = por %p235, %p236
    %p239 = scmp.ne.s32.totalorder %s224, %s238
    %p240 = scmp.eq.s32.totalorder %s24, 0
    %p241 = por %p239, %p240
    %s243 = sadd.s32 %s242, 1
    %p246 = scmp.eq.s32.totalorder %s18, 1
    %p247 = scmp.ne.s32.totalorder %s242, %s244
    %p248 = scmp.eq.s32.totalorder %s18, 0
    %p249 = por %p247, %p248
    %p250 = scmp.ne.s32.totalorder %s242, %s244
    %p251 = scmp.eq.s32.totalorder %s23, 1
    %p252 = por %p250, %p251
    %p253 = scmp.ne.s32.totalorder %s244, %s245
    %p254 = scmp.eq.s32.totalorder %s23, 0
    %p255 = por %p253, %p254
    %p256 = scmp.ne.s32.totalorder %s244, %s245
    %p257 = scmp.eq.s32.totalorder %s24, 1
    %p258 = por %p256, %p257
    %p260 = scmp.ne.s32.totalorder %s245, %s259
    %p261 = scmp.eq.s32.totalorder %s24, 0
    %p262 = por %p260, %p261
    %s264 = sadd.s32 %s263, 1
    %p267 = scmp.eq.s32.totalorder %s18, 1
    %p268 = scmp.ne.s32.totalorder %s263, %s265
    %p269 = scmp.eq.s32.totalorder %s18, 0
    %p270 = por %p268, %p269
    %p271 = scmp.ne.s32.totalorder %s263, %s265
    %p272 = scmp.eq.s32.totalorder %s23, 1
    %p273 = por %p271, %p272
    %p274 = scmp.ne.s32.totalorder %s265, %s266
    %p275 = scmp.eq.s32.totalorder %s23, 0
    %p276 = por %p274, %p275
    %p277 = scmp.ne.s32.totalorder %s265, %s266
    %p278 = scmp.eq.s32.totalorder %s24, 1
    %p279 = por %p277, %p278
    %p281 = scmp.ne.s32.totalorder %s266, %s280
    %p282 = scmp.eq.s32.totalorder %s24, 0
    %p283 = por %p281, %p282
    %s285 = sadd.s32 %s284, 1
    %p288 = scmp.eq.s32.totalorder %s18, 1
    %p289 = scmp.ne.s32.totalorder %s284, %s286
    %p290 = scmp.eq.s32.totalorder %s18, 0
    %p291 = por %p289, %p290
    %p292 = scmp.ne.s32.totalorder %s284, %s286
    %p293 = scmp.eq.s32.totalorder %s23, 1
    %p294 = por %p292, %p293
    %p295 = scmp.ne.s32.totalorder %s286, %s287
    %p296 = scmp.eq.s32.totalorder %s23, 0
    %p297 = por %p295, %p296
    %p298 = scmp.ne.s32.totalorder %s286, %s287
    %p299 = scmp.eq.s32.totalorder %s24, 1
    %p300 = por %p298, %p299
    %p302 = scmp.ne.s32.totalorder %s287, %s301
    %p303 = scmp.eq.s32.totalorder %s24, 0
    %p304 = por %p302, %p303
    %s306 = sadd.s32 %s305, 1
    %p309 = scmp.eq.s32.totalorder %s18, 1
    %p310 = scmp.ne.s32.totalorder %s305, %s307
    %p311 = scmp.eq.s32.totalorder %s18, 0
    %p312 = por %p310, %p311
    %p313 = scmp.ne.s32.totalorder %s305, %s307
    %p314 = scmp.eq.s32.totalorder %s23, 1
    %p315 = por %p313, %p314
    %p316 = scmp.ne.s32.totalorder %s307, %s308
    %p317 = scmp.eq.s32.totalorder %s23, 0
    %p318 = por %p316, %p317
    %p319 = scmp.ne.s32.totalorder %s307, %s308
    %p320 = scmp.eq.s32.totalorder %s24, 1
    %p321 = por %p319, %p320
    %p323 = scmp.ne.s32.totalorder %s308, %s322
    %p324 = scmp.eq.s32.totalorder %s24, 0
    %p325 = por %p323, %p324
    %p326 = scmp.le.s32.totalorder 1, %s18
    %p327 = scmp.lt.s32.totalorder %s18, 3
    %p328 = pnand %p326, %p327
    %p329 = pneg %p328
    // Predicated region
    $region9: #{nnconvnet_forward.2} parent=5 // pred_check
      _
    $region10: #{nnconvnet_forward.2} parent=5 // pred_check_branch
      %331 = sbr.rel (%p328) target = $region12
    $region11: #{nnconvnet_forward.2} parent=5 // pred_region
      %s332 = ssub.s32 %s18, 1
      // Predicated region
      $region13: #{nnconvnet_forward.2} parent=11 // pred_check
        %p333 = pneg %p51
      $region14: #{nnconvnet_forward.2} parent=11 // pred_check_branch
        %335 = sbr.rel (%p333) target = $region16
      $region15: #{nnconvnet_forward.2} parent=11 // pred_region
        _
      $region16: #{nnconvnet_forward.2} parent=11 // pred_fallthru
        _
      // Predicated region
      $region17: #{nnconvnet_forward.2} parent=11 // pred_check
        %p336 = pneg %p77
      $region18: #{nnconvnet_forward.2} parent=11 // pred_check_branch
        %338 = sbr.rel (%p336) target = $region20
      $region19: #{nnconvnet_forward.2} parent=11 // pred_region
        %s339 = smul.u32 2, %s28
        %p340 = scmp.lt.s32.totalorder %s339, 1
        %s341 = scalar_select %p340, %s339, 1
        %s342 = smul.addr %s341, 8
        %s343 = scalar_lea.vmem %s1, %s342
        %s344 = smul.u32 2, %s28
      $region20: #{nnconvnet_forward.2} parent=11 // pred_fallthru
        _
      // Predicated region
      $region21: #{nnconvnet_forward.2} parent=11 // pred_check
        %p345 = pneg %p103
      $region22: #{nnconvnet_forward.2} parent=11 // pred_check_branch
        %347 = sbr.rel (%p345) target = $region24
      $region23: #{nnconvnet_forward.2} parent=11 // pred_region
        %s348 = smul.u32 2, %s28
        %p349 = scmp.lt.s32.totalorder %s348, 1
        %s350 = scalar_select %p349, %s348, 1
        %s351 = smul.addr %s350, 8
        %s352 = scalar_lea.vmem %s2, %s351
        %s353 = smul.u32 2, %s28
      $region24: #{nnconvnet_forward.2} parent=11 // pred_fallthru
        _
      // Predicated region
      $region25: #{nnconvnet_forward.2} parent=11 // pred_check
        %p354 = pneg %p129
      $region26: #{nnconvnet_forward.2} parent=11 // pred_check_branch
        %356 = sbr.rel (%p354) target = $region28
      $region27: #{nnconvnet_forward.2} parent=11 // pred_region
        %p357 = scmp.lt.s32.totalorder %s28, 0
        %s358 = scalar_select %p357, %s28, 0
        %s359 = scalar_lea.vmem %s3, %s358
      $region28: #{nnconvnet_forward.2} parent=11 // pred_fallthru
        _
      // Predicated region
      $region29: #{nnconvnet_forward.2} parent=11 // pred_check
        %p360 = pneg %p150
      $region30: #{nnconvnet_forward.2} parent=11 // pred_check_branch
        %362 = sbr.rel (%p360) target = $region32
      $region31: #{nnconvnet_forward.2} parent=11 // pred_region
        _
      $region32: #{nnconvnet_forward.2} parent=11 // pred_fallthru
        _
      // Predicated region
      $region33: #{nnconvnet_forward.2} parent=11 // pred_check
        %p363 = pneg %p171
      $region34: #{nnconvnet_forward.2} parent=11 // pred_check_branch
        %365 = sbr.rel (%p363) target = $region36
      $region35: #{nnconvnet_forward.2} parent=11 // pred_region
        _
      $region36: #{nnconvnet_forward.2} parent=11 // pred_fallthru
        _
      // Predicated region
      $region37: #{nnconvnet_forward.2} parent=11 // pred_check
        %p366 = pneg %p192
      $region38: #{nnconvnet_forward.2} parent=11 // pred_check_branch
        %368 = sbr.rel (%p366) target = $region40
      $region39: #{nnconvnet_forward.2} parent=11 // pred_region
        _
      $region40: #{nnconvnet_forward.2} parent=11 // pred_fallthru
        _
      // Predicated region
      $region41: #{nnconvnet_forward.2} parent=11 // pred_check
        %p369 = pneg %p213
      $region42: #{nnconvnet_forward.2} parent=11 // pred_check_branch
        %371 = sbr.rel (%p369) target = $region44
      $region43: #{nnconvnet_forward.2} parent=11 // pred_region
        _
      $region44: #{nnconvnet_forward.2} parent=11 // pred_fallthru
        _
      // Predicated region
      $region45: #{nnconvnet_forward.2} parent=11 // pred_check
        %p372 = pneg %p234
      $region46: #{nnconvnet_forward.2} parent=11 // pred_check_branch
        %374 = sbr.rel (%p372) target = $region48
      $region47: #{nnconvnet_forward.2} parent=11 // pred_region
        _
      $region48: #{nnconvnet_forward.2} parent=11 // pred_fallthru
        _
      // Predicated region
      $region49: #{nnconvnet_forward.2} parent=11 // pred_check
        %p375 = pneg %p255
      $region50: #{nnconvnet_forward.2} parent=11 // pred_check_branch
        %377 = sbr.rel (%p375) target = $region52
      $region51: #{nnconvnet_forward.2} parent=11 // pred_region
        _
      $region52: #{nnconvnet_forward.2} parent=11 // pred_fallthru
        _
      // Predicated region
      $region53: #{nnconvnet_forward.2} parent=11 // pred_check
        %p378 = pneg %p276
      $region54: #{nnconvnet_forward.2} parent=11 // pred_check_branch
        %380 = sbr.rel (%p378) target = $region56
      $region55: #{nnconvnet_forward.2} parent=11 // pred_region
        _
      $region56: #{nnconvnet_forward.2} parent=11 // pred_fallthru
        _
      // Predicated region
      $region57: #{nnconvnet_forward.2} parent=11 // pred_check
        %p381 = pneg %p297
      $region58: #{nnconvnet_forward.2} parent=11 // pred_check_branch
        %383 = sbr.rel (%p381) target = $region60
      $region59: #{nnconvnet_forward.2} parent=11 // pred_region
        _
      $region60: #{nnconvnet_forward.2} parent=11 // pred_fallthru
        _
    $region12: #{nnconvnet_forward.2} parent=5 // pred_fallthru
      _
    %p384 = scmp.lt.s32.totalorder %s18, 2
    // Predicated region
    $region61: #{nnconvnet_forward.2} parent=5 // pred_check
      %p385 = pneg %p384
    $region62: #{nnconvnet_forward.2} parent=5 // pred_check_branch
      %387 = sbr.rel (%p385) target = $region64
    $region63: #{nnconvnet_forward.2} parent=5 // pred_region
      _
    $region64: #{nnconvnet_forward.2} parent=5 // pred_fallthru
      _
    %p388 = scmp.le.s32.totalorder 1, %s18
    %p389 = scmp.lt.s32.totalorder %s18, 3
    %p390 = pnand %p388, %p389
    %p391 = pneg %p390
    // Predicated region
    $region65: #{nnconvnet_forward.2} parent=5 // pred_check
      _
    $region66: #{nnconvnet_forward.2} parent=5 // pred_check_branch
      %393 = sbr.rel (%p390) target = $region68
    $region67: #{nnconvnet_forward.2} parent=5 // pred_region
      %s394 = ssub.s32 %s18, 1
      %p395 = pneg %p51
      %p396 = pneg %p48
      %s397 = smul.u32 2, %s28
      %p398 = scmp.lt.s32.totalorder %s397, 1
      %s399 = scalar_select %p398, %s397, 1
      %s400 = smul.addr %s399, 8
      %s401 = scalar_lea.vmem %s1, %s400
      %p402 = pneg %p77
      %p403 = pneg %p74
      %s404 = smul.u32 2, %s28
      %p405 = scmp.lt.s32.totalorder %s404, 1
      %s406 = scalar_select %p405, %s404, 1
      %s407 = smul.addr %s406, 8
      %s408 = scalar_lea.vmem %s2, %s407
      %p409 = pneg %p103
      %p410 = pneg %p100
      %p411 = scmp.lt.s32.totalorder %s28, 0
      %s412 = scalar_select %p411, %s28, 0
      %s413 = scalar_lea.vmem %s3, %s412
      %p414 = pneg %p129
      %p415 = pneg %p126
      %p416 = pneg %p150
      %p417 = pneg %p147
      %p418 = pneg %p171
      %p419 = pneg %p168
      %p420 = pneg %p192
      %p421 = pneg %p189
      %p422 = pneg %p213
      %p423 = pneg %p210
      %p424 = pneg %p234
      %p425 = pneg %p231
      %p426 = pneg %p255
      %p427 = pneg %p252
      %p428 = pneg %p276
      %p429 = pneg %p273
      %p430 = pneg %p297
      %p431 = pneg %p294
      %p432 = pneg %p318
      %p433 = pneg %p315
      %s434 = smul.u32 2, %s28
      %p435 = scmp.lt.s32.totalorder %s434, 1
      %s436 = scalar_select %p435, %s434, 1
      %s437 = smul.addr %s436, 8
      %s438 = scalar_lea.vmem %s1, %s437
      %s439 = smul.u32 2, %s28
      %s440 = smul.u32 2, %s28
      %p441 = scmp.lt.s32.totalorder %s440, 1
      %s442 = scalar_select %p441, %s440, 1
      %s443 = smul.addr %s442, 8
      %s444 = scalar_lea.vmem %s2, %s443
      %s445 = smul.u32 2, %s28
      %p446 = scmp.lt.s32.totalorder %s28, 0
      %s447 = scalar_select %p446, %s28, 0
      %s448 = scalar_lea.vmem %s3, %s447
      %p450 = scmp.eq.s32.totalorder %s27, 0
      %p451 = scmp.eq.s32.totalorder %s28, 0
      %p452 = pnand %p450, %p451
      %p453 = pneg %p452
      // Predicated region
      $region69: #{nnconvnet_forward.2} parent=67 // pred_check
        _
      $region70: #{nnconvnet_forward.2} parent=67 // pred_check_branch
        %455 = sbr.rel (%p452) target = $region72
      $region71: #{nnconvnet_forward.2} parent=67 // pred_region
        %v456 = vld [vmem:[%s0] sm:$0xff]
        %v457 = vld [vmem:[%s0 + $0x8] sm:$0xf]
        %vm458 = vcmask 195584
        %459 = vst.msk [vmem:[#allocation2] sm:$0xff] %vm458, %v456
        %vm460 = vcmask 191488
        %461 = vst.msk [vmem:[#allocation2 + $0x8] sm:$0xf] %vm460, %v457
      $region72: #{nnconvnet_forward.2} parent=67 // pred_fallthru
        _
      // Predicated region
      $region73: #{nnconvnet_forward.2} parent=67 // pred_check
        %p462 = pneg %p451
      $region74: #{nnconvnet_forward.2} parent=67 // pred_check_branch
        %464 = sbr.rel (%p462) target = $region76
      $region75: #{nnconvnet_forward.2} parent=67 // pred_region
        %vm465 = vcmask 203776
        %466 = vst.msk [vmem:[#allocation3] sm:$0xff] %vm465, 0.0
        %vm467 = vcmask 199680
        %468 = vst.msk [vmem:[#allocation3 + $0x8] sm:$0xf] %vm467, 0.0
      $region76: #{nnconvnet_forward.2} parent=67 // pred_fallthru
        _
      %v469 = vld [vmem:[%s438] sm:$0xff]
      %v470 = vld [vmem:[%s438 + $0x8] sm:$0xff]
      %v471 = vld [vmem:[%s4] sm:$0x3f]
      %v472 = vld [vmem:[%s5] sm:$0x1]
      %v474 = vlaneseq
      %v475 = vshrl.u32 %v474, 7
      %v476 = vsub.s32 0, %v475
      %v477 = vrot.slane %v472, %v476
      %vm479 = vcmask 48128
      %v481 = vsel %vm479, %v469, 0
      %v484 = vsel %vm479, %v470, 0
      %vm486 = vcmask 1045504
      %v488 = vsel %vm486, %v471, 0
      %490 = vmatprep.subr.mxu0 0.0
      %491 = vmatpush1.msra.mxu0 %v488
      %492 = vmatprep.subr.mxu0 0.0
      %493 = vmatpush1.msra.mxu0 0.0
      %494 = vmatprep.subr.mxu0 0.0
      %495 = vmatpush1.msra.mxu0 0.0
      %496 = vmatprep.subr.mxu0 0.0
      %497 = vmatpush1.msra.mxu0 0.0
      %498 = vmatprep.subr.mxu0 0.0
      %499 = vmatpush1.msra.mxu0 0.0
      %500 = vmatprep.subr.mxu0 0.0
      %501 = vmatpush1.msra.mxu0 0.0
      %502 = vmatprep.subr.mxu0 0.0
      %503 = vmatpush1.msra.mxu0 0.0
      %504 = vmatprep.subr.mxu0 0.0
      %505 = vmatpush1.msra.mxu0 0.0
      %506 = vmatprep.subr.mxu0 0.0
      %507 = vmatpush1.msra.mxu0 0.0
      %508 = vmatprep.subr.mxu0 0.0
      %509 = vmatpush1.msra.mxu0 0.0
      %510 = vmatprep.subr.mxu0 0.0
      %511 = vmatpush1.msra.mxu0 0.0
      %512 = vmatprep.subr.mxu0 0.0
      %513 = vmatpush1.msra.mxu0 0.0
      %514 = vmatprep.subr.mxu0 0.0
      %515 = vmatpush1.msra.mxu0 0.0
      %516 = vmatprep.subr.mxu0 0.0
      %517 = vmatpush1.msra.mxu0 0.0
      %518 = vmatprep.subr.mxu0 0.0
      %519 = vmatpush1.msra.mxu0 0.0
      %520 = vmatprep.subr.mxu0 0.0
      %521 = vmatpush1.msra.mxu0 0.0
      %522 = vmatprep.subr.mxu0 0.0
      %523 = vmatpush1.msra.mxu0 0.0
      %524 = vmatprep.subr.mxu0 0.0
      %525 = vmatpush1.msra.mxu0 0.0
      %526 = vmatprep.subr.mxu0 0.0
      %527 = vmatpush1.msra.mxu0 0.0
      %528 = vmatprep.subr.mxu0 0.0
      %529 = vmatpush1.msra.mxu0 0.0
      %530 = vmatprep.subr.mxu0 0.0
      %531 = vmatpush1.msra.mxu0 0.0
      %532 = vmatprep.subr.mxu0 0.0
      %533 = vmatpush1.msra.mxu0 0.0
      %534 = vmatprep.subr.mxu0 0.0
      %535 = vmatpush1.msra.mxu0 0.0
      %536 = vmatprep.subr.mxu0 0.0
      %537 = vmatpush1.msra.mxu0 0.0
      %538 = vmatprep.subr.mxu0 0.0
      %539 = vmatpush1.msra.mxu0 0.0
      %540 = vmatprep.subr.mxu0 0.0
      %541 = vmatpush1.msra.mxu0 0.0
      %542 = vmatprep.subr.mxu0 0.0
      %543 = vmatpush1.msra.mxu0 0.0
      %544 = vmatprep.subr.mxu0 0.0
      %545 = vmatpush1.msra.mxu0 0.0
      %546 = vmatprep.subr.mxu0 0.0
      %547 = vmatpush1.msra.mxu0 0.0
      %548 = vmatprep.subr.mxu0 0.0
      %549 = vmatpush1.msra.mxu0 0.0
      %550 = vmatprep.subr.mxu0 0.0
      %551 = vmatpush1.msra.mxu0 0.0
      %552 = vmatprep.subr.mxu0 0.0
      %553 = vmatpush1.msra.mxu0 0.0
      %554 = vmatprep.mubr.f32.mxu0 0.0
      %555 = vmatmul.mubr.f32.gmra.mrb[0].mxu0 %v481
      %v556 = vpop.f32.mrb[0].mxu0
      %v557 = vadd.f32 %v477, %v556
      %v558 = vpop.f32.mrb[0].mxu0
      %559 = vmatprep.mubr.f32.mxu0 0.0
      %560 = vmatmul.mubr.f32.gmra.mrb[0].mxu0 %v484
      %v561 = vpop.f32.mrb[0].mxu0
      %v562 = vadd.f32 %v477, %v561
      %v563 = vpop.f32.mrb[0].mxu0
      %564 = vdwg.mxu0
      %v565 = vmax.f32 %v557, 0.0
      %v566 = vmax.f32 %v562, 0.0
      %v567 = vld [vmem:[%s6] sm:$0xff]
      %v568 = vld [vmem:[%s6 + $0x8] sm:$0xff]
      %v569 = vld [vmem:[%s6 + $0x10] sm:$0xff]
      %v570 = vld [vmem:[%s6 + $0x18] sm:$0xff]
      %v571 = vld [vmem:[%s6 + $0x20] sm:$0xff]
      %v572 = vld [vmem:[%s6 + $0x28] sm:$0xff]
      %v573 = vld [vmem:[%s6 + $0x30] sm:$0xff]
      %v574 = vld [vmem:[%s6 + $0x38] sm:$0xff]
      %v575 = vld [vmem:[%s6 + $0x40] sm:$0xff]
      %v576 = vld [vmem:[%s6 + $0x48] sm:$0xff]
      %v577 = vld [vmem:[%s6 + $0x50] sm:$0xff]
      %v578 = vld [vmem:[%s6 + $0x58] sm:$0xff]
      %v579 = vld [vmem:[%s6 + $0x60] sm:$0xff]
      %v580 = vld [vmem:[%s6 + $0x68] sm:$0xff]
      %v581 = vld [vmem:[%s6 + $0x70] sm:$0xff]
      %v582 = vld [vmem:[%s6 + $0x78] sm:$0xff]
      %v583 = vld [vmem:[%s6 + $0x80] sm:$0xff]
      %v584 = vld [vmem:[%s6 + $0x88] sm:$0xff]
      %v585 = vld [vmem:[%s6 + $0x90] sm:$0xff]
      %v586 = vld [vmem:[%s6 + $0x98] sm:$0xff]
      %v587 = vld [vmem:[%s7] sm:$0x1f]
      %v589 = vlaneseq
      %v590 = vshrl.u32 %v589, 7
      %v591 = vsub.s32 0, %v590
      %v592 = vrot.slane %v587, %v591
      %v593 = vlaneseq
      %v594 = vshrl.u32 %v593, 7
      %v595 = vsub.s32 1, %v594
      %v596 = vrot.slane %v587, %v595
      %v597 = vlaneseq
      %v598 = vshrl.u32 %v597, 7
      %v599 = vsub.s32 2, %v598
      %v600 = vrot.slane %v587, %v599
      %v601 = vlaneseq
      %v602 = vshrl.u32 %v601, 7
      %v603 = vsub.s32 3, %v602
      %v604 = vrot.slane %v587, %v603
      %v605 = vlaneseq
      %v606 = vshrl.u32 %v605, 7
      %v607 = vsub.s32 4, %v606
      %v608 = vrot.slane %v587, %v607
      %vm614 = vcmask 261120
      %v616 = vsel %vm614, %v565, 0
      %v619 = vsel %vm614, %v566, 0
      %621 = vmatprep.subr.mxu0 %v568
      %622 = vmatpush1.msra.mxu0 %v567
      %623 = vmatprep.subr.mxu0 %v573
      %624 = vmatpush1.msra.mxu0 %v572
      %625 = vmatprep.subr.mxu0 %v578
      %626 = vmatpush1.msra.mxu0 %v577
      %627 = vmatprep.subr.mxu0 %v583
      %628 = vmatpush1.msra.mxu0 %v582
      %629 = vmatprep.subr.mxu0 0.0
      %630 = vmatpush1.msra.mxu0 0.0
      %631 = vmatprep.subr.mxu0 0.0
      %632 = vmatpush1.msra.mxu0 0.0
      %633 = vmatprep.subr.mxu0 0.0
      %634 = vmatpush1.msra.mxu0 0.0
      %635 = vmatprep.subr.mxu0 0.0
      %636 = vmatpush1.msra.mxu0 0.0
      %637 = vmatprep.subr.mxu0 0.0
      %638 = vmatpush1.msra.mxu0 0.0
      %639 = vmatprep.subr.mxu0 0.0
      %640 = vmatpush1.msra.mxu0 0.0
      %641 = vmatprep.subr.mxu0 0.0
      %642 = vmatpush1.msra.mxu0 0.0
      %643 = vmatprep.subr.mxu0 0.0
      %644 = vmatpush1.msra.mxu0 0.0
      %645 = vmatprep.subr.mxu0 0.0
      %646 = vmatpush1.msra.mxu0 0.0
      %647 = vmatprep.subr.mxu0 0.0
      %648 = vmatpush1.msra.mxu0 0.0
      %649 = vmatprep.subr.mxu0 0.0
      %650 = vmatpush1.msra.mxu0 0.0
      %651 = vmatprep.subr.mxu0 0.0
      %652 = vmatpush1.msra.mxu0 0.0
      %653 = vmatprep.subr.mxu0 0.0
      %654 = vmatpush1.msra.mxu0 0.0
      %655 = vmatprep.subr.mxu0 0.0
      %656 = vmatpush1.msra.mxu0 0.0
      %657 = vmatprep.subr.mxu0 0.0
      %658 = vmatpush1.msra.mxu0 0.0
      %659 = vmatprep.subr.mxu0 0.0
      %660 = vmatpush1.msra.mxu0 0.0
      %661 = vmatprep.subr.mxu0 0.0
      %662 = vmatpush1.msra.mxu0 0.0
      %663 = vmatprep.subr.mxu0 0.0
      %664 = vmatpush1.msra.mxu0 0.0
      %665 = vmatprep.subr.mxu0 0.0
      %666 = vmatpush1.msra.mxu0 0.0
      %667 = vmatprep.subr.mxu0 0.0
      %668 = vmatpush1.msra.mxu0 0.0
      %669 = vmatprep.subr.mxu0 0.0
      %670 = vmatpush1.msra.mxu0 0.0
      %671 = vmatprep.subr.mxu0 0.0
      %672 = vmatpush1.msra.mxu0 0.0
      %673 = vmatprep.subr.mxu0 0.0
      %674 = vmatpush1.msra.mxu0 0.0
      %675 = vmatprep.subr.mxu0 0.0
      %676 = vmatpush1.msra.mxu0 0.0
      %677 = vmatprep.subr.mxu0 0.0
      %678 = vmatpush1.msra.mxu0 0.0
      %679 = vmatprep.subr.mxu0 0.0
      %680 = vmatpush1.msra.mxu0 0.0
      %681 = vmatprep.subr.mxu0 0.0
      %682 = vmatpush1.msra.mxu0 0.0
      %683 = vmatprep.subr.mxu0 0.0
      %684 = vmatpush1.msra.mxu0 0.0
      %685 = vmatprep.mubr.f32.mxu0 0.0
      %686 = vmatmul.mubr.f32.gmra.mrb[0].mxu0 %v616
      %v687 = vpop.f32.mrb[0].mxu0
      %v688 = vadd.f32 %v592, %v687
      %v689 = vpop.f32.mrb[0].mxu0
      %v690 = vadd.f32 %v596, %v689
      %691 = vmatprep.mubr.f32.mxu0 0.0
      %692 = vmatmul.mubr.f32.gmra.mrb[0].mxu0 %v619
      %v693 = vpop.f32.mrb[0].mxu0
      %v694 = vadd.f32 %v592, %v693
      %v695 = vpop.f32.mrb[0].mxu0
      %v696 = vadd.f32 %v596, %v695
      %697 = vdwg.mxu0
      %698 = vmatprep.subr.mxu0 %v570
      %699 = vmatpush1.msra.mxu0 %v569
      %700 = vmatprep.subr.mxu0 %v575
      %701 = vmatpush1.msra.mxu0 %v574
      %702 = vmatprep.subr.mxu0 %v580
      %703 = vmatpush1.msra.mxu0 %v579
      %704 = vmatprep.subr.mxu0 %v585
      %705 = vmatpush1.msra.mxu0 %v584
      %706 = vmatprep.subr.mxu0 0.0
      %707 = vmatpush1.msra.mxu0 0.0
      %708 = vmatprep.subr.mxu0 0.0
      %709 = vmatpush1.msra.mxu0 0.0
      %710 = vmatprep.subr.mxu0 0.0
      %711 = vmatpush1.msra.mxu0 0.0
      %712 = vmatprep.subr.mxu0 0.0
      %713 = vmatpush1.msra.mxu0 0.0
      %714 = vmatprep.subr.mxu0 0.0
      %715 = vmatpush1.msra.mxu0 0.0
      %716 = vmatprep.subr.mxu0 0.0
      %717 = vmatpush1.msra.mxu0 0.0
      %718 = vmatprep.subr.mxu0 0.0
      %719 = vmatpush1.msra.mxu0 0.0
      %720 = vmatprep.subr.mxu0 0.0
      %721 = vmatpush1.msra.mxu0 0.0
      %722 = vmatprep.subr.mxu0 0.0
      %723 = vmatpush1.msra.mxu0 0.0
      %724 = vmatprep.subr.mxu0 0.0
      %725 = vmatpush1.msra.mxu0 0.0
      %726 = vmatprep.subr.mxu0 0.0
      %727 = vmatpush1.msra.mxu0 0.0
      %728 = vmatprep.subr.mxu0 0.0
      %729 = vmatpush1.msra.mxu0 0.0
      %730 = vmatprep.subr.mxu0 0.0
      %731 = vmatpush1.msra.mxu0 0.0
      %732 = vmatprep.subr.mxu0 0.0
      %733 = vmatpush1.msra.mxu0 0.0
      %734 = vmatprep.subr.mxu0 0.0
      %735 = vmatpush1.msra.mxu0 0.0
      %736 = vmatprep.subr.mxu0 0.0
      %737 = vmatpush1.msra.mxu0 0.0
      %738 = vmatprep.subr.mxu0 0.0
      %739 = vmatpush1.msra.mxu0 0.0
      %740 = vmatprep.subr.mxu0 0.0
      %741 = vmatpush1.msra.mxu0 0.0
      %742 = vmatprep.subr.mxu0 0.0
      %743 = vmatpush1.msra.mxu0 0.0
      %744 = vmatprep.subr.mxu0 0.0
      %745 = vmatpush1.msra.mxu0 0.0
      %746 = vmatprep.subr.mxu0 0.0
      %747 = vmatpush1.msra.mxu0 0.0
      %748 = vmatprep.subr.mxu0 0.0
      %749 = vmatpush1.msra.mxu0 0.0
      %750 = vmatprep.subr.mxu0 0.0
      %751 = vmatpush1.msra.mxu0 0.0
      %752 = vmatprep.subr.mxu0 0.0
      %753 = vmatpush1.msra.mxu0 0.0
      %754 = vmatprep.subr.mxu0 0.0
      %755 = vmatpush1.msra.mxu0 0.0
      %756 = vmatprep.subr.mxu0 0.0
      %757 = vmatpush1.msra.mxu0 0.0
      %758 = vmatprep.subr.mxu0 0.0
      %759 = vmatpush1.msra.mxu0 0.0
      %760 = vmatprep.subr.mxu0 0.0
      %761 = vmatpush1.msra.mxu0 0.0
      %762 = vmatprep.mubr.f32.mxu0 0.0
      %763 = vmatmul.mubr.f32.gmra.mrb[0].mxu0 %v616
      %v764 = vpop.f32.mrb[0].mxu0
      %v765 = vadd.f32 %v600, %v764
      %v766 = vpop.f32.mrb[0].mxu0
      %v767 = vadd.f32 %v604, %v766
      %768 = vmatprep.mubr.f32.mxu0 0.0
      %769 = vmatmul.mubr.f32.gmra.mrb[0].mxu0 %v619
      %v770 = vpop.f32.mrb[0].mxu0
      %v771 = vadd.f32 %v600, %v770
      %v772 = vpop.f32.mrb[0].mxu0
      %v773 = vadd.f32 %v604, %v772
      %774 = vdwg.mxu0
      %775 = vmatprep.subr.mxu0 0.0
      %776 = vmatpush1.msra.mxu0 %v571
      %777 = vmatprep.subr.mxu0 0.0
      %778 = vmatpush1.msra.mxu0 %v576
      %779 = vmatprep.subr.mxu0 0.0
      %780 = vmatpush1.msra.mxu0 %v581
      %781 = vmatprep.subr.mxu0 0.0
      %782 = vmatpush1.msra.mxu0 %v586
      %783 = vmatprep.subr.mxu0 0.0
      %784 = vmatpush1.msra.mxu0 0.0
      %785 = vmatprep.subr.mxu0 0.0
      %786 = vmatpush1.msra.mxu0 0.0
      %787 = vmatprep.subr.mxu0 0.0
      %788 = vmatpush1.msra.mxu0 0.0
      %789 = vmatprep.subr.mxu0 0.0
      %790 = vmatpush1.msra.mxu0 0.0
      %791 = vmatprep.subr.mxu0 0.0
      %792 = vmatpush1.msra.mxu0 0.0
      %793 = vmatprep.subr.mxu0 0.0
      %794 = vmatpush1.msra.mxu0 0.0
      %795 = vmatprep.subr.mxu0 0.0
      %796 = vmatpush1.msra.mxu0 0.0
      %797 = vmatprep.subr.mxu0 0.0
      %798 = vmatpush1.msra.mxu0 0.0
      %799 = vmatprep.subr.mxu0 0.0
      %800 = vmatpush1.msra.mxu0 0.0
      %801 = vmatprep.subr.mxu0 0.0
      %802 = vmatpush1.msra.mxu0 0.0
      %803 = vmatprep.subr.mxu0 0.0
      %804 = vmatpush1.msra.mxu0 0.0
      %805 = vmatprep.subr.mxu0 0.0
      %806 = vmatpush1.msra.mxu0 0.0
      %807 = vmatprep.subr.mxu0 0.0
      %808 = vmatpush1.msra.mxu0 0.0
      %809 = vmatprep.subr.mxu0 0.0
      %810 = vmatpush1.msra.mxu0 0.0
      %811 = vmatprep.subr.mxu0 0.0
      %812 = vmatpush1.msra.mxu0 0.0
      %813 = vmatprep.subr.mxu0 0.0
      %814 = vmatpush1.msra.mxu0 0.0
      %815 = vmatprep.subr.mxu0 0.0
      %816 = vmatpush1.msra.mxu0 0.0
      %817 = vmatprep.subr.mxu0 0.0
      %818 = vmatpush1.msra.mxu0 0.0
      %819 = vmatprep.subr.mxu0 0.0
      %820 = vmatpush1.msra.mxu0 0.0
      %821 = vmatprep.subr.mxu0 0.0
      %822 = vmatpush1.msra.mxu0 0.0
      %823 = vmatprep.subr.mxu0 0.0
      %824 = vmatpush1.msra.mxu0 0.0
      %825 = vmatprep.subr.mxu0 0.0
      %826 = vmatpush1.msra.mxu0 0.0
      %827 = vmatprep.subr.mxu0 0.0
      %828 = vmatpush1.msra.mxu0 0.0
      %829 = vmatprep.subr.mxu0 0.0
      %830 = vmatpush1.msra.mxu0 0.0
      %831 = vmatprep.subr.mxu0 0.0
      %832 = vmatpush1.msra.mxu0 0.0
      %833 = vmatprep.subr.mxu0 0.0
      %834 = vmatpush1.msra.mxu0 0.0
      %835 = vmatprep.subr.mxu0 0.0
      %836 = vmatpush1.msra.mxu0 0.0
      %837 = vmatprep.subr.mxu0 0.0
      %838 = vmatpush1.msra.mxu0 0.0
      %839 = vmatprep.mubr.f32.mxu0 0.0
      %840 = vmatmul.mubr.f32.gmra.mrb[0].mxu0 %v616
      %v841 = vpop.f32.mrb[0].mxu0
      %v842 = vadd.f32 %v608, %v841
      %v843 = vpop.f32.mrb[0].mxu0
      %844 = vmatprep.mubr.f32.mxu0 0.0
      %845 = vmatmul.mubr.f32.gmra.mrb[0].mxu0 %v619
      %v846 = vpop.f32.mrb[0].mxu0
      %v847 = vadd.f32 %v608, %v846
      %v848 = vpop.f32.mrb[0].mxu0
      %849 = vdwg.mxu0
      %v850 = vld [vmem:[%s444] sm:$0xff]
      %v851 = vld [vmem:[%s444 + $0x8] sm:$0xff]
      %v852 = vld [vmem:[%s448] sm:$0x1]
      %v853 = vlaneseq
      %v854 = vand.u32 %v853, 127
      %855 = vset.pattern.permute.xlu0 0
      %856 = vperm.xlu0 %855, %v850
      %v857 = vpop.permute.xlu0 %856
      %858 = vset.pattern.permute.xlu0 0
      %859 = vperm.xlu0 %858, %v851
      %v860 = vpop.permute.xlu0 %859
      %vm861 = vcmp.eq.s32.totalorder %v854, %v857
      %vm862 = vcmp.eq.s32.totalorder %v854, %v860
      %v863 = vsel %vm861, 1, 0
      %v864 = vsel %vm862, 1, 0
      %v865 = vcvt.s32.f32 %v863
      %v866 = vcvt.s32.f32 %v864
      %v867 = vpack.c.bf16 %v866, %v865
      %v868 = vlaneseq
      %v869 = vshrl.u32 %v868, 7
      %v870 = vadd.s32 %v869, 8
      %v871 = vlaneseq
      %v872 = vshrl.u32 %v871, 7
      %v873 = vsub.s32 0, %v872
      %v874 = vrot.slane %v852, %v873
      %vm875 = vcmp.eq.s32.totalorder %v869, %v874
      %vm876 = vcmp.eq.s32.totalorder %v870, %v874
      %v877 = vsel %vm875, 1, 0
      %v878 = vsel %vm876, 1, 0
      %v879 = vcvt.s32.f32 %v877
      %v880 = vcvt.s32.f32 %v878
      %v881 = vpack.c.bf16 %v880, %v879
      %v882 = vld [vmem:[#allocation2] sm:$0xff]
      %v883 = vld [vmem:[#allocation2 + $0x8] sm:$0xf]
      %v884 = vpack.c.bf16 %v883, %v882
      %vm885 = vcmask 97280
      %v887 = vsel %vm885, %v867, 0
      %v890 = vsel %vm486, %v884, 0
      %892 = vmatprep.subr.bf16.mxu0 0
      %893 = vmatpush1.bf16.msra.mxu0 %v890
      %894 = vmatprep.subr.bf16.mxu0 0
      %895 = vmatpush1.bf16.msra.mxu0 0
      %896 = vmatprep.subr.bf16.mxu0 0
      %897 = vmatpush1.bf16.msra.mxu0 0
      %898 = vmatprep.subr.bf16.mxu0 0
      %899 = vmatpush1.bf16.msra.mxu0 0
      %900 = vmatprep.subr.bf16.mxu0 0
      %901 = vmatpush1.bf16.msra.mxu0 0
      %902 = vmatprep.subr.bf16.mxu0 0
      %903 = vmatpush1.bf16.msra.mxu0 0
      %904 = vmatprep.subr.bf16.mxu0 0
      %905 = vmatpush1.bf16.msra.mxu0 0
      %906 = vmatprep.subr.bf16.mxu0 0
      %907 = vmatpush1.bf16.msra.mxu0 0
      %908 = vmatprep.subr.bf16.mxu0 0
      %909 = vmatpush1.bf16.msra.mxu0 0
      %910 = vmatprep.subr.bf16.mxu0 0
      %911 = vmatpush1.bf16.msra.mxu0 0
      %912 = vmatprep.subr.bf16.mxu0 0
      %913 = vmatpush1.bf16.msra.mxu0 0
      %914 = vmatprep.subr.bf16.mxu0 0
      %915 = vmatpush1.bf16.msra.mxu0 0
      %916 = vmatprep.subr.bf16.mxu0 0
      %917 = vmatpush1.bf16.msra.mxu0 0
      %918 = vmatprep.subr.bf16.mxu0 0
      %919 = vmatpush1.bf16.msra.mxu0 0
      %920 = vmatprep.subr.bf16.mxu0 0
      %921 = vmatpush1.bf16.msra.mxu0 0
      %922 = vmatprep.subr.bf16.mxu0 0
      %923 = vmatpush1.bf16.msra.mxu0 0
      %924 = vmatprep.mubr.bf16.mxu0 0
      %925 = vmatmul.mubr.bf16.gmra.mrb[0].mxu0 %v887
      %v926 = vpop.f32.mrb[0].mxu0
      %v927 = vadd.f32 0.0, %v926
      %v928 = vpop.f32.mrb[0].mxu0
      %v929 = vpop.f32.mrb[0].mxu0
      %v930 = vadd.f32 0.0, %v929
      %v931 = vpop.f32.mrb[0].mxu0
      %932 = vdwg.mxu0
      %v933 = vpack.c.bf16 %v930, %v927
      %v934 = vld [vmem:[%s10] sm:$0xff]
      %v935 = vld [vmem:[%s10 + $0x8] sm:$0xff]
      %v936 = vld [vmem:[%s10 + $0x10] sm:$0xf]
      %v937 = vld [vmem:[%s10 + $0x14] sm:$0xff]
      %v938 = vld [vmem:[%s10 + $0x1c] sm:$0xff]
      %v939 = vld [vmem:[%s10 + $0x24] sm:$0xf]
      %v940 = vld [vmem:[%s10 + $0x28] sm:$0xff]
      %v941 = vld [vmem:[%s10 + $0x30] sm:$0xff]
      %v942 = vld [vmem:[%s10 + $0x38] sm:$0xf]
      %v952 = vunpack.c.l.b16 %v934
      %v953 = vunpack.c.h.b16 %v934
      %v954 = vunpack.c.l.b16 %v935
      %v955 = vunpack.c.h.b16 %v935
      %v956 = vunpack.c.l.b16 %v936
      %v957 = vunpack.c.l.b16 %v937
      %v958 = vunpack.c.h.b16 %v937
      %v959 = vunpack.c.l.b16 %v938
      %v960 = vunpack.c.h.b16 %v938
      %v961 = vunpack.c.l.b16 %v939
      %v962 = vunpack.c.l.b16 %v940
      %v963 = vunpack.c.h.b16 %v940
      %v964 = vunpack.c.l.b16 %v941
      %v965 = vunpack.c.h.b16 %v941
      %v966 = vunpack.c.l.b16 %v942
      %v967 = vpack.c.b16 %v957, %v952
      %v968 = vpack.c.b16 %v958, %v953
      %v969 = vpack.c.b16 %v959, %v954
      %v970 = vpack.c.b16 %v960, %v955
      %v971 = vpack.c.b16 %v961, %v956
      %v972 = vpack.c.b16 %v962, %v962
      %v973 = vpack.c.b16 %v963, %v963
      %v974 = vpack.c.b16 %v964, %v964
      %v975 = vpack.c.b16 %v965, %v965
      %v976 = vpack.c.b16 %v966, %v966
      %vm982 = vcmask 195584
      %v984 = vsel %vm982, %v933, 0
      %vm986 = vcmask 1043456
      %v988 = vsel %vm986, %v972, 0
      %v991 = vsel %vm986, %v973, 0
      %v994 = vsel %vm986, %v974, 0
      %v997 = vsel %vm986, %v975, 0
      %v1000 = vsel %vm986, %v976, 0
      %1002 = vmatprep.subr.bf16.mxu0 %v968
      %1003 = vmatpush1.bf16.msra.mxu0 %v967
      %1004 = vmatprep.subr.bf16.mxu0 %v991
      %1005 = vmatpush1.bf16.msra.mxu0 %v988
      %1006 = vmatprep.subr.bf16.mxu0 0
      %1007 = vmatpush1.bf16.msra.mxu0 0
      %1008 = vmatprep.subr.bf16.mxu0 0
      %1009 = vmatpush1.bf16.msra.mxu0 0
      %1010 = vmatprep.subr.bf16.mxu0 0
      %1011 = vmatpush1.bf16.msra.mxu0 0
      %1012 = vmatprep.subr.bf16.mxu0 0
      %1013 = vmatpush1.bf16.msra.mxu0 0
      %1014 = vmatprep.subr.bf16.mxu0 0
      %1015 = vmatpush1.bf16.msra.mxu0 0
      %1016 = vmatprep.subr.bf16.mxu0 0
      %1017 = vmatpush1.bf16.msra.mxu0 0
      %1018 = vmatprep.subr.bf16.mxu0 0
      %1019 = vmatpush1.bf16.msra.mxu0 0
      %1020 = vmatprep.subr.bf16.mxu0 0
      %1021 = vmatpush1.bf16.msra.mxu0 0
      %1022 = vmatprep.subr.bf16.mxu0 0
      %1023 = vmatpush1.bf16.msra.mxu0 0
      %1024 = vmatprep.subr.bf16.mxu0 0
      %1025 = vmatpush1.bf16.msra.mxu0 0
      %1026 = vmatprep.subr.bf16.mxu0 0
      %1027 = vmatpush1.bf16.msra.mxu0 0
      %1028 = vmatprep.subr.bf16.mxu0 0
      %1029 = vmatpush1.bf16.msra.mxu0 0
      %1030 = vmatprep.subr.bf16.mxu0 0
      %1031 = vmatpush1.bf16.msra.mxu0 0
      %1032 = vmatprep.subr.bf16.mxu0 0
      %1033 = vmatpush1.bf16.msra.mxu0 0
      %1034 = vmatprep.mubr.bf16.mxu0 0
      %1035 = vmatmul.mubr.bf16.gmra.mrb[0].mxu0 %v984
      %v1036 = vpop.f32.mrb[0].mxu0
      %v1037 = vadd.f32 0.0, %v1036
      %v1038 = vpop.f32.mrb[0].mxu0
      %v1039 = vadd.f32 0.0, %v1038
      %v1040 = vpop.f32.mrb[0].mxu0
      %v1041 = vadd.f32 0.0, %v1040
      %v1042 = vpop.f32.mrb[0].mxu0
      %v1043 = vadd.f32 0.0, %v1042
      %1044 = vdwg.mxu0
      %1045 = vmatprep.subr.bf16.mxu0 %v970
      %1046 = vmatpush1.bf16.msra.mxu0 %v969
      %1047 = vmatprep.subr.bf16.mxu0 %v997
      %1048 = vmatpush1.bf16.msra.mxu0 %v994
      %1049 = vmatprep.subr.bf16.mxu0 0
      %1050 = vmatpush1.bf16.msra.mxu0 0
      %1051 = vmatprep.subr.bf16.mxu0 0
      %1052 = vmatpush1.bf16.msra.mxu0 0
      %1053 = vmatprep.subr.bf16.mxu0 0
      %1054 = vmatpush1.bf16.msra.mxu0 0
      %1055 = vmatprep.subr.bf16.mxu0 0
      %1056 = vmatpush1.bf16.msra.mxu0 0
      %1057 = vmatprep.subr.bf16.mxu0 0
      %1058 = vmatpush1.bf16.msra.mxu0 0
      %1059 = vmatprep.subr.bf16.mxu0 0
      %1060 = vmatpush1.bf16.msra.mxu0 0
      %1061 = vmatprep.subr.bf16.mxu0 0
      %1062 = vmatpush1.bf16.msra.mxu0 0
      %1063 = vmatprep.subr.bf16.mxu0 0
      %1064 = vmatpush1.bf16.msra.mxu0 0
      %1065 = vmatprep.subr.bf16.mxu0 0
      %1066 = vmatpush1.bf16.msra.mxu0 0
      %1067 = vmatprep.subr.bf16.mxu0 0
      %1068 = vmatpush1.bf16.msra.mxu0 0
      %1069 = vmatprep.subr.bf16.mxu0 0
      %1070 = vmatpush1.bf16.msra.mxu0 0
      %1071 = vmatprep.subr.bf16.mxu0 0
      %1072 = vmatpush1.bf16.msra.mxu0 0
      %1073 = vmatprep.subr.bf16.mxu0 0
      %1074 = vmatpush1.bf16.msra.mxu0 0
      %1075 = vmatprep.subr.bf16.mxu0 0
      %1076 = vmatpush1.bf16.msra.mxu0 0
      %1077 = vmatprep.mubr.bf16.mxu0 0
      %1078 = vmatmul.mubr.bf16.gmra.mrb[0].mxu0 %v984
      %v1079 = vpop.f32.mrb[0].mxu0
      %v1080 = vadd.f32 0.0, %v1079
      %v1081 = vpop.f32.mrb[0].mxu0
      %v1082 = vadd.f32 0.0, %v1081
      %v1083 = vpop.f32.mrb[0].mxu0
      %v1084 = vadd.f32 0.0, %v1083
      %v1085 = vpop.f32.mrb[0].mxu0
      %v1086 = vadd.f32 0.0, %v1085
      %1087 = vdwg.mxu0
      %1088 = vmatprep.subr.bf16.mxu0 0
      %1089 = vmatpush1.bf16.msra.mxu0 %v971
      %1090 = vmatprep.subr.bf16.mxu0 0
      %1091 = vmatpush1.bf16.msra.mxu0 %v1000
      %1092 = vmatprep.subr.bf16.mxu0 0
      %1093 = vmatpush1.bf16.msra.mxu0 0
      %1094 = vmatprep.subr.bf16.mxu0 0
      %1095 = vmatpush1.bf16.msra.mxu0 0
      %1096 = vmatprep.subr.bf16.mxu0 0
      %1097 = vmatpush1.bf16.msra.mxu0 0
      %1098 = vmatprep.subr.bf16.mxu0 0
      %1099 = vmatpush1.bf16.msra.mxu0 0
      %1100 = vmatprep.subr.bf16.mxu0 0
      %1101 = vmatpush1.bf16.msra.mxu0 0
      %1102 = vmatprep.subr.bf16.mxu0 0
      %1103 = vmatpush1.bf16.msra.mxu0 0
      %1104 = vmatprep.subr.bf16.mxu0 0
      %1105 = vmatpush1.bf16.msra.mxu0 0
      %1106 = vmatprep.subr.bf16.mxu0 0
      %1107 = vmatpush1.bf16.msra.mxu0 0
      %1108 = vmatprep.subr.bf16.mxu0 0
      %1109 = vmatpush1.bf16.msra.mxu0 0
      %1110 = vmatprep.subr.bf16.mxu0 0
      %1111 = vmatpush1.bf16.msra.mxu0 0
      %1112 = vmatprep.subr.bf16.mxu0 0
      %1113 = vmatpush1.bf16.msra.mxu0 0
      %1114 = vmatprep.subr.bf16.mxu0 0
      %1115 = vmatpush1.bf16.msra.mxu0 0
      %1116 = vmatprep.subr.bf16.mxu0 0
      %1117 = vmatpush1.bf16.msra.mxu0 0
      %1118 = vmatprep.subr.bf16.mxu0 0
      %1119 = vmatpush1.bf16.msra.mxu0 0
      %1120 = vmatprep.mubr.bf16.mxu0 0
      %1121 = vmatmul.mubr.bf16.gmra.mrb[0].mxu0 %v984
      %v1122 = vpop.f32.mrb[0].mxu0
      %v1123 = vadd.f32 0.0, %v1122
      %v1124 = vpop.f32.mrb[0].mxu0
      %v1125 = vpop.f32.mrb[0].mxu0
      %v1126 = vadd.f32 0.0, %v1125
      %v1127 = vpop.f32.mrb[0].mxu0
      %1128 = vdwg.mxu0
      %v1129 = vmul.f32 %v1037, %v688
      %v1130 = vmul.f32 %v1039, %v690
      %v1131 = vmul.f32 %v1080, %v765
      %v1132 = vmul.f32 %v1082, %v767
      %v1133 = vmul.f32 %v1123, %v842
      %v1134 = vmul.f32 %v1041, %v694
      %v1135 = vmul.f32 %v1043, %v696
      %v1136 = vmul.f32 %v1084, %v771
      %v1137 = vmul.f32 %v1086, %v773
      %v1138 = vmul.f32 %v1126, %v847
      %v1139 = vld [vmem:[%s11] sm:$0xff]
      %v1140 = vld [vmem:[%s11 + $0x8] sm:$0xff]
      %v1141 = vld [vmem:[%s11 + $0x10] sm:$0xff]
      %v1142 = vld [vmem:[%s11 + $0x18] sm:$0xff]
      %v1143 = vld [vmem:[%s11 + $0x20] sm:$0xff]
      %v1144 = vld [vmem:[%s11 + $0x28] sm:$0xff]
      %v1145 = vld [vmem:[%s11 + $0x30] sm:$0xff]
      %v1146 = vld [vmem:[%s11 + $0x38] sm:$0xff]
      %v1147 = vld [vmem:[%s11 + $0x40] sm:$0xff]
      %v1148 = vld [vmem:[%s11 + $0x48] sm:$0xff]
      %v1149 = vld [vmem:[%s11 + $0x50] sm:$0xff]
      %v1150 = vld [vmem:[%s11 + $0x58] sm:$0xff]
      %v1151 = vld [vmem:[%s11 + $0x60] sm:$0xff]
      %v1152 = vld [vmem:[%s11 + $0x68] sm:$0xff]
      %v1153 = vld [vmem:[%s11 + $0x70] sm:$0xff]
      %1154 = vmatprep.subr.mxu0 %v1140
      %1155 = vmatpush1.xpose.msra.mxu0 %v1139
      %1156 = vmatprep.subr.mxu0 %v1145
      %1157 = vmatpush1.xpose.msra.mxu0 %v1144
      %1158 = vmatprep.subr.mxu0 %v1150
      %1159 = vmatpush1.xpose.msra.mxu0 %v1149
      %1160 = vmatprep.subr.mxu0 0.0
      %1161 = vmatpush1.xpose.msra.mxu0 0.0
      %1162 = vmatprep.subr.mxu0 0.0
      %1163 = vmatpush1.xpose.msra.mxu0 0.0
      %1164 = vmatprep.subr.mxu0 0.0
      %1165 = vmatpush1.xpose.msra.mxu0 0.0
      %1166 = vmatprep.subr.mxu0 0.0
      %1167 = vmatpush1.xpose.msra.mxu0 0.0
      %1168 = vmatprep.subr.mxu0 0.0
      %1169 = vmatpush1.xpose.msra.mxu0 0.0
      %1170 = vmatprep.subr.mxu0 0.0
      %1171 = vmatpush1.xpose.msra.mxu0 0.0
      %1172 = vmatprep.subr.mxu0 0.0
      %1173 = vmatpush1.xpose.msra.mxu0 0.0
      %1174 = vmatprep.subr.mxu0 0.0
      %1175 = vmatpush1.xpose.msra.mxu0 0.0
      %1176 = vmatprep.subr.mxu0 0.0
      %1177 = vmatpush1.xpose.msra.mxu0 0.0
      %1178 = vmatprep.subr.mxu0 0.0
      %1179 = vmatpush1.xpose.msra.mxu0 0.0
      %1180 = vmatprep.subr.mxu0 0.0
      %1181 = vmatpush1.xpose.msra.mxu0 0.0
      %1182 = vmatprep.subr.mxu0 0.0
      %1183 = vmatpush1.xpose.msra.mxu0 0.0
      %1184 = vmatprep.subr.mxu0 0.0
      %1185 = vmatpush1.xpose.msra.mxu0 0.0
      %1186 = vmatprep.subr.mxu0 0.0
      %1187 = vmatpush1.xpose.msra.mxu0 0.0
      %1188 = vmatprep.subr.mxu0 0.0
      %1189 = vmatpush1.xpose.msra.mxu0 0.0
      %1190 = vmatprep.subr.mxu0 0.0
      %1191 = vmatpush1.xpose.msra.mxu0 0.0
      %1192 = vmatprep.subr.mxu0 0.0
      %1193 = vmatpush1.xpose.msra.mxu0 0.0
      %1194 = vmatprep.subr.mxu0 0.0
      %1195 = vmatpush1.xpose.msra.mxu0 0.0
      %1196 = vmatprep.subr.mxu0 0.0
      %1197 = vmatpush1.xpose.msra.mxu0 0.0
      %1198 = vmatprep.subr.mxu0 0.0
      %1199 = vmatpush1.xpose.msra.mxu0 0.0
      %1200 = vmatprep.subr.mxu0 0.0
      %1201 = vmatpush1.xpose.msra.mxu0 0.0
      %1202 = vmatprep.subr.mxu0 0.0
      %1203 = vmatpush1.xpose.msra.mxu0 0.0
      %1204 = vmatprep.subr.mxu0 0.0
      %1205 = vmatpush1.xpose.msra.mxu0 0.0
      %1206 = vmatprep.subr.mxu0 0.0
      %1207 = vmatpush1.xpose.msra.mxu0 0.0
      %1208 = vmatprep.subr.mxu0 0.0
      %1209 = vmatpush1.xpose.msra.mxu0 0.0
      %1210 = vmatprep.subr.mxu0 0.0
      %1211 = vmatpush1.xpose.msra.mxu0 0.0
      %1212 = vmatprep.subr.mxu0 0.0
      %1213 = vmatpush1.xpose.msra.mxu0 0.0
      %1214 = vmatprep.subr.mxu0 0.0
      %1215 = vmatpush1.xpose.msra.mxu0 0.0
      %1216 = vmatprep.subr.mxu0 0.0
      %1217 = vmatpush1.xpose.msra.mxu0 0.0
      %1218 = vmatprep.mubr.f32.mxu0 %v1130
      %1219 = vmatmul.mubr.f32.gmra.mrb[0].mxu0 %v1129
      %v1220 = vpop.f32.mrb[0].mxu0
      %v1221 = vadd.f32 0.0, %v1220
      %v1222 = vpop.f32.mrb[0].mxu0
      %1223 = vmatprep.mubr.f32.mxu0 %v1135
      %1224 = vmatmul.mubr.f32.gmra.mrb[0].mxu0 %v1134
      %v1225 = vpop.f32.mrb[0].mxu0
      %v1226 = vadd.f32 0.0, %v1225
      %v1227 = vpop.f32.mrb[0].mxu0
      %1228 = vdwg.mxu0
      %1229 = vmatprep.subr.mxu0 %v1142
      %1230 = vmatpush1.xpose.msra.mxu0 %v1141
      %1231 = vmatprep.subr.mxu0 %v1147
      %1232 = vmatpush1.xpose.msra.mxu0 %v1146
      %1233 = vmatprep.subr.mxu0 %v1152
      %1234 = vmatpush1.xpose.msra.mxu0 %v1151
      %1235 = vmatprep.subr.mxu0 0.0
      %1236 = vmatpush1.xpose.msra.mxu0 0.0
      %1237 = vmatprep.subr.mxu0 0.0
      %1238 = vmatpush1.xpose.msra.mxu0 0.0
      %1239 = vmatprep.subr.mxu0 0.0
      %1240 = vmatpush1.xpose.msra.mxu0 0.0
      %1241 = vmatprep.subr.mxu0 0.0
      %1242 = vmatpush1.xpose.msra.mxu0 0.0
      %1243 = vmatprep.subr.mxu0 0.0
      %1244 = vmatpush1.xpose.msra.mxu0 0.0
      %1245 = vmatprep.subr.mxu0 0.0
      %1246 = vmatpush1.xpose.msra.mxu0 0.0
      %1247 = vmatprep.subr.mxu0 0.0
      %1248 = vmatpush1.xpose.msra.mxu0 0.0
      %1249 = vmatprep.subr.mxu0 0.0
      %1250 = vmatpush1.xpose.msra.mxu0 0.0
      %1251 = vmatprep.subr.mxu0 0.0
      %1252 = vmatpush1.xpose.msra.mxu0 0.0
      %1253 = vmatprep.subr.mxu0 0.0
      %1254 = vmatpush1.xpose.msra.mxu0 0.0
      %1255 = vmatprep.subr.mxu0 0.0
      %1256 = vmatpush1.xpose.msra.mxu0 0.0
      %1257 = vmatprep.subr.mxu0 0.0
      %1258 = vmatpush1.xpose.msra.mxu0 0.0
      %1259 = vmatprep.subr.mxu0 0.0
      %1260 = vmatpush1.xpose.msra.mxu0 0.0
      %1261 = vmatprep.subr.mxu0 0.0
      %1262 = vmatpush1.xpose.msra.mxu0 0.0
      %1263 = vmatprep.subr.mxu0 0.0
      %1264 = vmatpush1.xpose.msra.mxu0 0.0
      %1265 = vmatprep.subr.mxu0 0.0
      %1266 = vmatpush1.xpose.msra.mxu0 0.0
      %1267 = vmatprep.subr.mxu0 0.0
      %1268 = vmatpush1.xpose.msra.mxu0 0.0
      %1269 = vmatprep.subr.mxu0 0.0
      %1270 = vmatpush1.xpose.msra.mxu0 0.0
      %1271 = vmatprep.subr.mxu0 0.0
      %1272 = vmatpush1.xpose.msra.mxu0 0.0
      %1273 = vmatprep.subr.mxu0 0.0
      %1274 = vmatpush1.xpose.msra.mxu0 0.0
      %1275 = vmatprep.subr.mxu0 0.0
      %1276 = vmatpush1.xpose.msra.mxu0 0.0
      %1277 = vmatprep.subr.mxu0 0.0
      %1278 = vmatpush1.xpose.msra.mxu0 0.0
      %1279 = vmatprep.subr.mxu0 0.0
      %1280 = vmatpush1.xpose.msra.mxu0 0.0
      %1281 = vmatprep.subr.mxu0 0.0
      %1282 = vmatpush1.xpose.msra.mxu0 0.0
      %1283 = vmatprep.subr.mxu0 0.0
      %1284 = vmatpush1.xpose.msra.mxu0 0.0
      %1285 = vmatprep.subr.mxu0 0.0
      %1286 = vmatpush1.xpose.msra.mxu0 0.0
      %1287 = vmatprep.subr.mxu0 0.0
      %1288 = vmatpush1.xpose.msra.mxu0 0.0
      %1289 = vmatprep.subr.mxu0 0.0
      %1290 = vmatpush1.xpose.msra.mxu0 0.0
      %1291 = vmatprep.subr.mxu0 0.0
      %1292 = vmatpush1.xpose.msra.mxu0 0.0
      %1293 = vmatprep.mubr.f32.mxu0 %v1132
      %1294 = vmatmul.mubr.f32.gmra.mrb[0].mxu0 %v1131
      %v1295 = vpop.f32.mrb[0].mxu0
      %v1296 = vadd.f32 %v1221, %v1295
      %v1297 = vpop.f32.mrb[0].mxu0
      %1298 = vmatprep.mubr.f32.mxu0 %v1137
      %1299 = vmatmul.mubr.f32.gmra.mrb[0].mxu0 %v1136
      %v1300 = vpop.f32.mrb[0].mxu0
      %v1301 = vadd.f32 %v1226, %v1300
      %v1302 = vpop.f32.mrb[0].mxu0
      %1303 = vdwg.mxu0
      %1304 = vmatprep.subr.mxu0 0.0
      %1305 = vmatpush1.xpose.msra.mxu0 %v1143
      %1306 = vmatprep.subr.mxu0 0.0
      %1307 = vmatpush1.xpose.msra.mxu0 %v1148
      %1308 = vmatprep.subr.mxu0 0.0
      %1309 = vmatpush1.xpose.msra.mxu0 %v1153
      %1310 = vmatprep.subr.mxu0 0.0
      %1311 = vmatpush1.xpose.msra.mxu0 0.0
      %1312 = vmatprep.subr.mxu0 0.0
      %1313 = vmatpush1.xpose.msra.mxu0 0.0
      %1314 = vmatprep.subr.mxu0 0.0
      %1315 = vmatpush1.xpose.msra.mxu0 0.0
      %1316 = vmatprep.subr.mxu0 0.0
      %1317 = vmatpush1.xpose.msra.mxu0 0.0
      %1318 = vmatprep.subr.mxu0 0.0
      %1319 = vmatpush1.xpose.msra.mxu0 0.0
      %1320 = vmatprep.subr.mxu0 0.0
      %1321 = vmatpush1.xpose.msra.mxu0 0.0
      %1322 = vmatprep.subr.mxu0 0.0
      %1323 = vmatpush1.xpose.msra.mxu0 0.0
      %1324 = vmatprep.subr.mxu0 0.0
      %1325 = vmatpush1.xpose.msra.mxu0 0.0
      %1326 = vmatprep.subr.mxu0 0.0
      %1327 = vmatpush1.xpose.msra.mxu0 0.0
      %1328 = vmatprep.subr.mxu0 0.0
      %1329 = vmatpush1.xpose.msra.mxu0 0.0
      %1330 = vmatprep.subr.mxu0 0.0
      %1331 = vmatpush1.xpose.msra.mxu0 0.0
      %1332 = vmatprep.subr.mxu0 0.0
      %1333 = vmatpush1.xpose.msra.mxu0 0.0
      %1334 = vmatprep.subr.mxu0 0.0
      %1335 = vmatpush1.xpose.msra.mxu0 0.0
      %1336 = vmatprep.subr.mxu0 0.0
      %1337 = vmatpush1.xpose.msra.mxu0 0.0
      %1338 = vmatprep.subr.mxu0 0.0
      %1339 = vmatpush1.xpose.msra.mxu0 0.0
      %1340 = vmatprep.subr.mxu0 0.0
      %1341 = vmatpush1.xpose.msra.mxu0 0.0
      %1342 = vmatprep.subr.mxu0 0.0
      %1343 = vmatpush1.xpose.msra.mxu0 0.0
      %1344 = vmatprep.subr.mxu0 0.0
      %1345 = vmatpush1.xpose.msra.mxu0 0.0
      %1346 = vmatprep.subr.mxu0 0.0
      %1347 = vmatpush1.xpose.msra.mxu0 0.0
      %1348 = vmatprep.subr.mxu0 0.0
      %1349 = vmatpush1.xpose.msra.mxu0 0.0
      %1350 = vmatprep.subr.mxu0 0.0
      %1351 = vmatpush1.xpose.msra.mxu0 0.0
      %1352 = vmatprep.subr.mxu0 0.0
      %1353 = vmatpush1.xpose.msra.mxu0 0.0
      %1354 = vmatprep.subr.mxu0 0.0
      %1355 = vmatpush1.xpose.msra.mxu0 0.0
      %1356 = vmatprep.subr.mxu0 0.0
      %1357 = vmatpush1.xpose.msra.mxu0 0.0
      %1358 = vmatprep.subr.mxu0 0.0
      %1359 = vmatpush1.xpose.msra.mxu0 0.0
      %1360 = vmatprep.subr.mxu0 0.0
      %1361 = vmatpush1.xpose.msra.mxu0 0.0
      %1362 = vmatprep.subr.mxu0 0.0
      %1363 = vmatpush1.xpose.msra.mxu0 0.0
      %1364 = vmatprep.subr.mxu0 0.0
      %1365 = vmatpush1.xpose.msra.mxu0 0.0
      %1366 = vmatprep.subr.mxu0 0.0
      %1367 = vmatpush1.xpose.msra.mxu0 0.0
      %1368 = vmatprep.mubr.f32.mxu0 0.0
      %1369 = vmatmul.mubr.f32.gmra.mrb[0].mxu0 %v1133
      %v1370 = vpop.f32.mrb[0].mxu0
      %v1371 = vadd.f32 %v1296, %v1370
      %v1372 = vpop.f32.mrb[0].mxu0
      %1373 = vmatprep.mubr.f32.mxu0 0.0
      %1374 = vmatmul.mubr.f32.gmra.mrb[0].mxu0 %v1138
      %v1375 = vpop.f32.mrb[0].mxu0
      %v1376 = vadd.f32 %v1301, %v1375
      %v1377 = vpop.f32.mrb[0].mxu0
      %1378 = vdwg.mxu0
      %v1379 = vsel %vm982, %v1371, 1.0
      %v1380 = vsel %vm982, %v1376, 1.0
      %v1381 = vld [vmem:[#allocation3] sm:$0xff]
      %v1382 = vld [vmem:[#allocation3 + $0x8] sm:$0xf]
      %v1383 = vpack.c.bf16 %v1380, %v1379
      %vm1384 = vcmask 130048
      %v1386 = vsel %vm1384, %v881, 0
      %1388 = vmatprep.subr.bf16.mxu0 0
      %1389 = vmatpush1.bf16.msra.mxu0 %v1383
      %1390 = vmatprep.subr.bf16.mxu0 0
      %1391 = vmatpush1.bf16.msra.mxu0 0
      %1392 = vmatprep.subr.bf16.mxu0 0
      %1393 = vmatpush1.bf16.msra.mxu0 0
      %1394 = vmatprep.subr.bf16.mxu0 0
      %1395 = vmatpush1.bf16.msra.mxu0 0
      %1396 = vmatprep.subr.bf16.mxu0 0
      %1397 = vmatpush1.bf16.msra.mxu0 0
      %1398 = vmatprep.subr.bf16.mxu0 0
      %1399 = vmatpush1.bf16.msra.mxu0 0
      %1400 = vmatprep.subr.bf16.mxu0 0
      %1401 = vmatpush1.bf16.msra.mxu0 0
      %1402 = vmatprep.subr.bf16.mxu0 0
      %1403 = vmatpush1.bf16.msra.mxu0 0
      %1404 = vmatprep.subr.bf16.mxu0 0
      %1405 = vmatpush1.bf16.msra.mxu0 0
      %1406 = vmatprep.subr.bf16.mxu0 0
      %1407 = vmatpush1.bf16.msra.mxu0 0
      %1408 = vmatprep.subr.bf16.mxu0 0
      %1409 = vmatpush1.bf16.msra.mxu0 0
      %1410 = vmatprep.subr.bf16.mxu0 0
      %1411 = vmatpush1.bf16.msra.mxu0 0
      %1412 = vmatprep.subr.bf16.mxu0 0
      %1413 = vmatpush1.bf16.msra.mxu0 0
      %1414 = vmatprep.subr.bf16.mxu0 0
      %1415 = vmatpush1.bf16.msra.mxu0 0
      %1416 = vmatprep.subr.bf16.mxu0 0
      %1417 = vmatpush1.bf16.msra.mxu0 0
      %1418 = vmatprep.subr.bf16.mxu0 0
      %1419 = vmatpush1.bf16.msra.mxu0 0
      %1420 = vmatprep.mubr.bf16.mxu0 0
      %1421 = vmatmul.mubr.bf16.gmra.mrb[0].mxu0 %v1386
      %v1422 = vpop.f32.mrb[0].mxu0
      %v1423 = vadd.f32 0.0, %v1422
      %v1424 = vpop.f32.mrb[0].mxu0
      %v1425 = vpop.f32.mrb[0].mxu0
      %v1426 = vadd.f32 0.0, %v1425
      %v1427 = vpop.f32.mrb[0].mxu0
      %1428 = vdwg.mxu0
      %v1429 = vadd.f32 %v1381, %v1423
      %v1430 = vadd.f32 %v1382, %v1426
      %vm1431 = vcmask 203776
      %1432 = vst.msk [vmem:[#allocation3] sm:$0xff] %vm1431, %v1429
      %vm1433 = vcmask 199680
      %1434 = vst.msk [vmem:[#allocation3 + $0x8] sm:$0xf] %vm1433, %v1430
      // Predicated region
      $region77: #{nnconvnet_forward.2} parent=67 // pred_check
        %p1435 = pneg %p451
      $region78: #{nnconvnet_forward.2} parent=67 // pred_check_branch
        %1437 = sbr.rel (%p1435) target = $region80
      $region79: #{nnconvnet_forward.2} parent=67 // pred_region
        %v1438 = vld [vmem:[#allocation3] sm:$0xff]
        %v1439 = vld [vmem:[#allocation3 + $0x8] sm:$0xf]
        %v1440 = vmax.f32 %v1438, 1.0
        %v1441 = vmax.f32 %v1439, 1.0
        %1443 = vset.pattern.permute.xlu0 24
        %1444 = vperm.xlu0 %1443, %v1440
        %v1445 = vpop.permute.xlu0 %1444
        %1448 = vset.pattern.permute.xlu0 24
        %1449 = vperm.xlu0 %1448, %v1441
        %v1450 = vpop.permute.xlu0 %1449
        %v1452 = vrcp.pop %v1445
        %v1453 = vmul.f32 %v1438, %v1452
        %v1454 = vrcp.pop %v1450
        %v1455 = vmul.f32 %v1439, %v1454
        %v1456 = vld [vmem:[#allocation2] sm:$0xff]
        %v1457 = vld [vmem:[#allocation2 + $0x8] sm:$0xf]
        %v1458 = vld [vmem:[%s8] sm:$0xff]
        %v1459 = vld [vmem:[%s8 + $0x8] sm:$0xff]
        %v1460 = vld [vmem:[%s8 + $0x10] sm:$0xff]
        %v1462 = vsel %vm982, %v1456, 0
        %v1465 = vsel %vm982, %v1457, 0
        %1467 = vmatprep.subr.mxu0 0.0
        %1468 = vmatpush1.msra.mxu0 %v1458
        %1469 = vmatprep.subr.mxu0 0.0
        %1470 = vmatpush1.msra.mxu0 %v1459
        %1471 = vmatprep.subr.mxu0 0.0
        %1472 = vmatpush1.msra.mxu0 %v1460
        %1473 = vmatprep.subr.mxu0 0.0
        %1474 = vmatpush1.msra.mxu0 0.0
        %1475 = vmatprep.subr.mxu0 0.0
        %1476 = vmatpush1.msra.mxu0 0.0
        %1477 = vmatprep.subr.mxu0 0.0
        %1478 = vmatpush1.msra.mxu0 0.0
        %1479 = vmatprep.subr.mxu0 0.0
        %1480 = vmatpush1.msra.mxu0 0.0
        %1481 = vmatprep.subr.mxu0 0.0
        %1482 = vmatpush1.msra.mxu0 0.0
        %1483 = vmatprep.subr.mxu0 0.0
        %1484 = vmatpush1.msra.mxu0 0.0
        %1485 = vmatprep.subr.mxu0 0.0
        %1486 = vmatpush1.msra.mxu0 0.0
        %1487 = vmatprep.subr.mxu0 0.0
        %1488 = vmatpush1.msra.mxu0 0.0
        %1489 = vmatprep.subr.mxu0 0.0
        %1490 = vmatpush1.msra.mxu0 0.0
        %1491 = vmatprep.subr.mxu0 0.0
        %1492 = vmatpush1.msra.mxu0 0.0
        %1493 = vmatprep.subr.mxu0 0.0
        %1494 = vmatpush1.msra.mxu0 0.0
        %1495 = vmatprep.subr.mxu0 0.0
        %1496 = vmatpush1.msra.mxu0 0.0
        %1497 = vmatprep.subr.mxu0 0.0
        %1498 = vmatpush1.msra.mxu0 0.0
        %1499 = vmatprep.subr.mxu0 0.0
        %1500 = vmatpush1.msra.mxu0 0.0
        %1501 = vmatprep.subr.mxu0 0.0
        %1502 = vmatpush1.msra.mxu0 0.0
        %1503 = vmatprep.subr.mxu0 0.0
        %1504 = vmatpush1.msra.mxu0 0.0
        %1505 = vmatprep.subr.mxu0 0.0
        %1506 = vmatpush1.msra.mxu0 0.0
        %1507 = vmatprep.subr.mxu0 0.0
        %1508 = vmatpush1.msra.mxu0 0.0
        %1509 = vmatprep.subr.mxu0 0.0
        %1510 = vmatpush1.msra.mxu0 0.0
        %1511 = vmatprep.subr.mxu0 0.0
        %1512 = vmatpush1.msra.mxu0 0.0
        %1513 = vmatprep.subr.mxu0 0.0
        %1514 = vmatpush1.msra.mxu0 0.0
        %1515 = vmatprep.subr.mxu0 0.0
        %1516 = vmatpush1.msra.mxu0 0.0
        %1517 = vmatprep.subr.mxu0 0.0
        %1518 = vmatpush1.msra.mxu0 0.0
        %1519 = vmatprep.subr.mxu0 0.0
        %1520 = vmatpush1.msra.mxu0 0.0
        %1521 = vmatprep.subr.mxu0 0.0
        %1522 = vmatpush1.msra.mxu0 0.0
        %1523 = vmatprep.subr.mxu0 0.0
        %1524 = vmatpush1.msra.mxu0 0.0
        %1525 = vmatprep.subr.mxu0 0.0
        %1526 = vmatpush1.msra.mxu0 0.0
        %1527 = vmatprep.subr.mxu0 0.0
        %1528 = vmatpush1.msra.mxu0 0.0
        %1529 = vmatprep.subr.mxu0 0.0
        %1530 = vmatpush1.msra.mxu0 0.0
        %1531 = vmatprep.mubr.f32.mxu0 0.0
        %1532 = vmatmul.mubr.f32.gmra.mrb[0].mxu0 %v1462
        %v1533 = vpop.f32.mrb[0].mxu0
        %v1534 = vadd.f32 0.0, %v1533
        %v1535 = vpop.f32.mrb[0].mxu0
        %1536 = vmatprep.mubr.f32.mxu0 0.0
        %1537 = vmatmul.mubr.f32.gmra.mrb[0].mxu0 %v1465
        %v1538 = vpop.f32.mrb[0].mxu0
        %v1539 = vadd.f32 0.0, %v1538
        %v1540 = vpop.f32.mrb[0].mxu0
        %1541 = vdwg.mxu0
        %v1542 = vadd.f32 %v1453, %v1534
        %v1543 = vadd.f32 %v1455, %v1539
        %v1544 = vld [vmem:[%s9] sm:$0x1]
        %v1546 = vlaneseq
        %v1547 = vshrl.u32 %v1546, 7
        %v1548 = vsub.s32 0, %v1547
        %v1549 = vrot.slane %v1544, %v1548
        %v1551 = vadd.f32 %v1542, %v1549
        %v1552 = vadd.f32 %v1543, %v1549
        %p1553 = scmp.ne.s32.totalorder %s27, 1
        // Predicated region
        $region81: #{nnconvnet_forward.2} parent=79 // pred_check
          %p1554 = pneg %p1553
        $region82: #{nnconvnet_forward.2} parent=79 // pred_check_branch
          %1556 = sbr.rel (%p1554) target = $region84
        $region83: #{nnconvnet_forward.2} parent=79 // pred_region
          %v1557 = vmax.f32 %v1551, 0.0
          %v1558 = vmax.f32 %v1552, 0.0
          %1559 = vst.msk [vmem:[#allocation2] sm:$0xff] %vm982, %v1557
          %vm1560 = vcmask 191488
          %1561 = vst.msk [vmem:[#allocation2 + $0x8] sm:$0xf] %vm1560, %v1558
        $region84: #{nnconvnet_forward.2} parent=79 // pred_fallthru
          _
        %p1562 = scmp.eq.s32.totalorder %s27, 1
        // Predicated region
        $region85: #{nnconvnet_forward.2} parent=79 // pred_check
          %p1563 = pneg %p1562
        $region86: #{nnconvnet_forward.2} parent=79 // pred_check_branch
          %1565 = sbr.rel (%p1563) target = $region88
        $region87: #{nnconvnet_forward.2} parent=79 // pred_region
          %1566 = vst.msk [vmem:[%s12] sm:$0xff] %vm982, %v1551
          %vm1567 = vcmask 191488
          %1568 = vst.msk [vmem:[%s12 + $0x8] sm:$0xf] %vm1567, %v1552
        $region88: #{nnconvnet_forward.2} parent=79 // pred_fallthru
          _
      $region80: #{nnconvnet_forward.2} parent=67 // pred_fallthru
        _
      // Predicated region
      $region89: #{nnconvnet_forward.2} parent=67 // pred_check
        %p1569 = pneg %p315
      $region90: #{nnconvnet_forward.2} parent=67 // pred_check_branch
        %1571 = sbr.rel (%p1569) target = $region92
      $region91: #{nnconvnet_forward.2} parent=67 // pred_region
        _
      $region92: #{nnconvnet_forward.2} parent=67 // pred_fallthru
        _
      // Predicated region
      $region93: #{nnconvnet_forward.2} parent=67 // pred_check
        %p1572 = pneg %p315
      $region94: #{nnconvnet_forward.2} parent=67 // pred_check_branch
        %1574 = sbr.rel (%p1572) target = $region96
      $region95: #{nnconvnet_forward.2} parent=67 // pred_region
        _
      $region96: #{nnconvnet_forward.2} parent=67 // pred_fallthru
        _
    $region68: #{nnconvnet_forward.2} parent=5 // pred_fallthru
      _
    %p1575 = scmp.le.s32.totalorder 2, %s18
    // Predicated region
    $region97: #{nnconvnet_forward.2} parent=5 // pred_check
      %p1576 = pneg %p1575
    $region98: #{nnconvnet_forward.2} parent=5 // pred_check_branch
      %1578 = sbr.rel (%p1576) target = $region100
    $region99: #{nnconvnet_forward.2} parent=5 // pred_region
      %s1579 = ssub.s32 %s18, 2
    $region100: #{nnconvnet_forward.2} parent=5 // pred_fallthru
      _
  $region6: #{nnconvnet_forward.2} parent=0 // loop_footer
    %s22 = sadd.s32 1, %s18
  $region7: #{nnconvnet_forward.2} parent=0 // loop_footer_branch
    %17 = sbr.rel target = $region3
  $region8: #{nnconvnet_forward.2} parent=0 // loop_exit
    _

</llo_original>
